<compile_context>
chip_gen: v7x
topology: tpu7x:2x2x1
jax: 0.10.0
libtpu: 0.0.40
codegen_flags: <defaults>
</compile_context>

<pallas_src>
import jax
import jax.numpy as jnp
from jax import lax
from jax.experimental import pallas as pl
from jax.experimental.pallas import tpu as pltpu

LANES = 128   # lane width of the packed slabs / state row
CHUNK = 8     # steps per unrolled inner block == sublane tile height


def _lqr_rollout_kernel(g_ref, x0_ref, out_ref):
    """Sequential closed-loop rollout, one fused matmul per step.

    g_ref  : (steps_pad, kdim, 128)  packed per-step matrices G_i
    x0_ref : (1, 128)                x0 in lanes [0, n)
    out_ref: (steps_pad, 128)        row i = [ x_{i+1} | u_i | 0 ... ]
    """
    steps_pad = out_ref.shape[0]
    kdim = g_ref.shape[1]
    n_chunks = steps_pad // CHUNK

    def chunk_body(c, y):
        base = pl.multiple_of(c * CHUNK, CHUNK)
        g_chunk = g_ref[pl.ds(base, CHUNK), :, :]          # (CHUNK, kdim, 128)
        rows = []
        for j in range(CHUNK):                             # statically unrolled
            # One MXU matmul yields next state (lanes < n) and control
            # (lanes n..n+m-1).  Rows >= n of G are zero, so the control
            # lanes carried in y never feed back into the recursion.
            y = jnp.dot(y[:, :kdim], g_chunk[j],
                        preferred_element_type=jnp.float32)
            rows.append(y)
        # Aligned, unmasked (8,128) store — off the serial dependence chain.
        out_ref[pl.ds(base, CHUNK), :] = jnp.concatenate(rows, axis=0)
        return y

    lax.fori_loop(0, n_chunks, chunk_body, x0_ref[...],
                  unroll=min(n_chunks, 8))


def lqr_forward_pallas(A, B, K, x):
    """Pallas equivalent of LQRsolver.forward(x) -> (K, u, x_star)."""
    steps, m, n = K.shape
    assert n + m <= LANES, "state + control must fit in one 128-lane row"
    kdim = max(CHUNK, ((n + CHUNK - 1) // CHUNK) * CHUNK)
    steps_pad = ((steps + CHUNK - 1) // CHUNK) * CHUNK

    A32 = A.astype(jnp.float32)
    B32 = B.astype(jnp.float32)
    K32 = K.astype(jnp.float32)
    x32 = x.astype(jnp.float32)

    KT = jnp.transpose(K32, (0, 2, 1))              # (steps, n, m) = K_i^T
    MclT = A32.T[None, :, :] - KT @ B32.T           # (steps, n, n) = (A - B K_i)^T

    # Packed per-step slab: rows 0..n-1 hold [Mcl_i^T | -K_i^T], rest zero.
    G = jnp.zeros((steps_pad, kdim, LANES), jnp.float32)
    G = G.at[:steps, :n, :n].set(MclT)
    G = G.at[:steps, :n, n:n + m].set(-KT)
    x0 = jnp.zeros((1, LANES), jnp.float32).at[0, :n].set(x32[:, 0])

    out = pl.pallas_call(
        _lqr_rollout_kernel,
        out_shape=jax.ShapeDtypeStruct((steps_pad, LANES), jnp.float32),
        in_specs=[pl.BlockSpec(memory_space=pltpu.MemorySpace.VMEM),
                  pl.BlockSpec(memory_space=pltpu.MemorySpace.VMEM)],
        out_specs=pl.BlockSpec(memory_space=pltpu.MemorySpace.VMEM),
    )(G, x0)

    x_next = out[:steps, :n]                         # x_1 .. x_steps
    u = out[:steps, n:n + m].reshape(steps, m, 1)    # u_0 .. u_{steps-1}
    x_star = jnp.concatenate(
        [x32.reshape(1, n, 1), x_next.reshape(steps, n, 1)], axis=0)
    return K, u, x_star


def lqr_gains(A, B, Q, R, N, steps):
    """Plain-JAX mirror of LQRsolver.__init__ (backward Riccati recursion)."""
    # TODO(synk): torch.linalg.pinv-based gain setup has no Pallas equivalent;
    # it is parameter construction, so it stays in plain JAX.
    def step(P, _):
        S = R + B.T @ P @ B
        F = B.T @ P @ A + N.T
        Ki = jnp.linalg.pinv(S) @ F
        P_prev = A.T @ P @ A - (A.T @ P @ B + N) @ Ki + Q
        return P_prev, Ki

    _, Ks_rev = lax.scan(step, Q, None, length=steps)
    return Ks_rev[::-1]                              # K[0], ..., K[steps-1]


if __name__ == "__main__":
    # Small, deterministic problem: n=4 states, m=2 controls, steps=64.
    n, m = 4, 2
    H, dt = 0.64, 0.01
    steps = int(H / dt)  # 64

    key = jax.random.PRNGKey(0)
    ka, kb, kx = jax.random.split(key, 3)
    A = jnp.eye(n, dtype=jnp.float32) + 0.05 * jax.random.normal(ka, (n, n), jnp.float32)
    B = 0.1 * jax.random.normal(kb, (n, m), jnp.float32)
    Q = jnp.eye(n, dtype=jnp.float32) * 1.0          # scalar Q -> eye(n) * Q
    R = jnp.eye(m, dtype=jnp.float32) * 0.1          # scalar R -> eye(m) * R
    Ncross = jnp.eye(n, m, dtype=jnp.float32) * 0.0  # scalar N -> eye(n, m) * N

    K = lqr_gains(A, B, Q, R, Ncross, steps)         # (steps, m, n)
    x = jax.random.normal(kx, (n, 1), jnp.float32)   # initial state column

    K_out, u, x_star = lqr_forward_pallas(A, B, K, x)
    jax.block_until_ready((K_out, u, x_star))

    # Pure-JAX reference (mirrors the torch forward exactly).
    def ref_forward(A, B, K, x0):
        def step(xc, Ki):
            uc = -Ki @ xc
            xn = A @ xc + B @ uc
            return xn, (uc, xn)
        _, (us, xs) = lax.scan(step, x0, K)
        return us, jnp.concatenate([x0[None], xs], axis=0)

    u_ref, xstar_ref = ref_forward(A, B, K, x)
    assert K_out.shape == (steps, m, n)
    assert u.shape == (steps, m, 1)
    assert x_star.shape == (steps + 1, n, 1)
    assert bool(jnp.all(jnp.isfinite(u))) and bool(jnp.all(jnp.isfinite(x_star)))
    assert jnp.allclose(u, u_ref, rtol=1e-2, atol=1e-2)
    assert jnp.allclose(x_star, xstar_ref, rtol=1e-2, atol=1e-2)

    print("KERNEL_OK")
</pallas_src>

<mosaic_0001>
module attributes {stable_mosaic.version = 11 : i64} {
  func.func @_lqr_rollout_kernel(%arg0: memref<64x8x128xf32, #tpu.memory_space<vmem>>, %arg1: memref<1x128xf32, #tpu.memory_space<vmem>>, %arg2: memref<64x128xf32, #tpu.memory_space<vmem>>) attributes {dimension_semantics = [], scalar_prefetch = 0 : i64, scratch_operands = 0 : i64, tpu.core_type = #tpu.core_type<tc>} {
    %c0 = arith.constant 0 : index
    %c0_0 = arith.constant 0 : index
    %0 = vector.load %arg1[%c0, %c0_0] : memref<1x128xf32, #tpu.memory_space<vmem>>, vector<1x128xf32>
    %c0_i32 = arith.constant 0 : i32
    %c8_i32 = arith.constant 8 : i32
    %1 = arith.muli %c0_i32, %c8_i32 : i32
    %2 = tpu.assume_multiple %1, 8 : i32
    %3 = arith.index_cast %2 : i32 to index
    %c0_1 = arith.constant 0 : index
    %c0_2 = arith.constant 0 : index
    %4 = vector.load %arg0[%3, %c0_1, %c0_2] : memref<64x8x128xf32, #tpu.memory_space<vmem>>, vector<8x8x128xf32>
    %5 = vector.extract_strided_slice %0 {offsets = [0, 0], sizes = [1, 8], strides = [1, 1]} : vector<1x128xf32> to vector<1x8xf32>
    %6 = vector.extract_strided_slice %4 {offsets = [0, 0, 0], sizes = [1, 8, 128], strides = [1, 1, 1]} : vector<8x8x128xf32> to vector<1x8x128xf32>
    %7 = vector.shape_cast %6 : vector<1x8x128xf32> to vector<8x128xf32>
    %cst = arith.constant dense<0.000000e+00> : vector<1x128xf32>
    %8 = tpu.matmul %5, %7, %cst {dimension_numbers = #tpu.dot_dimension_numbers<[1], [0], [0], [1], [0, 0, 1, 1], [], []>} : vector<1x8xf32>, vector<8x128xf32>, vector<1x128xf32> -> vector<1x128xf32>
    %9 = vector.extract_strided_slice %8 {offsets = [0, 0], sizes = [1, 8], strides = [1, 1]} : vector<1x128xf32> to vector<1x8xf32>
    %10 = vector.extract_strided_slice %4 {offsets = [1, 0, 0], sizes = [1, 8, 128], strides = [1, 1, 1]} : vector<8x8x128xf32> to vector<1x8x128xf32>
    %11 = vector.shape_cast %10 : vector<1x8x128xf32> to vector<8x128xf32>
    %cst_3 = arith.constant dense<0.000000e+00> : vector<1x128xf32>
    %12 = tpu.matmul %9, %11, %cst_3 {dimension_numbers = #tpu.dot_dimension_numbers<[1], [0], [0], [1], [0, 0, 1, 1], [], []>} : vector<1x8xf32>, vector<8x128xf32>, vector<1x128xf32> -> vector<1x128xf32>
    %13 = vector.extract_strided_slice %12 {offsets = [0, 0], sizes = [1, 8], strides = [1, 1]} : vector<1x128xf32> to vector<1x8xf32>
    %14 = vector.extract_strided_slice %4 {offsets = [2, 0, 0], sizes = [1, 8, 128], strides = [1, 1, 1]} : vector<8x8x128xf32> to vector<1x8x128xf32>
    %15 = vector.shape_cast %14 : vector<1x8x128xf32> to vector<8x128xf32>
    %cst_4 = arith.constant dense<0.000000e+00> : vector<1x128xf32>
    %16 = tpu.matmul %13, %15, %cst_4 {dimension_numbers = #tpu.dot_dimension_numbers<[1], [0], [0], [1], [0, 0, 1, 1], [], []>} : vector<1x8xf32>, vector<8x128xf32>, vector<1x128xf32> -> vector<1x128xf32>
    %17 = vector.extract_strided_slice %16 {offsets = [0, 0], sizes = [1, 8], strides = [1, 1]} : vector<1x128xf32> to vector<1x8xf32>
    %18 = vector.extract_strided_slice %4 {offsets = [3, 0, 0], sizes = [1, 8, 128], strides = [1, 1, 1]} : vector<8x8x128xf32> to vector<1x8x128xf32>
    %19 = vector.shape_cast %18 : vector<1x8x128xf32> to vector<8x128xf32>
    %cst_5 = arith.constant dense<0.000000e+00> : vector<1x128xf32>
    %20 = tpu.matmul %17, %19, %cst_5 {dimension_numbers = #tpu.dot_dimension_numbers<[1], [0], [0], [1], [0, 0, 1, 1], [], []>} : vector<1x8xf32>, vector<8x128xf32>, vector<1x128xf32> -> vector<1x128xf32>
    %21 = vector.extract_strided_slice %20 {offsets = [0, 0], sizes = [1, 8], strides = [1, 1]} : vector<1x128xf32> to vector<1x8xf32>
    %22 = vector.extract_strided_slice %4 {offsets = [4, 0, 0], sizes = [1, 8, 128], strides = [1, 1, 1]} : vector<8x8x128xf32> to vector<1x8x128xf32>
    %23 = vector.shape_cast %22 : vector<1x8x128xf32> to vector<8x128xf32>
    %cst_6 = arith.constant dense<0.000000e+00> : vector<1x128xf32>
    %24 = tpu.matmul %21, %23, %cst_6 {dimension_numbers = #tpu.dot_dimension_numbers<[1], [0], [0], [1], [0, 0, 1, 1], [], []>} : vector<1x8xf32>, vector<8x128xf32>, vector<1x128xf32> -> vector<1x128xf32>
    %25 = vector.extract_strided_slice %24 {offsets = [0, 0], sizes = [1, 8], strides = [1, 1]} : vector<1x128xf32> to vector<1x8xf32>
    %26 = vector.extract_strided_slice %4 {offsets = [5, 0, 0], sizes = [1, 8, 128], strides = [1, 1, 1]} : vector<8x8x128xf32> to vector<1x8x128xf32>
    %27 = vector.shape_cast %26 : vector<1x8x128xf32> to vector<8x128xf32>
    %cst_7 = arith.constant dense<0.000000e+00> : vector<1x128xf32>
    %28 = tpu.matmul %25, %27, %cst_7 {dimension_numbers = #tpu.dot_dimension_numbers<[1], [0], [0], [1], [0, 0, 1, 1], [], []>} : vector<1x8xf32>, vector<8x128xf32>, vector<1x128xf32> -> vector<1x128xf32>
    %29 = vector.extract_strided_slice %28 {offsets = [0, 0], sizes = [1, 8], strides = [1, 1]} : vector<1x128xf32> to vector<1x8xf32>
    %30 = vector.extract_strided_slice %4 {offsets = [6, 0, 0], sizes = [1, 8, 128], strides = [1, 1, 1]} : vector<8x8x128xf32> to vector<1x8x128xf32>
    %31 = vector.shape_cast %30 : vector<1x8x128xf32> to vector<8x128xf32>
    %cst_8 = arith.constant dense<0.000000e+00> : vector<1x128xf32>
    %32 = tpu.matmul %29, %31, %cst_8 {dimension_numbers = #tpu.dot_dimension_numbers<[1], [0], [0], [1], [0, 0, 1, 1], [], []>} : vector<1x8xf32>, vector<8x128xf32>, vector<1x128xf32> -> vector<1x128xf32>
    %33 = vector.extract_strided_slice %32 {offsets = [0, 0], sizes = [1, 8], strides = [1, 1]} : vector<1x128xf32> to vector<1x8xf32>
    %34 = vector.extract_strided_slice %4 {offsets = [7, 0, 0], sizes = [1, 8, 128], strides = [1, 1, 1]} : vector<8x8x128xf32> to vector<1x8x128xf32>
    %35 = vector.shape_cast %34 : vector<1x8x128xf32> to vector<8x128xf32>
    %cst_9 = arith.constant dense<0.000000e+00> : vector<1x128xf32>
    %36 = tpu.matmul %33, %35, %cst_9 {dimension_numbers = #tpu.dot_dimension_numbers<[1], [0], [0], [1], [0, 0, 1, 1], [], []>} : vector<1x8xf32>, vector<8x128xf32>, vector<1x128xf32> -> vector<1x128xf32>
    %37 = tpu.concatenate %8, %12, %16, %20, %24, %28, %32, %36 in 0 : vector<1x128xf32>, vector<1x128xf32>, vector<1x128xf32>, vector<1x128xf32>, vector<1x128xf32>, vector<1x128xf32>, vector<1x128xf32>, vector<1x128xf32> -> vector<8x128xf32>
    %38 = arith.index_cast %2 : i32 to index
    %c0_10 = arith.constant 0 : index
    %39 = vector.load %arg2[%38, %c0_10] : memref<64x128xf32, #tpu.memory_space<vmem>>, vector<8x128xf32>
    tpu.vector_store %arg2[%38, %c0_10], %37 {strides = array<i32>} : memref<64x128xf32, #tpu.memory_space<vmem>>, vector<8x128xf32>,
    %c1_i32 = arith.constant 1 : i32
    %c8_i32_11 = arith.constant 8 : i32
    %40 = arith.muli %c1_i32, %c8_i32_11 : i32
    %41 = tpu.assume_multiple %40, 8 : i32
    %42 = arith.index_cast %41 : i32 to index
    %c0_12 = arith.constant 0 : index
    %c0_13 = arith.constant 0 : index
    %43 = vector.load %arg0[%42, %c0_12, %c0_13] : memref<64x8x128xf32, #tpu.memory_space<vmem>>, vector<8x8x128xf32>
    %44 = vector.extract_strided_slice %36 {offsets = [0, 0], sizes = [1, 8], strides = [1, 1]} : vector<1x128xf32> to vector<1x8xf32>
    %45 = vector.extract_strided_slice %43 {offsets = [0, 0, 0], sizes = [1, 8, 128], strides = [1, 1, 1]} : vector<8x8x128xf32> to vector<1x8x128xf32>
    %46 = vector.shape_cast %45 : vector<1x8x128xf32> to vector<8x128xf32>
    %cst_14 = arith.constant dense<0.000000e+00> : vector<1x128xf32>
    %47 = tpu.matmul %44, %46, %cst_14 {dimension_numbers = #tpu.dot_dimension_numbers<[1], [0], [0], [1], [0, 0, 1, 1], [], []>} : vector<1x8xf32>, vector<8x128xf32>, vector<1x128xf32> -> vector<1x128xf32>
    %48 = vector.extract_strided_slice %47 {offsets = [0, 0], sizes = [1, 8], strides = [1, 1]} : vector<1x128xf32> to vector<1x8xf32>
    %49 = vector.extract_strided_slice %43 {offsets = [1, 0, 0], sizes = [1, 8, 128], strides = [1, 1, 1]} : vector<8x8x128xf32> to vector<1x8x128xf32>
    %50 = vector.shape_cast %49 : vector<1x8x128xf32> to vector<8x128xf32>
    %cst_15 = arith.constant dense<0.000000e+00> : vector<1x128xf32>
    %51 = tpu.matmul %48, %50, %cst_15 {dimension_numbers = #tpu.dot_dimension_numbers<[1], [0], [0], [1], [0, 0, 1, 1], [], []>} : vector<1x8xf32>, vector<8x128xf32>, vector<1x128xf32> -> vector<1x128xf32>
    %52 = vector.extract_strided_slice %51 {offsets = [0, 0], sizes = [1, 8], strides = [1, 1]} : vector<1x128xf32> to vector<1x8xf32>
    %53 = vector.extract_strided_slice %43 {offsets = [2, 0, 0], sizes = [1, 8, 128], strides = [1, 1, 1]} : vector<8x8x128xf32> to vector<1x8x128xf32>
    %54 = vector.shape_cast %53 : vector<1x8x128xf32> to vector<8x128xf32>
    %cst_16 = arith.constant dense<0.000000e+00> : vector<1x128xf32>
    %55 = tpu.matmul %52, %54, %cst_16 {dimension_numbers = #tpu.dot_dimension_numbers<[1], [0], [0], [1], [0, 0, 1, 1], [], []>} : vector<1x8xf32>, vector<8x128xf32>, vector<1x128xf32> -> vector<1x128xf32>
    %56 = vector.extract_strided_slice %55 {offsets = [0, 0], sizes = [1, 8], strides = [1, 1]} : vector<1x128xf32> to vector<1x8xf32>
    %57 = vector.extract_strided_slice %43 {offsets = [3, 0, 0], sizes = [1, 8, 128], strides = [1, 1, 1]} : vector<8x8x128xf32> to vector<1x8x128xf32>
    %58 = vector.shape_cast %57 : vector<1x8x128xf32> to vector<8x128xf32>
    %cst_17 = arith.constant dense<0.000000e+00> : vector<1x128xf32>
    %59 = tpu.matmul %56, %58, %cst_17 {dimension_numbers = #tpu.dot_dimension_numbers<[1], [0], [0], [1], [0, 0, 1, 1], [], []>} : vector<1x8xf32>, vector<8x128xf32>, vector<1x128xf32> -> vector<1x128xf32>
    %60 = vector.extract_strided_slice %59 {offsets = [0, 0], sizes = [1, 8], strides = [1, 1]} : vector<1x128xf32> to vector<1x8xf32>
    %61 = vector.extract_strided_slice %43 {offsets = [4, 0, 0], sizes = [1, 8, 128], strides = [1, 1, 1]} : vector<8x8x128xf32> to vector<1x8x128xf32>
    %62 = vector.shape_cast %61 : vector<1x8x128xf32> to vector<8x128xf32>
    %cst_18 = arith.constant dense<0.000000e+00> : vector<1x128xf32>
    %63 = tpu.matmul %60, %62, %cst_18 {dimension_numbers = #tpu.dot_dimension_numbers<[1], [0], [0], [1], [0, 0, 1, 1], [], []>} : vector<1x8xf32>, vector<8x128xf32>, vector<1x128xf32> -> vector<1x128xf32>
    %64 = vector.extract_strided_slice %63 {offsets = [0, 0], sizes = [1, 8], strides = [1, 1]} : vector<1x128xf32> to vector<1x8xf32>
    %65 = vector.extract_strided_slice %43 {offsets = [5, 0, 0], sizes = [1, 8, 128], strides = [1, 1, 1]} : vector<8x8x128xf32> to vector<1x8x128xf32>
    %66 = vector.shape_cast %65 : vector<1x8x128xf32> to vector<8x128xf32>
    %cst_19 = arith.constant dense<0.000000e+00> : vector<1x128xf32>
    %67 = tpu.matmul %64, %66, %cst_19 {dimension_numbers = #tpu.dot_dimension_numbers<[1], [0], [0], [1], [0, 0, 1, 1], [], []>} : vector<1x8xf32>, vector<8x128xf32>, vector<1x128xf32> -> vector<1x128xf32>
    %68 = vector.extract_strided_slice %67 {offsets = [0, 0], sizes = [1, 8], strides = [1, 1]} : vector<1x128xf32> to vector<1x8xf32>
    %69 = vector.extract_strided_slice %43 {offsets = [6, 0, 0], sizes = [1, 8, 128], strides = [1, 1, 1]} : vector<8x8x128xf32> to vector<1x8x128xf32>
    %70 = vector.shape_cast %69 : vector<1x8x128xf32> to vector<8x128xf32>
    %cst_20 = arith.constant dense<0.000000e+00> : vector<1x128xf32>
    %71 = tpu.matmul %68, %70, %cst_20 {dimension_numbers = #tpu.dot_dimension_numbers<[1], [0], [0], [1], [0, 0, 1, 1], [], []>} : vector<1x8xf32>, vector<8x128xf32>, vector<1x128xf32> -> vector<1x128xf32>
    %72 = vector.extract_strided_slice %71 {offsets = [0, 0], sizes = [1, 8], strides = [1, 1]} : vector<1x128xf32> to vector<1x8xf32>
    %73 = vector.extract_strided_slice %43 {offsets = [7, 0, 0], sizes = [1, 8, 128], strides = [1, 1, 1]} : vector<8x8x128xf32> to vector<1x8x128xf32>
    %74 = vector.shape_cast %73 : vector<1x8x128xf32> to vector<8x128xf32>
    %cst_21 = arith.constant dense<0.000000e+00> : vector<1x128xf32>
    %75 = tpu.matmul %72, %74, %cst_21 {dimension_numbers = #tpu.dot_dimension_numbers<[1], [0], [0], [1], [0, 0, 1, 1], [], []>} : vector<1x8xf32>, vector<8x128xf32>, vector<1x128xf32> -> vector<1x128xf32>
    %76 = tpu.concatenate %47, %51, %55, %59, %63, %67, %71, %75 in 0 : vector<1x128xf32>, vector<1x128xf32>, vector<1x128xf32>, vector<1x128xf32>, vector<1x128xf32>, vector<1x128xf32>, vector<1x128xf32>, vector<1x128xf32> -> vector<8x128xf32>
    %77 = arith.index_cast %41 : i32 to index
    %c0_22 = arith.constant 0 : index
    %78 = vector.load %arg2[%77, %c0_22] : memref<64x128xf32, #tpu.memory_space<vmem>>, vector<8x128xf32>
    tpu.vector_store %arg2[%77, %c0_22], %76 {strides = array<i32>} : memref<64x128xf32, #tpu.memory_space<vmem>>, vector<8x128xf32>,
    %c2_i32 = arith.constant 2 : i32
    %c8_i32_23 = arith.constant 8 : i32
    %79 = arith.muli %c2_i32, %c8_i32_23 : i32
    %80 = tpu.assume_multiple %79, 8 : i32
    %81 = arith.index_cast %80 : i32 to index
    %c0_24 = arith.constant 0 : index
    %c0_25 = arith.constant 0 : index
    %82 = vector.load %arg0[%81, %c0_24, %c0_25] : memref<64x8x128xf32, #tpu.memory_space<vmem>>, vector<8x8x128xf32>
    %83 = vector.extract_strided_slice %75 {offsets = [0, 0], sizes = [1, 8], strides = [1, 1]} : vector<1x128xf32> to vector<1x8xf32>
    %84 = vector.extract_strided_slice %82 {offsets = [0, 0, 0], sizes = [1, 8, 128], strides = [1, 1, 1]} : vector<8x8x128xf32> to vector<1x8x128xf32>
    %85 = vector.shape_cast %84 : vector<1x8x128xf32> to vector<8x128xf32>
    %cst_26 = arith.constant dense<0.000000e+00> : vector<1x128xf32>
    %86 = tpu.matmul %83, %85, %cst_26 {dimension_numbers = #tpu.dot_dimension_numbers<[1], [0], [0], [1], [0, 0, 1, 1], [], []>} : vector<1x8xf32>, vector<8x128xf32>, vector<1x128xf32> -> vector<1x128xf32>
    %87 = vector.extract_strided_slice %86 {offsets = [0, 0], sizes = [1, 8], strides = [1, 1]} : vector<1x128xf32> to vector<1x8xf32>
    %88 = vector.extract_strided_slice %82 {offsets = [1, 0, 0], sizes = [1, 8, 128], strides = [1, 1, 1]} : vector<8x8x128xf32> to vector<1x8x128xf32>
    %89 = vector.shape_cast %88 : vector<1x8x128xf32> to vector<8x128xf32>
    %cst_27 = arith.constant dense<0.000000e+00> : vector<1x128xf32>
    %90 = tpu.matmul %87, %89, %cst_27 {dimension_numbers = #tpu.dot_dimension_numbers<[1], [0], [0], [1], [0, 0, 1, 1], [], []>} : vector<1x8xf32>, vector<8x128xf32>, vector<1x128xf32> -> vector<1x128xf32>
    %91 = vector.extract_strided_slice %90 {offsets = [0, 0], sizes = [1, 8], strides = [1, 1]} : vector<1x128xf32> to vector<1x8xf32>
    %92 = vector.extract_strided_slice %82 {offsets = [2, 0, 0], sizes = [1, 8, 128], strides = [1, 1, 1]} : vector<8x8x128xf32> to vector<1x8x128xf32>
    %93 = vector.shape_cast %92 : vector<1x8x128xf32> to vector<8x128xf32>
    %cst_28 = arith.constant dense<0.000000e+00> : vector<1x128xf32>
    %94 = tpu.matmul %91, %93, %cst_28 {dimension_numbers = #tpu.dot_dimension_numbers<[1], [0], [0], [1], [0, 0, 1, 1], [], []>} : vector<1x8xf32>, vector<8x128xf32>, vector<1x128xf32> -> vector<1x128xf32>
    %95 = vector.extract_strided_slice %94 {offsets = [0, 0], sizes = [1, 8], strides = [1, 1]} : vector<1x128xf32> to vector<1x8xf32>
    %96 = vector.extract_strided_slice %82 {offsets = [3, 0, 0], sizes = [1, 8, 128], strides = [1, 1, 1]} : vector<8x8x128xf32> to vector<1x8x128xf32>
    %97 = vector.shape_cast %96 : vector<1x8x128xf32> to vector<8x128xf32>
    %cst_29 = arith.constant dense<0.000000e+00> : vector<1x128xf32>
    %98 = tpu.matmul %95, %97, %cst_29 {dimension_numbers = #tpu.dot_dimension_numbers<[1], [0], [0], [1], [0, 0, 1, 1], [], []>} : vector<1x8xf32>, vector<8x128xf32>, vector<1x128xf32> -> vector<1x128xf32>
    %99 = vector.extract_strided_slice %98 {offsets = [0, 0], sizes = [1, 8], strides = [1, 1]} : vector<1x128xf32> to vector<1x8xf32>
    %100 = vector.extract_strided_slice %82 {offsets = [4, 0, 0], sizes = [1, 8, 128], strides = [1, 1, 1]} : vector<8x8x128xf32> to vector<1x8x128xf32>
    %101 = vector.shape_cast %100 : vector<1x8x128xf32> to vector<8x128xf32>
    %cst_30 = arith.constant dense<0.000000e+00> : vector<1x128xf32>
    %102 = tpu.matmul %99, %101, %cst_30 {dimension_numbers = #tpu.dot_dimension_numbers<[1], [0], [0], [1], [0, 0, 1, 1], [], []>} : vector<1x8xf32>, vector<8x128xf32>, vector<1x128xf32> -> vector<1x128xf32>
    %103 = vector.extract_strided_slice %102 {offsets = [0, 0], sizes = [1, 8], strides = [1, 1]} : vector<1x128xf32> to vector<1x8xf32>
    %104 = vector.extract_strided_slice %82 {offsets = [5, 0, 0], sizes = [1, 8, 128], strides = [1, 1, 1]} : vector<8x8x128xf32> to vector<1x8x128xf32>
    %105 = vector.shape_cast %104 : vector<1x8x128xf32> to vector<8x128xf32>
    %cst_31 = arith.constant dense<0.000000e+00> : vector<1x128xf32>
    %106 = tpu.matmul %103, %105, %cst_31 {dimension_numbers = #tpu.dot_dimension_numbers<[1], [0], [0], [1], [0, 0, 1, 1], [], []>} : vector<1x8xf32>, vector<8x128xf32>, vector<1x128xf32> -> vector<1x128xf32>
    %107 = vector.extract_strided_slice %106 {offsets = [0, 0], sizes = [1, 8], strides = [1, 1]} : vector<1x128xf32> to vector<1x8xf32>
    %108 = vector.extract_strided_slice %82 {offsets = [6, 0, 0], sizes = [1, 8, 128], strides = [1, 1, 1]} : vector<8x8x128xf32> to vector<1x8x128xf32>
    %109 = vector.shape_cast %108 : vector<1x8x128xf32> to vector<8x128xf32>
    %cst_32 = arith.constant dense<0.000000e+00> : vector<1x128xf32>
    %110 = tpu.matmul %107, %109, %cst_32 {dimension_numbers = #tpu.dot_dimension_numbers<[1], [0], [0], [1], [0, 0, 1, 1], [], []>} : vector<1x8xf32>, vector<8x128xf32>, vector<1x128xf32> -> vector<1x128xf32>
    %111 = vector.extract_strided_slice %110 {offsets = [0, 0], sizes = [1, 8], strides = [1, 1]} : vector<1x128xf32> to vector<1x8xf32>
    %112 = vector.extract_strided_slice %82 {offsets = [7, 0, 0], sizes = [1, 8, 128], strides = [1, 1, 1]} : vector<8x8x128xf32> to vector<1x8x128xf32>
    %113 = vector.shape_cast %112 : vector<1x8x128xf32> to vector<8x128xf32>
    %cst_33 = arith.constant dense<0.000000e+00> : vector<1x128xf32>
    %114 = tpu.matmul %111, %113, %cst_33 {dimension_numbers = #tpu.dot_dimension_numbers<[1], [0], [0], [1], [0, 0, 1, 1], [], []>} : vector<1x8xf32>, vector<8x128xf32>, vector<1x128xf32> -> vector<1x128xf32>
    %115 = tpu.concatenate %86, %90, %94, %98, %102, %106, %110, %114 in 0 : vector<1x128xf32>, vector<1x128xf32>, vector<1x128xf32>, vector<1x128xf32>, vector<1x128xf32>, vector<1x128xf32>, vector<1x128xf32>, vector<1x128xf32> -> vector<8x128xf32>
    %116 = arith.index_cast %80 : i32 to index
    %c0_34 = arith.constant 0 : index
    %117 = vector.load %arg2[%116, %c0_34] : memref<64x128xf32, #tpu.memory_space<vmem>>, vector<8x128xf32>
    tpu.vector_store %arg2[%116, %c0_34], %115 {strides = array<i32>} : memref<64x128xf32, #tpu.memory_space<vmem>>, vector<8x128xf32>,
    %c3_i32 = arith.constant 3 : i32
    %c8_i32_35 = arith.constant 8 : i32
    %118 = arith.muli %c3_i32, %c8_i32_35 : i32
    %119 = tpu.assume_multiple %118, 8 : i32
    %120 = arith.index_cast %119 : i32 to index
    %c0_36 = arith.constant 0 : index
    %c0_37 = arith.constant 0 : index
    %121 = vector.load %arg0[%120, %c0_36, %c0_37] : memref<64x8x128xf32, #tpu.memory_space<vmem>>, vector<8x8x128xf32>
    %122 = vector.extract_strided_slice %114 {offsets = [0, 0], sizes = [1, 8], strides = [1, 1]} : vector<1x128xf32> to vector<1x8xf32>
    %123 = vector.extract_strided_slice %121 {offsets = [0, 0, 0], sizes = [1, 8, 128], strides = [1, 1, 1]} : vector<8x8x128xf32> to vector<1x8x128xf32>
    %124 = vector.shape_cast %123 : vector<1x8x128xf32> to vector<8x128xf32>
    %cst_38 = arith.constant dense<0.000000e+00> : vector<1x128xf32>
    %125 = tpu.matmul %122, %124, %cst_38 {dimension_numbers = #tpu.dot_dimension_numbers<[1], [0], [0], [1], [0, 0, 1, 1], [], []>} : vector<1x8xf32>, vector<8x128xf32>, vector<1x128xf32> -> vector<1x128xf32>
    %126 = vector.extract_strided_slice %125 {offsets = [0, 0], sizes = [1, 8], strides = [1, 1]} : vector<1x128xf32> to vector<1x8xf32>
    %127 = vector.extract_strided_slice %121 {offsets = [1, 0, 0], sizes = [1, 8, 128], strides = [1, 1, 1]} : vector<8x8x128xf32> to vector<1x8x128xf32>
    %128 = vector.shape_cast %127 : vector<1x8x128xf32> to vector<8x128xf32>
    %cst_39 = arith.constant dense<0.000000e+00> : vector<1x128xf32>
    %129 = tpu.matmul %126, %128, %cst_39 {dimension_numbers = #tpu.dot_dimension_numbers<[1], [0], [0], [1], [0, 0, 1, 1], [], []>} : vector<1x8xf32>, vector<8x128xf32>, vector<1x128xf32> -> vector<1x128xf32>
    %130 = vector.extract_strided_slice %129 {offsets = [0, 0], sizes = [1, 8], strides = [1, 1]} : vector<1x128xf32> to vector<1x8xf32>
    %131 = vector.extract_strided_slice %121 {offsets = [2, 0, 0], sizes = [1, 8, 128], strides = [1, 1, 1]} : vector<8x8x128xf32> to vector<1x8x128xf32>
    %132 = vector.shape_cast %131 : vector<1x8x128xf32> to vector<8x128xf32>
    %cst_40 = arith.constant dense<0.000000e+00> : vector<1x128xf32>
    %133 = tpu.matmul %130, %132, %cst_40 {dimension_numbers = #tpu.dot_dimension_numbers<[1], [0], [0], [1], [0, 0, 1, 1], [], []>} : vector<1x8xf32>, vector<8x128xf32>, vector<1x128xf32> -> vector<1x128xf32>
    %134 = vector.extract_strided_slice %133 {offsets = [0, 0], sizes = [1, 8], strides = [1, 1]} : vector<1x128xf32> to vector<1x8xf32>
    %135 = vector.extract_strided_slice %121 {offsets = [3, 0, 0], sizes = [1, 8, 128], strides = [1, 1, 1]} : vector<8x8x128xf32> to vector<1x8x128xf32>
    %136 = vector.shape_cast %135 : vector<1x8x128xf32> to vector<8x128xf32>
    %cst_41 = arith.constant dense<0.000000e+00> : vector<1x128xf32>
    %137 = tpu.matmul %134, %136, %cst_41 {dimension_numbers = #tpu.dot_dimension_numbers<[1], [0], [0], [1], [0, 0, 1, 1], [], []>} : vector<1x8xf32>, vector<8x128xf32>, vector<1x128xf32> -> vector<1x128xf32>
    %138 = vector.extract_strided_slice %137 {offsets = [0, 0], sizes = [1, 8], strides = [1, 1]} : vector<1x128xf32> to vector<1x8xf32>
    %139 = vector.extract_strided_slice %121 {offsets = [4, 0, 0], sizes = [1, 8, 128], strides = [1, 1, 1]} : vector<8x8x128xf32> to vector<1x8x128xf32>
    %140 = vector.shape_cast %139 : vector<1x8x128xf32> to vector<8x128xf32>
    %cst_42 = arith.constant dense<0.000000e+00> : vector<1x128xf32>
    %141 = tpu.matmul %138, %140, %cst_42 {dimension_numbers = #tpu.dot_dimension_numbers<[1], [0], [0], [1], [0, 0, 1, 1], [], []>} : vector<1x8xf32>, vector<8x128xf32>, vector<1x128xf32> -> vector<1x128xf32>
    %142 = vector.extract_strided_slice %141 {offsets = [0, 0], sizes = [1, 8], strides = [1, 1]} : vector<1x128xf32> to vector<1x8xf32>
    %143 = vector.extract_strided_slice %121 {offsets = [5, 0, 0], sizes = [1, 8, 128], strides = [1, 1, 1]} : vector<8x8x128xf32> to vector<1x8x128xf32>
    %144 = vector.shape_cast %143 : vector<1x8x128xf32> to vector<8x128xf32>
    %cst_43 = arith.constant dense<0.000000e+00> : vector<1x128xf32>
    %145 = tpu.matmul %142, %144, %cst_43 {dimension_numbers = #tpu.dot_dimension_numbers<[1], [0], [0], [1], [0, 0, 1, 1], [], []>} : vector<1x8xf32>, vector<8x128xf32>, vector<1x128xf32> -> vector<1x128xf32>
    %146 = vector.extract_strided_slice %145 {offsets = [0, 0], sizes = [1, 8], strides = [1, 1]} : vector<1x128xf32> to vector<1x8xf32>
    %147 = vector.extract_strided_slice %121 {offsets = [6, 0, 0], sizes = [1, 8, 128], strides = [1, 1, 1]} : vector<8x8x128xf32> to vector<1x8x128xf32>
    %148 = vector.shape_cast %147 : vector<1x8x128xf32> to vector<8x128xf32>
    %cst_44 = arith.constant dense<0.000000e+00> : vector<1x128xf32>
    %149 = tpu.matmul %146, %148, %cst_44 {dimension_numbers = #tpu.dot_dimension_numbers<[1], [0], [0], [1], [0, 0, 1, 1], [], []>} : vector<1x8xf32>, vector<8x128xf32>, vector<1x128xf32> -> vector<1x128xf32>
    %150 = vector.extract_strided_slice %149 {offsets = [0, 0], sizes = [1, 8], strides = [1, 1]} : vector<1x128xf32> to vector<1x8xf32>
    %151 = vector.extract_strided_slice %121 {offsets = [7, 0, 0], sizes = [1, 8, 128], strides = [1, 1, 1]} : vector<8x8x128xf32> to vector<1x8x128xf32>
    %152 = vector.shape_cast %151 : vector<1x8x128xf32> to vector<8x128xf32>
    %cst_45 = arith.constant dense<0.000000e+00> : vector<1x128xf32>
    %153 = tpu.matmul %150, %152, %cst_45 {dimension_numbers = #tpu.dot_dimension_numbers<[1], [0], [0], [1], [0, 0, 1, 1], [], []>} : vector<1x8xf32>, vector<8x128xf32>, vector<1x128xf32> -> vector<1x128xf32>
    %154 = tpu.concatenate %125, %129, %133, %137, %141, %145, %149, %153 in 0 : vector<1x128xf32>, vector<1x128xf32>, vector<1x128xf32>, vector<1x128xf32>, vector<1x128xf32>, vector<1x128xf32>, vector<1x128xf32>, vector<1x128xf32> -> vector<8x128xf32>
    %155 = arith.index_cast %119 : i32 to index
    %c0_46 = arith.constant 0 : index
    %156 = vector.load %arg2[%155, %c0_46] : memref<64x128xf32, #tpu.memory_space<vmem>>, vector<8x128xf32>
    tpu.vector_store %arg2[%155, %c0_46], %154 {strides = array<i32>} : memref<64x128xf32, #tpu.memory_space<vmem>>, vector<8x128xf32>,
    %c4_i32 = arith.constant 4 : i32
    %c8_i32_47 = arith.constant 8 : i32
    %157 = arith.muli %c4_i32, %c8_i32_47 : i32
    %158 = tpu.assume_multiple %157, 8 : i32
    %159 = arith.index_cast %158 : i32 to index
    %c0_48 = arith.constant 0 : index
    %c0_49 = arith.constant 0 : index
    %160 = vector.load %arg0[%159, %c0_48, %c0_49] : memref<64x8x128xf32, #tpu.memory_space<vmem>>, vector<8x8x128xf32>
    %161 = vector.extract_strided_slice %153 {offsets = [0, 0], sizes = [1, 8], strides = [1, 1]} : vector<1x128xf32> to vector<1x8xf32>
    %162 = vector.extract_strided_slice %160 {offsets = [0, 0, 0], sizes = [1, 8, 128], strides = [1, 1, 1]} : vector<8x8x128xf32> to vector<1x8x128xf32>
    %163 = vector.shape_cast %162 : vector<1x8x128xf32> to vector<8x128xf32>
    %cst_50 = arith.constant dense<0.000000e+00> : vector<1x128xf32>
    %164 = tpu.matmul %161, %163, %cst_50 {dimension_numbers = #tpu.dot_dimension_numbers<[1], [0], [0], [1], [0, 0, 1, 1], [], []>} : vector<1x8xf32>, vector<8x128xf32>, vector<1x128xf32> -> vector<1x128xf32>
    %165 = vector.extract_strided_slice %164 {offsets = [0, 0], sizes = [1, 8], strides = [1, 1]} : vector<1x128xf32> to vector<1x8xf32>
    %166 = vector.extract_strided_slice %160 {offsets = [1, 0, 0], sizes = [1, 8, 128], strides = [1, 1, 1]} : vector<8x8x128xf32> to vector<1x8x128xf32>
    %167 = vector.shape_cast %166 : vector<1x8x128xf32> to vector<8x128xf32>
    %cst_51 = arith.constant dense<0.000000e+00> : vector<1x128xf32>
    %168 = tpu.matmul %165, %167, %cst_51 {dimension_numbers = #tpu.dot_dimension_numbers<[1], [0], [0], [1], [0, 0, 1, 1], [], []>} : vector<1x8xf32>, vector<8x128xf32>, vector<1x128xf32> -> vector<1x128xf32>
    %169 = vector.extract_strided_slice %168 {offsets = [0, 0], sizes = [1, 8], strides = [1, 1]} : vector<1x128xf32> to vector<1x8xf32>
    %170 = vector.extract_strided_slice %160 {offsets = [2, 0, 0], sizes = [1, 8, 128], strides = [1, 1, 1]} : vector<8x8x128xf32> to vector<1x8x128xf32>
    %171 = vector.shape_cast %170 : vector<1x8x128xf32> to vector<8x128xf32>
    %cst_52 = arith.constant dense<0.000000e+00> : vector<1x128xf32>
    %172 = tpu.matmul %169, %171, %cst_52 {dimension_numbers = #tpu.dot_dimension_numbers<[1], [0], [0], [1], [0, 0, 1, 1], [], []>} : vector<1x8xf32>, vector<8x128xf32>, vector<1x128xf32> -> vector<1x128xf32>
    %173 = vector.extract_strided_slice %172 {offsets = [0, 0], sizes = [1, 8], strides = [1, 1]} : vector<1x128xf32> to vector<1x8xf32>
    %174 = vector.extract_strided_slice %160 {offsets = [3, 0, 0], sizes = [1, 8, 128], strides = [1, 1, 1]} : vector<8x8x128xf32> to vector<1x8x128xf32>
    %175 = vector.shape_cast %174 : vector<1x8x128xf32> to vector<8x128xf32>
    %cst_53 = arith.constant dense<0.000000e+00> : vector<1x128xf32>
    %176 = tpu.matmul %173, %175, %cst_53 {dimension_numbers = #tpu.dot_dimension_numbers<[1], [0], [0], [1], [0, 0, 1, 1], [], []>} : vector<1x8xf32>, vector<8x128xf32>, vector<1x128xf32> -> vector<1x128xf32>
    %177 = vector.extract_strided_slice %176 {offsets = [0, 0], sizes = [1, 8], strides = [1, 1]} : vector<1x128xf32> to vector<1x8xf32>
    %178 = vector.extract_strided_slice %160 {offsets = [4, 0, 0], sizes = [1, 8, 128], strides = [1, 1, 1]} : vector<8x8x128xf32> to vector<1x8x128xf32>
    %179 = vector.shape_cast %178 : vector<1x8x128xf32> to vector<8x128xf32>
    %cst_54 = arith.constant dense<0.000000e+00> : vector<1x128xf32>
    %180 = tpu.matmul %177, %179, %cst_54 {dimension_numbers = #tpu.dot_dimension_numbers<[1], [0], [0], [1], [0, 0, 1, 1], [], []>} : vector<1x8xf32>, vector<8x128xf32>, vector<1x128xf32> -> vector<1x128xf32>
    %181 = vector.extract_strided_slice %180 {offsets = [0, 0], sizes = [1, 8], strides = [1, 1]} : vector<1x128xf32> to vector<1x8xf32>
    %182 = vector.extract_strided_slice %160 {offsets = [5, 0, 0], sizes = [1, 8, 128], strides = [1, 1, 1]} : vector<8x8x128xf32> to vector<1x8x128xf32>
    %183 = vector.shape_cast %182 : vector<1x8x128xf32> to vector<8x128xf32>
    %cst_55 = arith.constant dense<0.000000e+00> : vector<1x128xf32>
    %184 = tpu.matmul %181, %183, %cst_55 {dimension_numbers = #tpu.dot_dimension_numbers<[1], [0], [0], [1], [0, 0, 1, 1], [], []>} : vector<1x8xf32>, vector<8x128xf32>, vector<1x128xf32> -> vector<1x128xf32>
    %185 = vector.extract_strided_slice %184 {offsets = [0, 0], sizes = [1, 8], strides = [1, 1]} : vector<1x128xf32> to vector<1x8xf32>
    %186 = vector.extract_strided_slice %160 {offsets = [6, 0, 0], sizes = [1, 8, 128], strides = [1, 1, 1]} : vector<8x8x128xf32> to vector<1x8x128xf32>
    %187 = vector.shape_cast %186 : vector<1x8x128xf32> to vector<8x128xf32>
    %cst_56 = arith.constant dense<0.000000e+00> : vector<1x128xf32>
    %188 = tpu.matmul %185, %187, %cst_56 {dimension_numbers = #tpu.dot_dimension_numbers<[1], [0], [0], [1], [0, 0, 1, 1], [], []>} : vector<1x8xf32>, vector<8x128xf32>, vector<1x128xf32> -> vector<1x128xf32>
    %189 = vector.extract_strided_slice %188 {offsets = [0, 0], sizes = [1, 8], strides = [1, 1]} : vector<1x128xf32> to vector<1x8xf32>
    %190 = vector.extract_strided_slice %160 {offsets = [7, 0, 0], sizes = [1, 8, 128], strides = [1, 1, 1]} : vector<8x8x128xf32> to vector<1x8x128xf32>
    %191 = vector.shape_cast %190 : vector<1x8x128xf32> to vector<8x128xf32>
    %cst_57 = arith.constant dense<0.000000e+00> : vector<1x128xf32>
    %192 = tpu.matmul %189, %191, %cst_57 {dimension_numbers = #tpu.dot_dimension_numbers<[1], [0], [0], [1], [0, 0, 1, 1], [], []>} : vector<1x8xf32>, vector<8x128xf32>, vector<1x128xf32> -> vector<1x128xf32>
    %193 = tpu.concatenate %164, %168, %172, %176, %180, %184, %188, %192 in 0 : vector<1x128xf32>, vector<1x128xf32>, vector<1x128xf32>, vector<1x128xf32>, vector<1x128xf32>, vector<1x128xf32>, vector<1x128xf32>, vector<1x128xf32> -> vector<8x128xf32>
    %194 = arith.index_cast %158 : i32 to index
    %c0_58 = arith.constant 0 : index
    %195 = vector.load %arg2[%194, %c0_58] : memref<64x128xf32, #tpu.memory_space<vmem>>, vector<8x128xf32>
    tpu.vector_store %arg2[%194, %c0_58], %193 {strides = array<i32>} : memref<64x128xf32, #tpu.memory_space<vmem>>, vector<8x128xf32>,
    %c5_i32 = arith.constant 5 : i32
    %c8_i32_59 = arith.constant 8 : i32
    %196 = arith.muli %c5_i32, %c8_i32_59 : i32
    %197 = tpu.assume_multiple %196, 8 : i32
    %198 = arith.index_cast %197 : i32 to index
    %c0_60 = arith.constant 0 : index
    %c0_61 = arith.constant 0 : index
    %199 = vector.load %arg0[%198, %c0_60, %c0_61] : memref<64x8x128xf32, #tpu.memory_space<vmem>>, vector<8x8x128xf32>
    %200 = vector.extract_strided_slice %192 {offsets = [0, 0], sizes = [1, 8], strides = [1, 1]} : vector<1x128xf32> to vector<1x8xf32>
    %201 = vector.extract_strided_slice %199 {offsets = [0, 0, 0], sizes = [1, 8, 128], strides = [1, 1, 1]} : vector<8x8x128xf32> to vector<1x8x128xf32>
    %202 = vector.shape_cast %201 : vector<1x8x128xf32> to vector<8x128xf32>
    %cst_62 = arith.constant dense<0.000000e+00> : vector<1x128xf32>
    %203 = tpu.matmul %200, %202, %cst_62 {dimension_numbers = #tpu.dot_dimension_numbers<[1], [0], [0], [1], [0, 0, 1, 1], [], []>} : vector<1x8xf32>, vector<8x128xf32>, vector<1x128xf32> -> vector<1x128xf32>
    %204 = vector.extract_strided_slice %203 {offsets = [0, 0], sizes = [1, 8], strides = [1, 1]} : vector<1x128xf32> to vector<1x8xf32>
    %205 = vector.extract_strided_slice %199 {offsets = [1, 0, 0], sizes = [1, 8, 128], strides = [1, 1, 1]} : vector<8x8x128xf32> to vector<1x8x128xf32>
    %206 = vector.shape_cast %205 : vector<1x8x128xf32> to vector<8x128xf32>
    %cst_63 = arith.constant dense<0.000000e+00> : vector<1x128xf32>
    %207 = tpu.matmul %204, %206, %cst_63 {dimension_numbers = #tpu.dot_dimension_numbers<[1], [0], [0], [1], [0, 0, 1, 1], [], []>} : vector<1x8xf32>, vector<8x128xf32>, vector<1x128xf32> -> vector<1x128xf32>
    %208 = vector.extract_strided_slice %207 {offsets = [0, 0], sizes = [1, 8], strides = [1, 1]} : vector<1x128xf32> to vector<1x8xf32>
    %209 = vector.extract_strided_slice %199 {offsets = [2, 0, 0], sizes = [1, 8, 128], strides = [1, 1, 1]} : vector<8x8x128xf32> to vector<1x8x128xf32>
    %210 = vector.shape_cast %209 : vector<1x8x128xf32> to vector<8x128xf32>
    %cst_64 = arith.constant dense<0.000000e+00> : vector<1x128xf32>
    %211 = tpu.matmul %208, %210, %cst_64 {dimension_numbers = #tpu.dot_dimension_numbers<[1], [0], [0], [1], [0, 0, 1, 1], [], []>} : vector<1x8xf32>, vector<8x128xf32>, vector<1x128xf32> -> vector<1x128xf32>
    %212 = vector.extract_strided_slice %211 {offsets = [0, 0], sizes = [1, 8], strides = [1, 1]} : vector<1x128xf32> to vector<1x8xf32>
    %213 = vector.extract_strided_slice %199 {offsets = [3, 0, 0], sizes = [1, 8, 128], strides = [1, 1, 1]} : vector<8x8x128xf32> to vector<1x8x128xf32>
    %214 = vector.shape_cast %213 : vector<1x8x128xf32> to vector<8x128xf32>
    %cst_65 = arith.constant dense<0.000000e+00> : vector<1x128xf32>
    %215 = tpu.matmul %212, %214, %cst_65 {dimension_numbers = #tpu.dot_dimension_numbers<[1], [0], [0], [1], [0, 0, 1, 1], [], []>} : vector<1x8xf32>, vector<8x128xf32>, vector<1x128xf32> -> vector<1x128xf32>
    %216 = vector.extract_strided_slice %215 {offsets = [0, 0], sizes = [1, 8], strides = [1, 1]} : vector<1x128xf32> to vector<1x8xf32>
    %217 = vector.extract_strided_slice %199 {offsets = [4, 0, 0], sizes = [1, 8, 128], strides = [1, 1, 1]} : vector<8x8x128xf32> to vector<1x8x128xf32>
    %218 = vector.shape_cast %217 : vector<1x8x128xf32> to vector<8x128xf32>
    %cst_66 = arith.constant dense<0.000000e+00> : vector<1x128xf32>
    %219 = tpu.matmul %216, %218, %cst_66 {dimension_numbers = #tpu.dot_dimension_numbers<[1], [0], [0], [1], [0, 0, 1, 1], [], []>} : vector<1x8xf32>, vector<8x128xf32>, vector<1x128xf32> -> vector<1x128xf32>
    %220 = vector.extract_strided_slice %219 {offsets = [0, 0], sizes = [1, 8], strides = [1, 1]} : vector<1x128xf32> to vector<1x8xf32>
    %221 = vector.extract_strided_slice %199 {offsets = [5, 0, 0], sizes = [1, 8, 128], strides = [1, 1, 1]} : vector<8x8x128xf32> to vector<1x8x128xf32>
    %222 = vector.shape_cast %221 : vector<1x8x128xf32> to vector<8x128xf32>
    %cst_67 = arith.constant dense<0.000000e+00> : vector<1x128xf32>
    %223 = tpu.matmul %220, %222, %cst_67 {dimension_numbers = #tpu.dot_dimension_numbers<[1], [0], [0], [1], [0, 0, 1, 1], [], []>} : vector<1x8xf32>, vector<8x128xf32>, vector<1x128xf32> -> vector<1x128xf32>
    %224 = vector.extract_strided_slice %223 {offsets = [0, 0], sizes = [1, 8], strides = [1, 1]} : vector<1x128xf32> to vector<1x8xf32>
    %225 = vector.extract_strided_slice %199 {offsets = [6, 0, 0], sizes = [1, 8, 128], strides = [1, 1, 1]} : vector<8x8x128xf32> to vector<1x8x128xf32>
    %226 = vector.shape_cast %225 : vector<1x8x128xf32> to vector<8x128xf32>
    %cst_68 = arith.constant dense<0.000000e+00> : vector<1x128xf32>
    %227 = tpu.matmul %224, %226, %cst_68 {dimension_numbers = #tpu.dot_dimension_numbers<[1], [0], [0], [1], [0, 0, 1, 1], [], []>} : vector<1x8xf32>, vector<8x128xf32>, vector<1x128xf32> -> vector<1x128xf32>
    %228 = vector.extract_strided_slice %227 {offsets = [0, 0], sizes = [1, 8], strides = [1, 1]} : vector<1x128xf32> to vector<1x8xf32>
    %229 = vector.extract_strided_slice %199 {offsets = [7, 0, 0], sizes = [1, 8, 128], strides = [1, 1, 1]} : vector<8x8x128xf32> to vector<1x8x128xf32>
    %230 = vector.shape_cast %229 : vector<1x8x128xf32> to vector<8x128xf32>
    %cst_69 = arith.constant dense<0.000000e+00> : vector<1x128xf32>
    %231 = tpu.matmul %228, %230, %cst_69 {dimension_numbers = #tpu.dot_dimension_numbers<[1], [0], [0], [1], [0, 0, 1, 1], [], []>} : vector<1x8xf32>, vector<8x128xf32>, vector<1x128xf32> -> vector<1x128xf32>
    %232 = tpu.concatenate %203, %207, %211, %215, %219, %223, %227, %231 in 0 : vector<1x128xf32>, vector<1x128xf32>, vector<1x128xf32>, vector<1x128xf32>, vector<1x128xf32>, vector<1x128xf32>, vector<1x128xf32>, vector<1x128xf32> -> vector<8x128xf32>
    %233 = arith.index_cast %197 : i32 to index
    %c0_70 = arith.constant 0 : index
    %234 = vector.load %arg2[%233, %c0_70] : memref<64x128xf32, #tpu.memory_space<vmem>>, vector<8x128xf32>
    tpu.vector_store %arg2[%233, %c0_70], %232 {strides = array<i32>} : memref<64x128xf32, #tpu.memory_space<vmem>>, vector<8x128xf32>,
    %c6_i32 = arith.constant 6 : i32
    %c8_i32_71 = arith.constant 8 : i32
    %235 = arith.muli %c6_i32, %c8_i32_71 : i32
    %236 = tpu.assume_multiple %235, 8 : i32
    %237 = arith.index_cast %236 : i32 to index
    %c0_72 = arith.constant 0 : index
    %c0_73 = arith.constant 0 : index
    %238 = vector.load %arg0[%237, %c0_72, %c0_73] : memref<64x8x128xf32, #tpu.memory_space<vmem>>, vector<8x8x128xf32>
    %239 = vector.extract_strided_slice %231 {offsets = [0, 0], sizes = [1, 8], strides = [1, 1]} : vector<1x128xf32> to vector<1x8xf32>
    %240 = vector.extract_strided_slice %238 {offsets = [0, 0, 0], sizes = [1, 8, 128], strides = [1, 1, 1]} : vector<8x8x128xf32> to vector<1x8x128xf32>
    %241 = vector.shape_cast %240 : vector<1x8x128xf32> to vector<8x128xf32>
    %cst_74 = arith.constant dense<0.000000e+00> : vector<1x128xf32>
    %242 = tpu.matmul %239, %241, %cst_74 {dimension_numbers = #tpu.dot_dimension_numbers<[1], [0], [0], [1], [0, 0, 1, 1], [], []>} : vector<1x8xf32>, vector<8x128xf32>, vector<1x128xf32> -> vector<1x128xf32>
    %243 = vector.extract_strided_slice %242 {offsets = [0, 0], sizes = [1, 8], strides = [1, 1]} : vector<1x128xf32> to vector<1x8xf32>
    %244 = vector.extract_strided_slice %238 {offsets = [1, 0, 0], sizes = [1, 8, 128], strides = [1, 1, 1]} : vector<8x8x128xf32> to vector<1x8x128xf32>
    %245 = vector.shape_cast %244 : vector<1x8x128xf32> to vector<8x128xf32>
    %cst_75 = arith.constant dense<0.000000e+00> : vector<1x128xf32>
    %246 = tpu.matmul %243, %245, %cst_75 {dimension_numbers = #tpu.dot_dimension_numbers<[1], [0], [0], [1], [0, 0, 1, 1], [], []>} : vector<1x8xf32>, vector<8x128xf32>, vector<1x128xf32> -> vector<1x128xf32>
    %247 = vector.extract_strided_slice %246 {offsets = [0, 0], sizes = [1, 8], strides = [1, 1]} : vector<1x128xf32> to vector<1x8xf32>
    %248 = vector.extract_strided_slice %238 {offsets = [2, 0, 0], sizes = [1, 8, 128], strides = [1, 1, 1]} : vector<8x8x128xf32> to vector<1x8x128xf32>
    %249 = vector.shape_cast %248 : vector<1x8x128xf32> to vector<8x128xf32>
    %cst_76 = arith.constant dense<0.000000e+00> : vector<1x128xf32>
    %250 = tpu.matmul %247, %249, %cst_76 {dimension_numbers = #tpu.dot_dimension_numbers<[1], [0], [0], [1], [0, 0, 1, 1], [], []>} : vector<1x8xf32>, vector<8x128xf32>, vector<1x128xf32> -> vector<1x128xf32>
    %251 = vector.extract_strided_slice %250 {offsets = [0, 0], sizes = [1, 8], strides = [1, 1]} : vector<1x128xf32> to vector<1x8xf32>
    %252 = vector.extract_strided_slice %238 {offsets = [3, 0, 0], sizes = [1, 8, 128], strides = [1, 1, 1]} : vector<8x8x128xf32> to vector<1x8x128xf32>
    %253 = vector.shape_cast %252 : vector<1x8x128xf32> to vector<8x128xf32>
    %cst_77 = arith.constant dense<0.000000e+00> : vector<1x128xf32>
    %254 = tpu.matmul %251, %253, %cst_77 {dimension_numbers = #tpu.dot_dimension_numbers<[1], [0], [0], [1], [0, 0, 1, 1], [], []>} : vector<1x8xf32>, vector<8x128xf32>, vector<1x128xf32> -> vector<1x128xf32>
    %255 = vector.extract_strided_slice %254 {offsets = [0, 0], sizes = [1, 8], strides = [1, 1]} : vector<1x128xf32> to vector<1x8xf32>
    %256 = vector.extract_strided_slice %238 {offsets = [4, 0, 0], sizes = [1, 8, 128], strides = [1, 1, 1]} : vector<8x8x128xf32> to vector<1x8x128xf32>
    %257 = vector.shape_cast %256 : vector<1x8x128xf32> to vector<8x128xf32>
    %cst_78 = arith.constant dense<0.000000e+00> : vector<1x128xf32>
    %258 = tpu.matmul %255, %257, %cst_78 {dimension_numbers = #tpu.dot_dimension_numbers<[1], [0], [0], [1], [0, 0, 1, 1], [], []>} : vector<1x8xf32>, vector<8x128xf32>, vector<1x128xf32> -> vector<1x128xf32>
    %259 = vector.extract_strided_slice %258 {offsets = [0, 0], sizes = [1, 8], strides = [1, 1]} : vector<1x128xf32> to vector<1x8xf32>
    %260 = vector.extract_strided_slice %238 {offsets = [5, 0, 0], sizes = [1, 8, 128], strides = [1, 1, 1]} : vector<8x8x128xf32> to vector<1x8x128xf32>
    %261 = vector.shape_cast %260 : vector<1x8x128xf32> to vector<8x128xf32>
    %cst_79 = arith.constant dense<0.000000e+00> : vector<1x128xf32>
    %262 = tpu.matmul %259, %261, %cst_79 {dimension_numbers = #tpu.dot_dimension_numbers<[1], [0], [0], [1], [0, 0, 1, 1], [], []>} : vector<1x8xf32>, vector<8x128xf32>, vector<1x128xf32> -> vector<1x128xf32>
    %263 = vector.extract_strided_slice %262 {offsets = [0, 0], sizes = [1, 8], strides = [1, 1]} : vector<1x128xf32> to vector<1x8xf32>
    %264 = vector.extract_strided_slice %238 {offsets = [6, 0, 0], sizes = [1, 8, 128], strides = [1, 1, 1]} : vector<8x8x128xf32> to vector<1x8x128xf32>
    %265 = vector.shape_cast %264 : vector<1x8x128xf32> to vector<8x128xf32>
    %cst_80 = arith.constant dense<0.000000e+00> : vector<1x128xf32>
    %266 = tpu.matmul %263, %265, %cst_80 {dimension_numbers = #tpu.dot_dimension_numbers<[1], [0], [0], [1], [0, 0, 1, 1], [], []>} : vector<1x8xf32>, vector<8x128xf32>, vector<1x128xf32> -> vector<1x128xf32>
    %267 = vector.extract_strided_slice %266 {offsets = [0, 0], sizes = [1, 8], strides = [1, 1]} : vector<1x128xf32> to vector<1x8xf32>
    %268 = vector.extract_strided_slice %238 {offsets = [7, 0, 0], sizes = [1, 8, 128], strides = [1, 1, 1]} : vector<8x8x128xf32> to vector<1x8x128xf32>
    %269 = vector.shape_cast %268 : vector<1x8x128xf32> to vector<8x128xf32>
    %cst_81 = arith.constant dense<0.000000e+00> : vector<1x128xf32>
    %270 = tpu.matmul %267, %269, %cst_81 {dimension_numbers = #tpu.dot_dimension_numbers<[1], [0], [0], [1], [0, 0, 1, 1], [], []>} : vector<1x8xf32>, vector<8x128xf32>, vector<1x128xf32> -> vector<1x128xf32>
    %271 = tpu.concatenate %242, %246, %250, %254, %258, %262, %266, %270 in 0 : vector<1x128xf32>, vector<1x128xf32>, vector<1x128xf32>, vector<1x128xf32>, vector<1x128xf32>, vector<1x128xf32>, vector<1x128xf32>, vector<1x128xf32> -> vector<8x128xf32>
    %272 = arith.index_cast %236 : i32 to index
    %c0_82 = arith.constant 0 : index
    %273 = vector.load %arg2[%272, %c0_82] : memref<64x128xf32, #tpu.memory_space<vmem>>, vector<8x128xf32>
    tpu.vector_store %arg2[%272, %c0_82], %271 {strides = array<i32>} : memref<64x128xf32, #tpu.memory_space<vmem>>, vector<8x128xf32>,
    %c7_i32 = arith.constant 7 : i32
    %c8_i32_83 = arith.constant 8 : i32
    %274 = arith.muli %c7_i32, %c8_i32_83 : i32
    %275 = tpu.assume_multiple %274, 8 : i32
    %276 = arith.index_cast %275 : i32 to index
    %c0_84 = arith.constant 0 : index
    %c0_85 = arith.constant 0 : index
    %277 = vector.load %arg0[%276, %c0_84, %c0_85] : memref<64x8x128xf32, #tpu.memory_space<vmem>>, vector<8x8x128xf32>
    %278 = vector.extract_strided_slice %270 {offsets = [0, 0], sizes = [1, 8], strides = [1, 1]} : vector<1x128xf32> to vector<1x8xf32>
    %279 = vector.extract_strided_slice %277 {offsets = [0, 0, 0], sizes = [1, 8, 128], strides = [1, 1, 1]} : vector<8x8x128xf32> to vector<1x8x128xf32>
    %280 = vector.shape_cast %279 : vector<1x8x128xf32> to vector<8x128xf32>
    %cst_86 = arith.constant dense<0.000000e+00> : vector<1x128xf32>
    %281 = tpu.matmul %278, %280, %cst_86 {dimension_numbers = #tpu.dot_dimension_numbers<[1], [0], [0], [1], [0, 0, 1, 1], [], []>} : vector<1x8xf32>, vector<8x128xf32>, vector<1x128xf32> -> vector<1x128xf32>
    %282 = vector.extract_strided_slice %281 {offsets = [0, 0], sizes = [1, 8], strides = [1, 1]} : vector<1x128xf32> to vector<1x8xf32>
    %283 = vector.extract_strided_slice %277 {offsets = [1, 0, 0], sizes = [1, 8, 128], strides = [1, 1, 1]} : vector<8x8x128xf32> to vector<1x8x128xf32>
    %284 = vector.shape_cast %283 : vector<1x8x128xf32> to vector<8x128xf32>
    %cst_87 = arith.constant dense<0.000000e+00> : vector<1x128xf32>
    %285 = tpu.matmul %282, %284, %cst_87 {dimension_numbers = #tpu.dot_dimension_numbers<[1], [0], [0], [1], [0, 0, 1, 1], [], []>} : vector<1x8xf32>, vector<8x128xf32>, vector<1x128xf32> -> vector<1x128xf32>
    %286 = vector.extract_strided_slice %285 {offsets = [0, 0], sizes = [1, 8], strides = [1, 1]} : vector<1x128xf32> to vector<1x8xf32>
    %287 = vector.extract_strided_slice %277 {offsets = [2, 0, 0], sizes = [1, 8, 128], strides = [1, 1, 1]} : vector<8x8x128xf32> to vector<1x8x128xf32>
    %288 = vector.shape_cast %287 : vector<1x8x128xf32> to vector<8x128xf32>
    %cst_88 = arith.constant dense<0.000000e+00> : vector<1x128xf32>
    %289 = tpu.matmul %286, %288, %cst_88 {dimension_numbers = #tpu.dot_dimension_numbers<[1], [0], [0], [1], [0, 0, 1, 1], [], []>} : vector<1x8xf32>, vector<8x128xf32>, vector<1x128xf32> -> vector<1x128xf32>
    %290 = vector.extract_strided_slice %289 {offsets = [0, 0], sizes = [1, 8], strides = [1, 1]} : vector<1x128xf32> to vector<1x8xf32>
    %291 = vector.extract_strided_slice %277 {offsets = [3, 0, 0], sizes = [1, 8, 128], strides = [1, 1, 1]} : vector<8x8x128xf32> to vector<1x8x128xf32>
    %292 = vector.shape_cast %291 : vector<1x8x128xf32> to vector<8x128xf32>
    %cst_89 = arith.constant dense<0.000000e+00> : vector<1x128xf32>
    %293 = tpu.matmul %290, %292, %cst_89 {dimension_numbers = #tpu.dot_dimension_numbers<[1], [0], [0], [1], [0, 0, 1, 1], [], []>} : vector<1x8xf32>, vector<8x128xf32>, vector<1x128xf32> -> vector<1x128xf32>
    %294 = vector.extract_strided_slice %293 {offsets = [0, 0], sizes = [1, 8], strides = [1, 1]} : vector<1x128xf32> to vector<1x8xf32>
    %295 = vector.extract_strided_slice %277 {offsets = [4, 0, 0], sizes = [1, 8, 128], strides = [1, 1, 1]} : vector<8x8x128xf32> to vector<1x8x128xf32>
    %296 = vector.shape_cast %295 : vector<1x8x128xf32> to vector<8x128xf32>
    %cst_90 = arith.constant dense<0.000000e+00> : vector<1x128xf32>
    %297 = tpu.matmul %294, %296, %cst_90 {dimension_numbers = #tpu.dot_dimension_numbers<[1], [0], [0], [1], [0, 0, 1, 1], [], []>} : vector<1x8xf32>, vector<8x128xf32>, vector<1x128xf32> -> vector<1x128xf32>
    %298 = vector.extract_strided_slice %297 {offsets = [0, 0], sizes = [1, 8], strides = [1, 1]} : vector<1x128xf32> to vector<1x8xf32>
    %299 = vector.extract_strided_slice %277 {offsets = [5, 0, 0], sizes = [1, 8, 128], strides = [1, 1, 1]} : vector<8x8x128xf32> to vector<1x8x128xf32>
    %300 = vector.shape_cast %299 : vector<1x8x128xf32> to vector<8x128xf32>
    %cst_91 = arith.constant dense<0.000000e+00> : vector<1x128xf32>
    %301 = tpu.matmul %298, %300, %cst_91 {dimension_numbers = #tpu.dot_dimension_numbers<[1], [0], [0], [1], [0, 0, 1, 1], [], []>} : vector<1x8xf32>, vector<8x128xf32>, vector<1x128xf32> -> vector<1x128xf32>
    %302 = vector.extract_strided_slice %301 {offsets = [0, 0], sizes = [1, 8], strides = [1, 1]} : vector<1x128xf32> to vector<1x8xf32>
    %303 = vector.extract_strided_slice %277 {offsets = [6, 0, 0], sizes = [1, 8, 128], strides = [1, 1, 1]} : vector<8x8x128xf32> to vector<1x8x128xf32>
    %304 = vector.shape_cast %303 : vector<1x8x128xf32> to vector<8x128xf32>
    %cst_92 = arith.constant dense<0.000000e+00> : vector<1x128xf32>
    %305 = tpu.matmul %302, %304, %cst_92 {dimension_numbers = #tpu.dot_dimension_numbers<[1], [0], [0], [1], [0, 0, 1, 1], [], []>} : vector<1x8xf32>, vector<8x128xf32>, vector<1x128xf32> -> vector<1x128xf32>
    %306 = vector.extract_strided_slice %305 {offsets = [0, 0], sizes = [1, 8], strides = [1, 1]} : vector<1x128xf32> to vector<1x8xf32>
    %307 = vector.extract_strided_slice %277 {offsets = [7, 0, 0], sizes = [1, 8, 128], strides = [1, 1, 1]} : vector<8x8x128xf32> to vector<1x8x128xf32>
    %308 = vector.shape_cast %307 : vector<1x8x128xf32> to vector<8x128xf32>
    %cst_93 = arith.constant dense<0.000000e+00> : vector<1x128xf32>
    %309 = tpu.matmul %306, %308, %cst_93 {dimension_numbers = #tpu.dot_dimension_numbers<[1], [0], [0], [1], [0, 0, 1, 1], [], []>} : vector<1x8xf32>, vector<8x128xf32>, vector<1x128xf32> -> vector<1x128xf32>
    %310 = tpu.concatenate %281, %285, %289, %293, %297, %301, %305, %309 in 0 : vector<1x128xf32>, vector<1x128xf32>, vector<1x128xf32>, vector<1x128xf32>, vector<1x128xf32>, vector<1x128xf32>, vector<1x128xf32>, vector<1x128xf32> -> vector<8x128xf32>
    %311 = arith.index_cast %275 : i32 to index
    %c0_94 = arith.constant 0 : index
    %312 = vector.load %arg2[%311, %c0_94] : memref<64x128xf32, #tpu.memory_space<vmem>>, vector<8x128xf32>
    tpu.vector_store %arg2[%311, %c0_94], %310 {strides = array<i32>} : memref<64x128xf32, #tpu.memory_space<vmem>>, vector<8x128xf32>,
    %c8_i32_95 = arith.constant 8 : i32
    return
  }
}

</mosaic_0001>

<llo_original>
// kernel: tpu_custom_call.1
$region0: #{tpu_custom_call.1}
  #allocation0 [shape = 'u32[]', space=smem, size = 0x4, offset = 0x4, fixed_abs, tag = 'smem constant byte address 0x4 - core index']
  #allocation1 [shape = 'u32[144,128]{1,0:T(1,128)}', space=vmem, size = 0x12000, scoped, tag = 'internal scratch']
  %s0 = inlined_call_operand.hbm [shape: f32[64,8,128], index: 0, kind: input, shape index: {}]
  %s1 = inlined_call_operand.vmem [shape: f32[1,128], index: 1, kind: input, shape index: {}]
  %s2 = inlined_call_operand.hbm [shape: f32[64,128], index: 2, kind: output, shape index: {}]
  %s3 = sld [smem:[#allocation0]]
  $region22: #{tpu_custom_call.1} parent=0
    _
  %s5 = ssub.s32 1, %s3
  %s6 = scalar_select 0, %s5, %s3
  $region1: #{tpu_custom_call.1} parent=0
    #allocation2 [shape = 'u8[262144]{0}', space=vmem, size = 0x40000, scoped, tag = 'input window, operand 0, single buffered']
    #allocation3 [shape = 's32[1]{0}', space=sflag, size = 0x4, scoped, tag = 'scoped memory for tpu_custom_call.1']
    #allocation4 [shape = 's32[1]{0}', space=sflag, size = 0x4, scoped, tag = 'scoped memory for tpu_custom_call.1']
    #allocation5 [shape = 'u8[32768]{0}', space=vmem, size = 0x8000, scoped, tag = 'output window, operand 0, single buffered']
    %7 = vsyncpa [#allocation3], 0
    %8 = vsyncpa [#allocation4], 0
    // Predicated region
    $region2: #{tpu_custom_call.1} parent=1 // pred_check
      _
    $region3: #{tpu_custom_call.1} parent=1 // pred_check_branch
      %10 = sbr.rel (0) target = $region5
    $region4: #{tpu_custom_call.1} parent=1 // pred_region
      %s12 = ssub.s32 8192, 8192
      %13 = vsyncadd [#allocation3], %s12
      %s14 = sshll.u32 [#allocation2], 4
      %s15 = int_to_ptr.vmem [resolvable:$true] %s14
      %20 = dma.hbm_to_vmem [thread:$0]  %s0, 8192, %s15, [#allocation3], 128, 128, 8
    $region5: #{tpu_custom_call.1} parent=1 // pred_fallthru
      _
    // Predicated region
    $region6: #{tpu_custom_call.1} parent=1 // pred_check
      _
    $region7: #{tpu_custom_call.1} parent=1 // pred_check_branch
      %22 = sbr.rel (0) target = $region9
    $region8: #{tpu_custom_call.1} parent=1 // pred_region
      _
    $region9: #{tpu_custom_call.1} parent=1 // pred_fallthru
      _
    // Predicated region
    $region10: #{tpu_custom_call.1} parent=1 // pred_check
      _
    $region11: #{tpu_custom_call.1} parent=1 // pred_check_branch
      %24 = sbr.rel (0) target = $region13
    $region12: #{tpu_custom_call.1} parent=1 // pred_region
      %25 = dma.done [#allocation3], 8192
    $region13: #{tpu_custom_call.1} parent=1 // pred_fallthru
      _
    %v26 = vld [vmem:[%s1] sm:$0x1]
    %s27 = smul.u32 0, 8
    %s28 = scalar_lea.vmem [#allocation2], %s27
    %v29 = vld [vmem:[%s28] sm:$0xff]
    %v30 = vld [vmem:[%s28 + $0x8] sm:$0xff]
    %v31 = vld [vmem:[%s28 + $0x10] sm:$0xff]
    %v32 = vld [vmem:[%s28 + $0x18] sm:$0xff]
    %v33 = vld [vmem:[%s28 + $0x20] sm:$0xff]
    %v34 = vld [vmem:[%s28 + $0x28] sm:$0xff]
    %v35 = vld [vmem:[%s28 + $0x30] sm:$0xff]
    %v36 = vld [vmem:[%s28 + $0x38] sm:$0xff]
    %vm37 = vcmask 64512
    %v39 = vsel %vm37, %v26, 0
    %41 = vmatprep.subr.mxu0 0.0
    %42 = vmatpush1.msra.mxu0 %v29
    %43 = vmatprep.subr.mxu0 0.0
    %44 = vmatpush1.msra.mxu0 0.0
    %45 = vmatprep.subr.mxu0 0.0
    %46 = vmatpush1.msra.mxu0 0.0
    %47 = vmatprep.subr.mxu0 0.0
    %48 = vmatpush1.msra.mxu0 0.0
    %49 = vmatprep.subr.mxu0 0.0
    %50 = vmatpush1.msra.mxu0 0.0
    %51 = vmatprep.subr.mxu0 0.0
    %52 = vmatpush1.msra.mxu0 0.0
    %53 = vmatprep.subr.mxu0 0.0
    %54 = vmatpush1.msra.mxu0 0.0
    %55 = vmatprep.subr.mxu0 0.0
    %56 = vmatpush1.msra.mxu0 0.0
    %57 = vmatprep.subr.mxu0 0.0
    %58 = vmatpush1.msra.mxu0 0.0
    %59 = vmatprep.subr.mxu0 0.0
    %60 = vmatpush1.msra.mxu0 0.0
    %61 = vmatprep.subr.mxu0 0.0
    %62 = vmatpush1.msra.mxu0 0.0
    %63 = vmatprep.subr.mxu0 0.0
    %64 = vmatpush1.msra.mxu0 0.0
    %65 = vmatprep.subr.mxu0 0.0
    %66 = vmatpush1.msra.mxu0 0.0
    %67 = vmatprep.subr.mxu0 0.0
    %68 = vmatpush1.msra.mxu0 0.0
    %69 = vmatprep.subr.mxu0 0.0
    %70 = vmatpush1.msra.mxu0 0.0
    %71 = vmatprep.subr.mxu0 0.0
    %72 = vmatpush1.msra.mxu0 0.0
    %73 = vmatprep.subr.mxu0 0.0
    %74 = vmatpush1.msra.mxu0 0.0
    %75 = vmatprep.subr.mxu0 0.0
    %76 = vmatpush1.msra.mxu0 0.0
    %77 = vmatprep.subr.mxu0 0.0
    %78 = vmatpush1.msra.mxu0 0.0
    %79 = vmatprep.subr.mxu0 0.0
    %80 = vmatpush1.msra.mxu0 0.0
    %81 = vmatprep.subr.mxu0 0.0
    %82 = vmatpush1.msra.mxu0 0.0
    %83 = vmatprep.subr.mxu0 0.0
    %84 = vmatpush1.msra.mxu0 0.0
    %85 = vmatprep.subr.mxu0 0.0
    %86 = vmatpush1.msra.mxu0 0.0
    %87 = vmatprep.subr.mxu0 0.0
    %88 = vmatpush1.msra.mxu0 0.0
    %89 = vmatprep.subr.mxu0 0.0
    %90 = vmatpush1.msra.mxu0 0.0
    %91 = vmatprep.subr.mxu0 0.0
    %92 = vmatpush1.msra.mxu0 0.0
    %93 = vmatprep.subr.mxu0 0.0
    %94 = vmatpush1.msra.mxu0 0.0
    %95 = vmatprep.subr.mxu0 0.0
    %96 = vmatpush1.msra.mxu0 0.0
    %97 = vmatprep.subr.mxu0 0.0
    %98 = vmatpush1.msra.mxu0 0.0
    %99 = vmatprep.subr.mxu0 0.0
    %100 = vmatpush1.msra.mxu0 0.0
    %101 = vmatprep.subr.mxu0 0.0
    %102 = vmatpush1.msra.mxu0 0.0
    %103 = vmatprep.subr.mxu0 0.0
    %104 = vmatpush1.msra.mxu0 0.0
    %105 = vmatprep.mubr.f32.mxu0 0.0
    %106 = vmatmul.mubr.f32.gmra.mrb[0].mxu0 %v39
    %v107 = vpop.f32.mrb[0].mxu0
    %v108 = vadd.f32 0.0, %v107
    %v109 = vpop.f32.mrb[0].mxu0
    %110 = vdwg.mxu0
    %v112 = vsel %vm37, %v108, 0
    %114 = vmatprep.subr.mxu0 0.0
    %115 = vmatpush1.msra.mxu0 %v30
    %116 = vmatprep.subr.mxu0 0.0
    %117 = vmatpush1.msra.mxu0 0.0
    %118 = vmatprep.subr.mxu0 0.0
    %119 = vmatpush1.msra.mxu0 0.0
    %120 = vmatprep.subr.mxu0 0.0
    %121 = vmatpush1.msra.mxu0 0.0
    %122 = vmatprep.subr.mxu0 0.0
    %123 = vmatpush1.msra.mxu0 0.0
    %124 = vmatprep.subr.mxu0 0.0
    %125 = vmatpush1.msra.mxu0 0.0
    %126 = vmatprep.subr.mxu0 0.0
    %127 = vmatpush1.msra.mxu0 0.0
    %128 = vmatprep.subr.mxu0 0.0
    %129 = vmatpush1.msra.mxu0 0.0
    %130 = vmatprep.subr.mxu0 0.0
    %131 = vmatpush1.msra.mxu0 0.0
    %132 = vmatprep.subr.mxu0 0.0
    %133 = vmatpush1.msra.mxu0 0.0
    %134 = vmatprep.subr.mxu0 0.0
    %135 = vmatpush1.msra.mxu0 0.0
    %136 = vmatprep.subr.mxu0 0.0
    %137 = vmatpush1.msra.mxu0 0.0
    %138 = vmatprep.subr.mxu0 0.0
    %139 = vmatpush1.msra.mxu0 0.0
    %140 = vmatprep.subr.mxu0 0.0
    %141 = vmatpush1.msra.mxu0 0.0
    %142 = vmatprep.subr.mxu0 0.0
    %143 = vmatpush1.msra.mxu0 0.0
    %144 = vmatprep.subr.mxu0 0.0
    %145 = vmatpush1.msra.mxu0 0.0
    %146 = vmatprep.subr.mxu0 0.0
    %147 = vmatpush1.msra.mxu0 0.0
    %148 = vmatprep.subr.mxu0 0.0
    %149 = vmatpush1.msra.mxu0 0.0
    %150 = vmatprep.subr.mxu0 0.0
    %151 = vmatpush1.msra.mxu0 0.0
    %152 = vmatprep.subr.mxu0 0.0
    %153 = vmatpush1.msra.mxu0 0.0
    %154 = vmatprep.subr.mxu0 0.0
    %155 = vmatpush1.msra.mxu0 0.0
    %156 = vmatprep.subr.mxu0 0.0
    %157 = vmatpush1.msra.mxu0 0.0
    %158 = vmatprep.subr.mxu0 0.0
    %159 = vmatpush1.msra.mxu0 0.0
    %160 = vmatprep.subr.mxu0 0.0
    %161 = vmatpush1.msra.mxu0 0.0
    %162 = vmatprep.subr.mxu0 0.0
    %163 = vmatpush1.msra.mxu0 0.0
    %164 = vmatprep.subr.mxu0 0.0
    %165 = vmatpush1.msra.mxu0 0.0
    %166 = vmatprep.subr.mxu0 0.0
    %167 = vmatpush1.msra.mxu0 0.0
    %168 = vmatprep.subr.mxu0 0.0
    %169 = vmatpush1.msra.mxu0 0.0
    %170 = vmatprep.subr.mxu0 0.0
    %171 = vmatpush1.msra.mxu0 0.0
    %172 = vmatprep.subr.mxu0 0.0
    %173 = vmatpush1.msra.mxu0 0.0
    %174 = vmatprep.subr.mxu0 0.0
    %175 = vmatpush1.msra.mxu0 0.0
    %176 = vmatprep.subr.mxu0 0.0
    %177 = vmatpush1.msra.mxu0 0.0
    %178 = vmatprep.mubr.f32.mxu0 0.0
    %179 = vmatmul.mubr.f32.gmra.mrb[0].mxu0 %v112
    %v180 = vpop.f32.mrb[0].mxu0
    %v181 = vadd.f32 0.0, %v180
    %v182 = vpop.f32.mrb[0].mxu0
    %183 = vdwg.mxu0
    %v185 = vsel %vm37, %v181, 0
    %187 = vmatprep.subr.mxu0 0.0
    %188 = vmatpush1.msra.mxu0 %v31
    %189 = vmatprep.subr.mxu0 0.0
    %190 = vmatpush1.msra.mxu0 0.0
    %191 = vmatprep.subr.mxu0 0.0
    %192 = vmatpush1.msra.mxu0 0.0
    %193 = vmatprep.subr.mxu0 0.0
    %194 = vmatpush1.msra.mxu0 0.0
    %195 = vmatprep.subr.mxu0 0.0
    %196 = vmatpush1.msra.mxu0 0.0
    %197 = vmatprep.subr.mxu0 0.0
    %198 = vmatpush1.msra.mxu0 0.0
    %199 = vmatprep.subr.mxu0 0.0
    %200 = vmatpush1.msra.mxu0 0.0
    %201 = vmatprep.subr.mxu0 0.0
    %202 = vmatpush1.msra.mxu0 0.0
    %203 = vmatprep.subr.mxu0 0.0
    %204 = vmatpush1.msra.mxu0 0.0
    %205 = vmatprep.subr.mxu0 0.0
    %206 = vmatpush1.msra.mxu0 0.0
    %207 = vmatprep.subr.mxu0 0.0
    %208 = vmatpush1.msra.mxu0 0.0
    %209 = vmatprep.subr.mxu0 0.0
    %210 = vmatpush1.msra.mxu0 0.0
    %211 = vmatprep.subr.mxu0 0.0
    %212 = vmatpush1.msra.mxu0 0.0
    %213 = vmatprep.subr.mxu0 0.0
    %214 = vmatpush1.msra.mxu0 0.0
    %215 = vmatprep.subr.mxu0 0.0
    %216 = vmatpush1.msra.mxu0 0.0
    %217 = vmatprep.subr.mxu0 0.0
    %218 = vmatpush1.msra.mxu0 0.0
    %219 = vmatprep.subr.mxu0 0.0
    %220 = vmatpush1.msra.mxu0 0.0
    %221 = vmatprep.subr.mxu0 0.0
    %222 = vmatpush1.msra.mxu0 0.0
    %223 = vmatprep.subr.mxu0 0.0
    %224 = vmatpush1.msra.mxu0 0.0
    %225 = vmatprep.subr.mxu0 0.0
    %226 = vmatpush1.msra.mxu0 0.0
    %227 = vmatprep.subr.mxu0 0.0
    %228 = vmatpush1.msra.mxu0 0.0
    %229 = vmatprep.subr.mxu0 0.0
    %230 = vmatpush1.msra.mxu0 0.0
    %231 = vmatprep.subr.mxu0 0.0
    %232 = vmatpush1.msra.mxu0 0.0
    %233 = vmatprep.subr.mxu0 0.0
    %234 = vmatpush1.msra.mxu0 0.0
    %235 = vmatprep.subr.mxu0 0.0
    %236 = vmatpush1.msra.mxu0 0.0
    %237 = vmatprep.subr.mxu0 0.0
    %238 = vmatpush1.msra.mxu0 0.0
    %239 = vmatprep.subr.mxu0 0.0
    %240 = vmatpush1.msra.mxu0 0.0
    %241 = vmatprep.subr.mxu0 0.0
    %242 = vmatpush1.msra.mxu0 0.0
    %243 = vmatprep.subr.mxu0 0.0
    %244 = vmatpush1.msra.mxu0 0.0
    %245 = vmatprep.subr.mxu0 0.0
    %246 = vmatpush1.msra.mxu0 0.0
    %247 = vmatprep.subr.mxu0 0.0
    %248 = vmatpush1.msra.mxu0 0.0
    %249 = vmatprep.subr.mxu0 0.0
    %250 = vmatpush1.msra.mxu0 0.0
    %251 = vmatprep.mubr.f32.mxu0 0.0
    %252 = vmatmul.mubr.f32.gmra.mrb[0].mxu0 %v185
    %v253 = vpop.f32.mrb[0].mxu0
    %v254 = vadd.f32 0.0, %v253
    %v255 = vpop.f32.mrb[0].mxu0
    %256 = vdwg.mxu0
    %v258 = vsel %vm37, %v254, 0
    %260 = vmatprep.subr.mxu0 0.0
    %261 = vmatpush1.msra.mxu0 %v32
    %262 = vmatprep.subr.mxu0 0.0
    %263 = vmatpush1.msra.mxu0 0.0
    %264 = vmatprep.subr.mxu0 0.0
    %265 = vmatpush1.msra.mxu0 0.0
    %266 = vmatprep.subr.mxu0 0.0
    %267 = vmatpush1.msra.mxu0 0.0
    %268 = vmatprep.subr.mxu0 0.0
    %269 = vmatpush1.msra.mxu0 0.0
    %270 = vmatprep.subr.mxu0 0.0
    %271 = vmatpush1.msra.mxu0 0.0
    %272 = vmatprep.subr.mxu0 0.0
    %273 = vmatpush1.msra.mxu0 0.0
    %274 = vmatprep.subr.mxu0 0.0
    %275 = vmatpush1.msra.mxu0 0.0
    %276 = vmatprep.subr.mxu0 0.0
    %277 = vmatpush1.msra.mxu0 0.0
    %278 = vmatprep.subr.mxu0 0.0
    %279 = vmatpush1.msra.mxu0 0.0
    %280 = vmatprep.subr.mxu0 0.0
    %281 = vmatpush1.msra.mxu0 0.0
    %282 = vmatprep.subr.mxu0 0.0
    %283 = vmatpush1.msra.mxu0 0.0
    %284 = vmatprep.subr.mxu0 0.0
    %285 = vmatpush1.msra.mxu0 0.0
    %286 = vmatprep.subr.mxu0 0.0
    %287 = vmatpush1.msra.mxu0 0.0
    %288 = vmatprep.subr.mxu0 0.0
    %289 = vmatpush1.msra.mxu0 0.0
    %290 = vmatprep.subr.mxu0 0.0
    %291 = vmatpush1.msra.mxu0 0.0
    %292 = vmatprep.subr.mxu0 0.0
    %293 = vmatpush1.msra.mxu0 0.0
    %294 = vmatprep.subr.mxu0 0.0
    %295 = vmatpush1.msra.mxu0 0.0
    %296 = vmatprep.subr.mxu0 0.0
    %297 = vmatpush1.msra.mxu0 0.0
    %298 = vmatprep.subr.mxu0 0.0
    %299 = vmatpush1.msra.mxu0 0.0
    %300 = vmatprep.subr.mxu0 0.0
    %301 = vmatpush1.msra.mxu0 0.0
    %302 = vmatprep.subr.mxu0 0.0
    %303 = vmatpush1.msra.mxu0 0.0
    %304 = vmatprep.subr.mxu0 0.0
    %305 = vmatpush1.msra.mxu0 0.0
    %306 = vmatprep.subr.mxu0 0.0
    %307 = vmatpush1.msra.mxu0 0.0
    %308 = vmatprep.subr.mxu0 0.0
    %309 = vmatpush1.msra.mxu0 0.0
    %310 = vmatprep.subr.mxu0 0.0
    %311 = vmatpush1.msra.mxu0 0.0
    %312 = vmatprep.subr.mxu0 0.0
    %313 = vmatpush1.msra.mxu0 0.0
    %314 = vmatprep.subr.mxu0 0.0
    %315 = vmatpush1.msra.mxu0 0.0
    %316 = vmatprep.subr.mxu0 0.0
    %317 = vmatpush1.msra.mxu0 0.0
    %318 = vmatprep.subr.mxu0 0.0
    %319 = vmatpush1.msra.mxu0 0.0
    %320 = vmatprep.subr.mxu0 0.0
    %321 = vmatpush1.msra.mxu0 0.0
    %322 = vmatprep.subr.mxu0 0.0
    %323 = vmatpush1.msra.mxu0 0.0
    %324 = vmatprep.mubr.f32.mxu0 0.0
    %325 = vmatmul.mubr.f32.gmra.mrb[0].mxu0 %v258
    %v326 = vpop.f32.mrb[0].mxu0
    %v327 = vadd.f32 0.0, %v326
    %v328 = vpop.f32.mrb[0].mxu0
    %329 = vdwg.mxu0
    %v331 = vsel %vm37, %v327, 0
    %333 = vmatprep.subr.mxu0 0.0
    %334 = vmatpush1.msra.mxu0 %v33
    %335 = vmatprep.subr.mxu0 0.0
    %336 = vmatpush1.msra.mxu0 0.0
    %337 = vmatprep.subr.mxu0 0.0
    %338 = vmatpush1.msra.mxu0 0.0
    %339 = vmatprep.subr.mxu0 0.0
    %340 = vmatpush1.msra.mxu0 0.0
    %341 = vmatprep.subr.mxu0 0.0
    %342 = vmatpush1.msra.mxu0 0.0
    %343 = vmatprep.subr.mxu0 0.0
    %344 = vmatpush1.msra.mxu0 0.0
    %345 = vmatprep.subr.mxu0 0.0
    %346 = vmatpush1.msra.mxu0 0.0
    %347 = vmatprep.subr.mxu0 0.0
    %348 = vmatpush1.msra.mxu0 0.0
    %349 = vmatprep.subr.mxu0 0.0
    %350 = vmatpush1.msra.mxu0 0.0
    %351 = vmatprep.subr.mxu0 0.0
    %352 = vmatpush1.msra.mxu0 0.0
    %353 = vmatprep.subr.mxu0 0.0
    %354 = vmatpush1.msra.mxu0 0.0
    %355 = vmatprep.subr.mxu0 0.0
    %356 = vmatpush1.msra.mxu0 0.0
    %357 = vmatprep.subr.mxu0 0.0
    %358 = vmatpush1.msra.mxu0 0.0
    %359 = vmatprep.subr.mxu0 0.0
    %360 = vmatpush1.msra.mxu0 0.0
    %361 = vmatprep.subr.mxu0 0.0
    %362 = vmatpush1.msra.mxu0 0.0
    %363 = vmatprep.subr.mxu0 0.0
    %364 = vmatpush1.msra.mxu0 0.0
    %365 = vmatprep.subr.mxu0 0.0
    %366 = vmatpush1.msra.mxu0 0.0
    %367 = vmatprep.subr.mxu0 0.0
    %368 = vmatpush1.msra.mxu0 0.0
    %369 = vmatprep.subr.mxu0 0.0
    %370 = vmatpush1.msra.mxu0 0.0
    %371 = vmatprep.subr.mxu0 0.0
    %372 = vmatpush1.msra.mxu0 0.0
    %373 = vmatprep.subr.mxu0 0.0
    %374 = vmatpush1.msra.mxu0 0.0
    %375 = vmatprep.subr.mxu0 0.0
    %376 = vmatpush1.msra.mxu0 0.0
    %377 = vmatprep.subr.mxu0 0.0
    %378 = vmatpush1.msra.mxu0 0.0
    %379 = vmatprep.subr.mxu0 0.0
    %380 = vmatpush1.msra.mxu0 0.0
    %381 = vmatprep.subr.mxu0 0.0
    %382 = vmatpush1.msra.mxu0 0.0
    %383 = vmatprep.subr.mxu0 0.0
    %384 = vmatpush1.msra.mxu0 0.0
    %385 = vmatprep.subr.mxu0 0.0
    %386 = vmatpush1.msra.mxu0 0.0
    %387 = vmatprep.subr.mxu0 0.0
    %388 = vmatpush1.msra.mxu0 0.0
    %389 = vmatprep.subr.mxu0 0.0
    %390 = vmatpush1.msra.mxu0 0.0
    %391 = vmatprep.subr.mxu0 0.0
    %392 = vmatpush1.msra.mxu0 0.0
    %393 = vmatprep.subr.mxu0 0.0
    %394 = vmatpush1.msra.mxu0 0.0
    %395 = vmatprep.subr.mxu0 0.0
    %396 = vmatpush1.msra.mxu0 0.0
    %397 = vmatprep.mubr.f32.mxu0 0.0
    %398 = vmatmul.mubr.f32.gmra.mrb[0].mxu0 %v331
    %v399 = vpop.f32.mrb[0].mxu0
    %v400 = vadd.f32 0.0, %v399
    %v401 = vpop.f32.mrb[0].mxu0
    %402 = vdwg.mxu0
    %v404 = vsel %vm37, %v400, 0
    %406 = vmatprep.subr.mxu0 0.0
    %407 = vmatpush1.msra.mxu0 %v34
    %408 = vmatprep.subr.mxu0 0.0
    %409 = vmatpush1.msra.mxu0 0.0
    %410 = vmatprep.subr.mxu0 0.0
    %411 = vmatpush1.msra.mxu0 0.0
    %412 = vmatprep.subr.mxu0 0.0
    %413 = vmatpush1.msra.mxu0 0.0
    %414 = vmatprep.subr.mxu0 0.0
    %415 = vmatpush1.msra.mxu0 0.0
    %416 = vmatprep.subr.mxu0 0.0
    %417 = vmatpush1.msra.mxu0 0.0
    %418 = vmatprep.subr.mxu0 0.0
    %419 = vmatpush1.msra.mxu0 0.0
    %420 = vmatprep.subr.mxu0 0.0
    %421 = vmatpush1.msra.mxu0 0.0
    %422 = vmatprep.subr.mxu0 0.0
    %423 = vmatpush1.msra.mxu0 0.0
    %424 = vmatprep.subr.mxu0 0.0
    %425 = vmatpush1.msra.mxu0 0.0
    %426 = vmatprep.subr.mxu0 0.0
    %427 = vmatpush1.msra.mxu0 0.0
    %428 = vmatprep.subr.mxu0 0.0
    %429 = vmatpush1.msra.mxu0 0.0
    %430 = vmatprep.subr.mxu0 0.0
    %431 = vmatpush1.msra.mxu0 0.0
    %432 = vmatprep.subr.mxu0 0.0
    %433 = vmatpush1.msra.mxu0 0.0
    %434 = vmatprep.subr.mxu0 0.0
    %435 = vmatpush1.msra.mxu0 0.0
    %436 = vmatprep.subr.mxu0 0.0
    %437 = vmatpush1.msra.mxu0 0.0
    %438 = vmatprep.subr.mxu0 0.0
    %439 = vmatpush1.msra.mxu0 0.0
    %440 = vmatprep.subr.mxu0 0.0
    %441 = vmatpush1.msra.mxu0 0.0
    %442 = vmatprep.subr.mxu0 0.0
    %443 = vmatpush1.msra.mxu0 0.0
    %444 = vmatprep.subr.mxu0 0.0
    %445 = vmatpush1.msra.mxu0 0.0
    %446 = vmatprep.subr.mxu0 0.0
    %447 = vmatpush1.msra.mxu0 0.0
    %448 = vmatprep.subr.mxu0 0.0
    %449 = vmatpush1.msra.mxu0 0.0
    %450 = vmatprep.subr.mxu0 0.0
    %451 = vmatpush1.msra.mxu0 0.0
    %452 = vmatprep.subr.mxu0 0.0
    %453 = vmatpush1.msra.mxu0 0.0
    %454 = vmatprep.subr.mxu0 0.0
    %455 = vmatpush1.msra.mxu0 0.0
    %456 = vmatprep.subr.mxu0 0.0
    %457 = vmatpush1.msra.mxu0 0.0
    %458 = vmatprep.subr.mxu0 0.0
    %459 = vmatpush1.msra.mxu0 0.0
    %460 = vmatprep.subr.mxu0 0.0
    %461 = vmatpush1.msra.mxu0 0.0
    %462 = vmatprep.subr.mxu0 0.0
    %463 = vmatpush1.msra.mxu0 0.0
    %464 = vmatprep.subr.mxu0 0.0
    %465 = vmatpush1.msra.mxu0 0.0
    %466 = vmatprep.subr.mxu0 0.0
    %467 = vmatpush1.msra.mxu0 0.0
    %468 = vmatprep.subr.mxu0 0.0
    %469 = vmatpush1.msra.mxu0 0.0
    %470 = vmatprep.mubr.f32.mxu0 0.0
    %471 = vmatmul.mubr.f32.gmra.mrb[0].mxu0 %v404
    %v472 = vpop.f32.mrb[0].mxu0
    %v473 = vadd.f32 0.0, %v472
    %v474 = vpop.f32.mrb[0].mxu0
    %475 = vdwg.mxu0
    %v477 = vsel %vm37, %v473, 0
    %479 = vmatprep.subr.mxu0 0.0
    %480 = vmatpush1.msra.mxu0 %v35
    %481 = vmatprep.subr.mxu0 0.0
    %482 = vmatpush1.msra.mxu0 0.0
    %483 = vmatprep.subr.mxu0 0.0
    %484 = vmatpush1.msra.mxu0 0.0
    %485 = vmatprep.subr.mxu0 0.0
    %486 = vmatpush1.msra.mxu0 0.0
    %487 = vmatprep.subr.mxu0 0.0
    %488 = vmatpush1.msra.mxu0 0.0
    %489 = vmatprep.subr.mxu0 0.0
    %490 = vmatpush1.msra.mxu0 0.0
    %491 = vmatprep.subr.mxu0 0.0
    %492 = vmatpush1.msra.mxu0 0.0
    %493 = vmatprep.subr.mxu0 0.0
    %494 = vmatpush1.msra.mxu0 0.0
    %495 = vmatprep.subr.mxu0 0.0
    %496 = vmatpush1.msra.mxu0 0.0
    %497 = vmatprep.subr.mxu0 0.0
    %498 = vmatpush1.msra.mxu0 0.0
    %499 = vmatprep.subr.mxu0 0.0
    %500 = vmatpush1.msra.mxu0 0.0
    %501 = vmatprep.subr.mxu0 0.0
    %502 = vmatpush1.msra.mxu0 0.0
    %503 = vmatprep.subr.mxu0 0.0
    %504 = vmatpush1.msra.mxu0 0.0
    %505 = vmatprep.subr.mxu0 0.0
    %506 = vmatpush1.msra.mxu0 0.0
    %507 = vmatprep.subr.mxu0 0.0
    %508 = vmatpush1.msra.mxu0 0.0
    %509 = vmatprep.subr.mxu0 0.0
    %510 = vmatpush1.msra.mxu0 0.0
    %511 = vmatprep.subr.mxu0 0.0
    %512 = vmatpush1.msra.mxu0 0.0
    %513 = vmatprep.subr.mxu0 0.0
    %514 = vmatpush1.msra.mxu0 0.0
    %515 = vmatprep.subr.mxu0 0.0
    %516 = vmatpush1.msra.mxu0 0.0
    %517 = vmatprep.subr.mxu0 0.0
    %518 = vmatpush1.msra.mxu0 0.0
    %519 = vmatprep.subr.mxu0 0.0
    %520 = vmatpush1.msra.mxu0 0.0
    %521 = vmatprep.subr.mxu0 0.0
    %522 = vmatpush1.msra.mxu0 0.0
    %523 = vmatprep.subr.mxu0 0.0
    %524 = vmatpush1.msra.mxu0 0.0
    %525 = vmatprep.subr.mxu0 0.0
    %526 = vmatpush1.msra.mxu0 0.0
    %527 = vmatprep.subr.mxu0 0.0
    %528 = vmatpush1.msra.mxu0 0.0
    %529 = vmatprep.subr.mxu0 0.0
    %530 = vmatpush1.msra.mxu0 0.0
    %531 = vmatprep.subr.mxu0 0.0
    %532 = vmatpush1.msra.mxu0 0.0
    %533 = vmatprep.subr.mxu0 0.0
    %534 = vmatpush1.msra.mxu0 0.0
    %535 = vmatprep.subr.mxu0 0.0
    %536 = vmatpush1.msra.mxu0 0.0
    %537 = vmatprep.subr.mxu0 0.0
    %538 = vmatpush1.msra.mxu0 0.0
    %539 = vmatprep.subr.mxu0 0.0
    %540 = vmatpush1.msra.mxu0 0.0
    %541 = vmatprep.subr.mxu0 0.0
    %542 = vmatpush1.msra.mxu0 0.0
    %543 = vmatprep.mubr.f32.mxu0 0.0
    %544 = vmatmul.mubr.f32.gmra.mrb[0].mxu0 %v477
    %v545 = vpop.f32.mrb[0].mxu0
    %v546 = vadd.f32 0.0, %v545
    %v547 = vpop.f32.mrb[0].mxu0
    %548 = vdwg.mxu0
    %v550 = vsel %vm37, %v546, 0
    %552 = vmatprep.subr.mxu0 0.0
    %553 = vmatpush1.msra.mxu0 %v36
    %554 = vmatprep.subr.mxu0 0.0
    %555 = vmatpush1.msra.mxu0 0.0
    %556 = vmatprep.subr.mxu0 0.0
    %557 = vmatpush1.msra.mxu0 0.0
    %558 = vmatprep.subr.mxu0 0.0
    %559 = vmatpush1.msra.mxu0 0.0
    %560 = vmatprep.subr.mxu0 0.0
    %561 = vmatpush1.msra.mxu0 0.0
    %562 = vmatprep.subr.mxu0 0.0
    %563 = vmatpush1.msra.mxu0 0.0
    %564 = vmatprep.subr.mxu0 0.0
    %565 = vmatpush1.msra.mxu0 0.0
    %566 = vmatprep.subr.mxu0 0.0
    %567 = vmatpush1.msra.mxu0 0.0
    %568 = vmatprep.subr.mxu0 0.0
    %569 = vmatpush1.msra.mxu0 0.0
    %570 = vmatprep.subr.mxu0 0.0
    %571 = vmatpush1.msra.mxu0 0.0
    %572 = vmatprep.subr.mxu0 0.0
    %573 = vmatpush1.msra.mxu0 0.0
    %574 = vmatprep.subr.mxu0 0.0
    %575 = vmatpush1.msra.mxu0 0.0
    %576 = vmatprep.subr.mxu0 0.0
    %577 = vmatpush1.msra.mxu0 0.0
    %578 = vmatprep.subr.mxu0 0.0
    %579 = vmatpush1.msra.mxu0 0.0
    %580 = vmatprep.subr.mxu0 0.0
    %581 = vmatpush1.msra.mxu0 0.0
    %582 = vmatprep.subr.mxu0 0.0
    %583 = vmatpush1.msra.mxu0 0.0
    %584 = vmatprep.subr.mxu0 0.0
    %585 = vmatpush1.msra.mxu0 0.0
    %586 = vmatprep.subr.mxu0 0.0
    %587 = vmatpush1.msra.mxu0 0.0
    %588 = vmatprep.subr.mxu0 0.0
    %589 = vmatpush1.msra.mxu0 0.0
    %590 = vmatprep.subr.mxu0 0.0
    %591 = vmatpush1.msra.mxu0 0.0
    %592 = vmatprep.subr.mxu0 0.0
    %593 = vmatpush1.msra.mxu0 0.0
    %594 = vmatprep.subr.mxu0 0.0
    %595 = vmatpush1.msra.mxu0 0.0
    %596 = vmatprep.subr.mxu0 0.0
    %597 = vmatpush1.msra.mxu0 0.0
    %598 = vmatprep.subr.mxu0 0.0
    %599 = vmatpush1.msra.mxu0 0.0
    %600 = vmatprep.subr.mxu0 0.0
    %601 = vmatpush1.msra.mxu0 0.0
    %602 = vmatprep.subr.mxu0 0.0
    %603 = vmatpush1.msra.mxu0 0.0
    %604 = vmatprep.subr.mxu0 0.0
    %605 = vmatpush1.msra.mxu0 0.0
    %606 = vmatprep.subr.mxu0 0.0
    %607 = vmatpush1.msra.mxu0 0.0
    %608 = vmatprep.subr.mxu0 0.0
    %609 = vmatpush1.msra.mxu0 0.0
    %610 = vmatprep.subr.mxu0 0.0
    %611 = vmatpush1.msra.mxu0 0.0
    %612 = vmatprep.subr.mxu0 0.0
    %613 = vmatpush1.msra.mxu0 0.0
    %614 = vmatprep.subr.mxu0 0.0
    %615 = vmatpush1.msra.mxu0 0.0
    %616 = vmatprep.mubr.f32.mxu0 0.0
    %617 = vmatmul.mubr.f32.gmra.mrb[0].mxu0 %v550
    %v618 = vpop.f32.mrb[0].mxu0
    %v619 = vadd.f32 0.0, %v618
    %v620 = vpop.f32.mrb[0].mxu0
    %621 = vdwg.mxu0
    %v622 = vrot.slane %v181, 7
    %v624 = vrot.slane %v254, 6
    %v626 = vrot.slane %v327, 5
    %v628 = vrot.slane %v400, 4
    %v630 = vrot.slane %v473, 3
    %v632 = vrot.slane %v546, 2
    %v635 = vrot.slane %v619, 1
    %vm637 = vcmask 1040384
    %v638 = vsel %vm637, %v108, %v622
    %vm639 = vcmask 1041408
    %v640 = vsel %vm639, %v638, %v624
    %vm641 = vcmask 1042432
    %v642 = vsel %vm641, %v640, %v626
    %vm643 = vcmask 1043456
    %v644 = vsel %vm643, %v642, %v628
    %vm645 = vcmask 1044480
    %v646 = vsel %vm645, %v644, %v630
    %vm647 = vcmask 1045504
    %v648 = vsel %vm647, %v646, %v632
    %vm649 = vcmask 1046528
    %v650 = vsel %vm649, %v648, %v635
    %651 = vst [vmem:[#allocation5] sm:$0xff] %v650
    %s652 = smul.u32 8, 8
    %s653 = scalar_lea.vmem [#allocation2], %s652
    %v654 = vld [vmem:[%s653] sm:$0xff]
    %v655 = vld [vmem:[%s653 + $0x8] sm:$0xff]
    %v656 = vld [vmem:[%s653 + $0x10] sm:$0xff]
    %v657 = vld [vmem:[%s653 + $0x18] sm:$0xff]
    %v658 = vld [vmem:[%s653 + $0x20] sm:$0xff]
    %v659 = vld [vmem:[%s653 + $0x28] sm:$0xff]
    %v660 = vld [vmem:[%s653 + $0x30] sm:$0xff]
    %v661 = vld [vmem:[%s653 + $0x38] sm:$0xff]
    %v662 = vsel %vm37, %v619, 0
    %664 = vmatprep.subr.mxu0 0.0
    %665 = vmatpush1.msra.mxu0 %v654
    %666 = vmatprep.subr.mxu0 0.0
    %667 = vmatpush1.msra.mxu0 0.0
    %668 = vmatprep.subr.mxu0 0.0
    %669 = vmatpush1.msra.mxu0 0.0
    %670 = vmatprep.subr.mxu0 0.0
    %671 = vmatpush1.msra.mxu0 0.0
    %672 = vmatprep.subr.mxu0 0.0
    %673 = vmatpush1.msra.mxu0 0.0
    %674 = vmatprep.subr.mxu0 0.0
    %675 = vmatpush1.msra.mxu0 0.0
    %676 = vmatprep.subr.mxu0 0.0
    %677 = vmatpush1.msra.mxu0 0.0
    %678 = vmatprep.subr.mxu0 0.0
    %679 = vmatpush1.msra.mxu0 0.0
    %680 = vmatprep.subr.mxu0 0.0
    %681 = vmatpush1.msra.mxu0 0.0
    %682 = vmatprep.subr.mxu0 0.0
    %683 = vmatpush1.msra.mxu0 0.0
    %684 = vmatprep.subr.mxu0 0.0
    %685 = vmatpush1.msra.mxu0 0.0
    %686 = vmatprep.subr.mxu0 0.0
    %687 = vmatpush1.msra.mxu0 0.0
    %688 = vmatprep.subr.mxu0 0.0
    %689 = vmatpush1.msra.mxu0 0.0
    %690 = vmatprep.subr.mxu0 0.0
    %691 = vmatpush1.msra.mxu0 0.0
    %692 = vmatprep.subr.mxu0 0.0
    %693 = vmatpush1.msra.mxu0 0.0
    %694 = vmatprep.subr.mxu0 0.0
    %695 = vmatpush1.msra.mxu0 0.0
    %696 = vmatprep.subr.mxu0 0.0
    %697 = vmatpush1.msra.mxu0 0.0
    %698 = vmatprep.subr.mxu0 0.0
    %699 = vmatpush1.msra.mxu0 0.0
    %700 = vmatprep.subr.mxu0 0.0
    %701 = vmatpush1.msra.mxu0 0.0
    %702 = vmatprep.subr.mxu0 0.0
    %703 = vmatpush1.msra.mxu0 0.0
    %704 = vmatprep.subr.mxu0 0.0
    %705 = vmatpush1.msra.mxu0 0.0
    %706 = vmatprep.subr.mxu0 0.0
    %707 = vmatpush1.msra.mxu0 0.0
    %708 = vmatprep.subr.mxu0 0.0
    %709 = vmatpush1.msra.mxu0 0.0
    %710 = vmatprep.subr.mxu0 0.0
    %711 = vmatpush1.msra.mxu0 0.0
    %712 = vmatprep.subr.mxu0 0.0
    %713 = vmatpush1.msra.mxu0 0.0
    %714 = vmatprep.subr.mxu0 0.0
    %715 = vmatpush1.msra.mxu0 0.0
    %716 = vmatprep.subr.mxu0 0.0
    %717 = vmatpush1.msra.mxu0 0.0
    %718 = vmatprep.subr.mxu0 0.0
    %719 = vmatpush1.msra.mxu0 0.0
    %720 = vmatprep.subr.mxu0 0.0
    %721 = vmatpush1.msra.mxu0 0.0
    %722 = vmatprep.subr.mxu0 0.0
    %723 = vmatpush1.msra.mxu0 0.0
    %724 = vmatprep.subr.mxu0 0.0
    %725 = vmatpush1.msra.mxu0 0.0
    %726 = vmatprep.subr.mxu0 0.0
    %727 = vmatpush1.msra.mxu0 0.0
    %728 = vmatprep.mubr.f32.mxu0 0.0
    %729 = vmatmul.mubr.f32.gmra.mrb[0].mxu0 %v662
    %v730 = vpop.f32.mrb[0].mxu0
    %v731 = vadd.f32 0.0, %v730
    %v732 = vpop.f32.mrb[0].mxu0
    %733 = vdwg.mxu0
    %v735 = vsel %vm37, %v731, 0
    %737 = vmatprep.subr.mxu0 0.0
    %738 = vmatpush1.msra.mxu0 %v655
    %739 = vmatprep.subr.mxu0 0.0
    %740 = vmatpush1.msra.mxu0 0.0
    %741 = vmatprep.subr.mxu0 0.0
    %742 = vmatpush1.msra.mxu0 0.0
    %743 = vmatprep.subr.mxu0 0.0
    %744 = vmatpush1.msra.mxu0 0.0
    %745 = vmatprep.subr.mxu0 0.0
    %746 = vmatpush1.msra.mxu0 0.0
    %747 = vmatprep.subr.mxu0 0.0
    %748 = vmatpush1.msra.mxu0 0.0
    %749 = vmatprep.subr.mxu0 0.0
    %750 = vmatpush1.msra.mxu0 0.0
    %751 = vmatprep.subr.mxu0 0.0
    %752 = vmatpush1.msra.mxu0 0.0
    %753 = vmatprep.subr.mxu0 0.0
    %754 = vmatpush1.msra.mxu0 0.0
    %755 = vmatprep.subr.mxu0 0.0
    %756 = vmatpush1.msra.mxu0 0.0
    %757 = vmatprep.subr.mxu0 0.0
    %758 = vmatpush1.msra.mxu0 0.0
    %759 = vmatprep.subr.mxu0 0.0
    %760 = vmatpush1.msra.mxu0 0.0
    %761 = vmatprep.subr.mxu0 0.0
    %762 = vmatpush1.msra.mxu0 0.0
    %763 = vmatprep.subr.mxu0 0.0
    %764 = vmatpush1.msra.mxu0 0.0
    %765 = vmatprep.subr.mxu0 0.0
    %766 = vmatpush1.msra.mxu0 0.0
    %767 = vmatprep.subr.mxu0 0.0
    %768 = vmatpush1.msra.mxu0 0.0
    %769 = vmatprep.subr.mxu0 0.0
    %770 = vmatpush1.msra.mxu0 0.0
    %771 = vmatprep.subr.mxu0 0.0
    %772 = vmatpush1.msra.mxu0 0.0
    %773 = vmatprep.subr.mxu0 0.0
    %774 = vmatpush1.msra.mxu0 0.0
    %775 = vmatprep.subr.mxu0 0.0
    %776 = vmatpush1.msra.mxu0 0.0
    %777 = vmatprep.subr.mxu0 0.0
    %778 = vmatpush1.msra.mxu0 0.0
    %779 = vmatprep.subr.mxu0 0.0
    %780 = vmatpush1.msra.mxu0 0.0
    %781 = vmatprep.subr.mxu0 0.0
    %782 = vmatpush1.msra.mxu0 0.0
    %783 = vmatprep.subr.mxu0 0.0
    %784 = vmatpush1.msra.mxu0 0.0
    %785 = vmatprep.subr.mxu0 0.0
    %786 = vmatpush1.msra.mxu0 0.0
    %787 = vmatprep.subr.mxu0 0.0
    %788 = vmatpush1.msra.mxu0 0.0
    %789 = vmatprep.subr.mxu0 0.0
    %790 = vmatpush1.msra.mxu0 0.0
    %791 = vmatprep.subr.mxu0 0.0
    %792 = vmatpush1.msra.mxu0 0.0
    %793 = vmatprep.subr.mxu0 0.0
    %794 = vmatpush1.msra.mxu0 0.0
    %795 = vmatprep.subr.mxu0 0.0
    %796 = vmatpush1.msra.mxu0 0.0
    %797 = vmatprep.subr.mxu0 0.0
    %798 = vmatpush1.msra.mxu0 0.0
    %799 = vmatprep.subr.mxu0 0.0
    %800 = vmatpush1.msra.mxu0 0.0
    %801 = vmatprep.mubr.f32.mxu0 0.0
    %802 = vmatmul.mubr.f32.gmra.mrb[0].mxu0 %v735
    %v803 = vpop.f32.mrb[0].mxu0
    %v804 = vadd.f32 0.0, %v803
    %v805 = vpop.f32.mrb[0].mxu0
    %806 = vdwg.mxu0
    %v808 = vsel %vm37, %v804, 0
    %810 = vmatprep.subr.mxu0 0.0
    %811 = vmatpush1.msra.mxu0 %v656
    %812 = vmatprep.subr.mxu0 0.0
    %813 = vmatpush1.msra.mxu0 0.0
    %814 = vmatprep.subr.mxu0 0.0
    %815 = vmatpush1.msra.mxu0 0.0
    %816 = vmatprep.subr.mxu0 0.0
    %817 = vmatpush1.msra.mxu0 0.0
    %818 = vmatprep.subr.mxu0 0.0
    %819 = vmatpush1.msra.mxu0 0.0
    %820 = vmatprep.subr.mxu0 0.0
    %821 = vmatpush1.msra.mxu0 0.0
    %822 = vmatprep.subr.mxu0 0.0
    %823 = vmatpush1.msra.mxu0 0.0
    %824 = vmatprep.subr.mxu0 0.0
    %825 = vmatpush1.msra.mxu0 0.0
    %826 = vmatprep.subr.mxu0 0.0
    %827 = vmatpush1.msra.mxu0 0.0
    %828 = vmatprep.subr.mxu0 0.0
    %829 = vmatpush1.msra.mxu0 0.0
    %830 = vmatprep.subr.mxu0 0.0
    %831 = vmatpush1.msra.mxu0 0.0
    %832 = vmatprep.subr.mxu0 0.0
    %833 = vmatpush1.msra.mxu0 0.0
    %834 = vmatprep.subr.mxu0 0.0
    %835 = vmatpush1.msra.mxu0 0.0
    %836 = vmatprep.subr.mxu0 0.0
    %837 = vmatpush1.msra.mxu0 0.0
    %838 = vmatprep.subr.mxu0 0.0
    %839 = vmatpush1.msra.mxu0 0.0
    %840 = vmatprep.subr.mxu0 0.0
    %841 = vmatpush1.msra.mxu0 0.0
    %842 = vmatprep.subr.mxu0 0.0
    %843 = vmatpush1.msra.mxu0 0.0
    %844 = vmatprep.subr.mxu0 0.0
    %845 = vmatpush1.msra.mxu0 0.0
    %846 = vmatprep.subr.mxu0 0.0
    %847 = vmatpush1.msra.mxu0 0.0
    %848 = vmatprep.subr.mxu0 0.0
    %849 = vmatpush1.msra.mxu0 0.0
    %850 = vmatprep.subr.mxu0 0.0
    %851 = vmatpush1.msra.mxu0 0.0
    %852 = vmatprep.subr.mxu0 0.0
    %853 = vmatpush1.msra.mxu0 0.0
    %854 = vmatprep.subr.mxu0 0.0
    %855 = vmatpush1.msra.mxu0 0.0
    %856 = vmatprep.subr.mxu0 0.0
    %857 = vmatpush1.msra.mxu0 0.0
    %858 = vmatprep.subr.mxu0 0.0
    %859 = vmatpush1.msra.mxu0 0.0
    %860 = vmatprep.subr.mxu0 0.0
    %861 = vmatpush1.msra.mxu0 0.0
    %862 = vmatprep.subr.mxu0 0.0
    %863 = vmatpush1.msra.mxu0 0.0
    %864 = vmatprep.subr.mxu0 0.0
    %865 = vmatpush1.msra.mxu0 0.0
    %866 = vmatprep.subr.mxu0 0.0
    %867 = vmatpush1.msra.mxu0 0.0
    %868 = vmatprep.subr.mxu0 0.0
    %869 = vmatpush1.msra.mxu0 0.0
    %870 = vmatprep.subr.mxu0 0.0
    %871 = vmatpush1.msra.mxu0 0.0
    %872 = vmatprep.subr.mxu0 0.0
    %873 = vmatpush1.msra.mxu0 0.0
    %874 = vmatprep.mubr.f32.mxu0 0.0
    %875 = vmatmul.mubr.f32.gmra.mrb[0].mxu0 %v808
    %v876 = vpop.f32.mrb[0].mxu0
    %v877 = vadd.f32 0.0, %v876
    %v878 = vpop.f32.mrb[0].mxu0
    %879 = vdwg.mxu0
    %v881 = vsel %vm37, %v877, 0
    %883 = vmatprep.subr.mxu0 0.0
    %884 = vmatpush1.msra.mxu0 %v657
    %885 = vmatprep.subr.mxu0 0.0
    %886 = vmatpush1.msra.mxu0 0.0
    %887 = vmatprep.subr.mxu0 0.0
    %888 = vmatpush1.msra.mxu0 0.0
    %889 = vmatprep.subr.mxu0 0.0
    %890 = vmatpush1.msra.mxu0 0.0
    %891 = vmatprep.subr.mxu0 0.0
    %892 = vmatpush1.msra.mxu0 0.0
    %893 = vmatprep.subr.mxu0 0.0
    %894 = vmatpush1.msra.mxu0 0.0
    %895 = vmatprep.subr.mxu0 0.0
    %896 = vmatpush1.msra.mxu0 0.0
    %897 = vmatprep.subr.mxu0 0.0
    %898 = vmatpush1.msra.mxu0 0.0
    %899 = vmatprep.subr.mxu0 0.0
    %900 = vmatpush1.msra.mxu0 0.0
    %901 = vmatprep.subr.mxu0 0.0
    %902 = vmatpush1.msra.mxu0 0.0
    %903 = vmatprep.subr.mxu0 0.0
    %904 = vmatpush1.msra.mxu0 0.0
    %905 = vmatprep.subr.mxu0 0.0
    %906 = vmatpush1.msra.mxu0 0.0
    %907 = vmatprep.subr.mxu0 0.0
    %908 = vmatpush1.msra.mxu0 0.0
    %909 = vmatprep.subr.mxu0 0.0
    %910 = vmatpush1.msra.mxu0 0.0
    %911 = vmatprep.subr.mxu0 0.0
    %912 = vmatpush1.msra.mxu0 0.0
    %913 = vmatprep.subr.mxu0 0.0
    %914 = vmatpush1.msra.mxu0 0.0
    %915 = vmatprep.subr.mxu0 0.0
    %916 = vmatpush1.msra.mxu0 0.0
    %917 = vmatprep.subr.mxu0 0.0
    %918 = vmatpush1.msra.mxu0 0.0
    %919 = vmatprep.subr.mxu0 0.0
    %920 = vmatpush1.msra.mxu0 0.0
    %921 = vmatprep.subr.mxu0 0.0
    %922 = vmatpush1.msra.mxu0 0.0
    %923 = vmatprep.subr.mxu0 0.0
    %924 = vmatpush1.msra.mxu0 0.0
    %925 = vmatprep.subr.mxu0 0.0
    %926 = vmatpush1.msra.mxu0 0.0
    %927 = vmatprep.subr.mxu0 0.0
    %928 = vmatpush1.msra.mxu0 0.0
    %929 = vmatprep.subr.mxu0 0.0
    %930 = vmatpush1.msra.mxu0 0.0
    %931 = vmatprep.subr.mxu0 0.0
    %932 = vmatpush1.msra.mxu0 0.0
    %933 = vmatprep.subr.mxu0 0.0
    %934 = vmatpush1.msra.mxu0 0.0
    %935 = vmatprep.subr.mxu0 0.0
    %936 = vmatpush1.msra.mxu0 0.0
    %937 = vmatprep.subr.mxu0 0.0
    %938 = vmatpush1.msra.mxu0 0.0
    %939 = vmatprep.subr.mxu0 0.0
    %940 = vmatpush1.msra.mxu0 0.0
    %941 = vmatprep.subr.mxu0 0.0
    %942 = vmatpush1.msra.mxu0 0.0
    %943 = vmatprep.subr.mxu0 0.0
    %944 = vmatpush1.msra.mxu0 0.0
    %945 = vmatprep.subr.mxu0 0.0
    %946 = vmatpush1.msra.mxu0 0.0
    %947 = vmatprep.mubr.f32.mxu0 0.0
    %948 = vmatmul.mubr.f32.gmra.mrb[0].mxu0 %v881
    %v949 = vpop.f32.mrb[0].mxu0
    %v950 = vadd.f32 0.0, %v949
    %v951 = vpop.f32.mrb[0].mxu0
    %952 = vdwg.mxu0
    %v954 = vsel %vm37, %v950, 0
    %956 = vmatprep.subr.mxu0 0.0
    %957 = vmatpush1.msra.mxu0 %v658
    %958 = vmatprep.subr.mxu0 0.0
    %959 = vmatpush1.msra.mxu0 0.0
    %960 = vmatprep.subr.mxu0 0.0
    %961 = vmatpush1.msra.mxu0 0.0
    %962 = vmatprep.subr.mxu0 0.0
    %963 = vmatpush1.msra.mxu0 0.0
    %964 = vmatprep.subr.mxu0 0.0
    %965 = vmatpush1.msra.mxu0 0.0
    %966 = vmatprep.subr.mxu0 0.0
    %967 = vmatpush1.msra.mxu0 0.0
    %968 = vmatprep.subr.mxu0 0.0
    %969 = vmatpush1.msra.mxu0 0.0
    %970 = vmatprep.subr.mxu0 0.0
    %971 = vmatpush1.msra.mxu0 0.0
    %972 = vmatprep.subr.mxu0 0.0
    %973 = vmatpush1.msra.mxu0 0.0
    %974 = vmatprep.subr.mxu0 0.0
    %975 = vmatpush1.msra.mxu0 0.0
    %976 = vmatprep.subr.mxu0 0.0
    %977 = vmatpush1.msra.mxu0 0.0
    %978 = vmatprep.subr.mxu0 0.0
    %979 = vmatpush1.msra.mxu0 0.0
    %980 = vmatprep.subr.mxu0 0.0
    %981 = vmatpush1.msra.mxu0 0.0
    %982 = vmatprep.subr.mxu0 0.0
    %983 = vmatpush1.msra.mxu0 0.0
    %984 = vmatprep.subr.mxu0 0.0
    %985 = vmatpush1.msra.mxu0 0.0
    %986 = vmatprep.subr.mxu0 0.0
    %987 = vmatpush1.msra.mxu0 0.0
    %988 = vmatprep.subr.mxu0 0.0
    %989 = vmatpush1.msra.mxu0 0.0
    %990 = vmatprep.subr.mxu0 0.0
    %991 = vmatpush1.msra.mxu0 0.0
    %992 = vmatprep.subr.mxu0 0.0
    %993 = vmatpush1.msra.mxu0 0.0
    %994 = vmatprep.subr.mxu0 0.0
    %995 = vmatpush1.msra.mxu0 0.0
    %996 = vmatprep.subr.mxu0 0.0
    %997 = vmatpush1.msra.mxu0 0.0
    %998 = vmatprep.subr.mxu0 0.0
    %999 = vmatpush1.msra.mxu0 0.0
    %1000 = vmatprep.subr.mxu0 0.0
    %1001 = vmatpush1.msra.mxu0 0.0
    %1002 = vmatprep.subr.mxu0 0.0
    %1003 = vmatpush1.msra.mxu0 0.0
    %1004 = vmatprep.subr.mxu0 0.0
    %1005 = vmatpush1.msra.mxu0 0.0
    %1006 = vmatprep.subr.mxu0 0.0
    %1007 = vmatpush1.msra.mxu0 0.0
    %1008 = vmatprep.subr.mxu0 0.0
    %1009 = vmatpush1.msra.mxu0 0.0
    %1010 = vmatprep.subr.mxu0 0.0
    %1011 = vmatpush1.msra.mxu0 0.0
    %1012 = vmatprep.subr.mxu0 0.0
    %1013 = vmatpush1.msra.mxu0 0.0
    %1014 = vmatprep.subr.mxu0 0.0
    %1015 = vmatpush1.msra.mxu0 0.0
    %1016 = vmatprep.subr.mxu0 0.0
    %1017 = vmatpush1.msra.mxu0 0.0
    %1018 = vmatprep.subr.mxu0 0.0
    %1019 = vmatpush1.msra.mxu0 0.0
    %1020 = vmatprep.mubr.f32.mxu0 0.0
    %1021 = vmatmul.mubr.f32.gmra.mrb[0].mxu0 %v954
    %v1022 = vpop.f32.mrb[0].mxu0
    %v1023 = vadd.f32 0.0, %v1022
    %v1024 = vpop.f32.mrb[0].mxu0
    %1025 = vdwg.mxu0
    %v1027 = vsel %vm37, %v1023, 0
    %1029 = vmatprep.subr.mxu0 0.0
    %1030 = vmatpush1.msra.mxu0 %v659
    %1031 = vmatprep.subr.mxu0 0.0
    %1032 = vmatpush1.msra.mxu0 0.0
    %1033 = vmatprep.subr.mxu0 0.0
    %1034 = vmatpush1.msra.mxu0 0.0
    %1035 = vmatprep.subr.mxu0 0.0
    %1036 = vmatpush1.msra.mxu0 0.0
    %1037 = vmatprep.subr.mxu0 0.0
    %1038 = vmatpush1.msra.mxu0 0.0
    %1039 = vmatprep.subr.mxu0 0.0
    %1040 = vmatpush1.msra.mxu0 0.0
    %1041 = vmatprep.subr.mxu0 0.0
    %1042 = vmatpush1.msra.mxu0 0.0
    %1043 = vmatprep.subr.mxu0 0.0
    %1044 = vmatpush1.msra.mxu0 0.0
    %1045 = vmatprep.subr.mxu0 0.0
    %1046 = vmatpush1.msra.mxu0 0.0
    %1047 = vmatprep.subr.mxu0 0.0
    %1048 = vmatpush1.msra.mxu0 0.0
    %1049 = vmatprep.subr.mxu0 0.0
    %1050 = vmatpush1.msra.mxu0 0.0
    %1051 = vmatprep.subr.mxu0 0.0
    %1052 = vmatpush1.msra.mxu0 0.0
    %1053 = vmatprep.subr.mxu0 0.0
    %1054 = vmatpush1.msra.mxu0 0.0
    %1055 = vmatprep.subr.mxu0 0.0
    %1056 = vmatpush1.msra.mxu0 0.0
    %1057 = vmatprep.subr.mxu0 0.0
    %1058 = vmatpush1.msra.mxu0 0.0
    %1059 = vmatprep.subr.mxu0 0.0
    %1060 = vmatpush1.msra.mxu0 0.0
    %1061 = vmatprep.subr.mxu0 0.0
    %1062 = vmatpush1.msra.mxu0 0.0
    %1063 = vmatprep.subr.mxu0 0.0
    %1064 = vmatpush1.msra.mxu0 0.0
    %1065 = vmatprep.subr.mxu0 0.0
    %1066 = vmatpush1.msra.mxu0 0.0
    %1067 = vmatprep.subr.mxu0 0.0
    %1068 = vmatpush1.msra.mxu0 0.0
    %1069 = vmatprep.subr.mxu0 0.0
    %1070 = vmatpush1.msra.mxu0 0.0
    %1071 = vmatprep.subr.mxu0 0.0
    %1072 = vmatpush1.msra.mxu0 0.0
    %1073 = vmatprep.subr.mxu0 0.0
    %1074 = vmatpush1.msra.mxu0 0.0
    %1075 = vmatprep.subr.mxu0 0.0
    %1076 = vmatpush1.msra.mxu0 0.0
    %1077 = vmatprep.subr.mxu0 0.0
    %1078 = vmatpush1.msra.mxu0 0.0
    %1079 = vmatprep.subr.mxu0 0.0
    %1080 = vmatpush1.msra.mxu0 0.0
    %1081 = vmatprep.subr.mxu0 0.0
    %1082 = vmatpush1.msra.mxu0 0.0
    %1083 = vmatprep.subr.mxu0 0.0
    %1084 = vmatpush1.msra.mxu0 0.0
    %1085 = vmatprep.subr.mxu0 0.0
    %1086 = vmatpush1.msra.mxu0 0.0
    %1087 = vmatprep.subr.mxu0 0.0
    %1088 = vmatpush1.msra.mxu0 0.0
    %1089 = vmatprep.subr.mxu0 0.0
    %1090 = vmatpush1.msra.mxu0 0.0
    %1091 = vmatprep.subr.mxu0 0.0
    %1092 = vmatpush1.msra.mxu0 0.0
    %1093 = vmatprep.mubr.f32.mxu0 0.0
    %1094 = vmatmul.mubr.f32.gmra.mrb[0].mxu0 %v1027
    %v1095 = vpop.f32.mrb[0].mxu0
    %v1096 = vadd.f32 0.0, %v1095
    %v1097 = vpop.f32.mrb[0].mxu0
    %1098 = vdwg.mxu0
    %v1100 = vsel %vm37, %v1096, 0
    %1102 = vmatprep.subr.mxu0 0.0
    %1103 = vmatpush1.msra.mxu0 %v660
    %1104 = vmatprep.subr.mxu0 0.0
    %1105 = vmatpush1.msra.mxu0 0.0
    %1106 = vmatprep.subr.mxu0 0.0
    %1107 = vmatpush1.msra.mxu0 0.0
    %1108 = vmatprep.subr.mxu0 0.0
    %1109 = vmatpush1.msra.mxu0 0.0
    %1110 = vmatprep.subr.mxu0 0.0
    %1111 = vmatpush1.msra.mxu0 0.0
    %1112 = vmatprep.subr.mxu0 0.0
    %1113 = vmatpush1.msra.mxu0 0.0
    %1114 = vmatprep.subr.mxu0 0.0
    %1115 = vmatpush1.msra.mxu0 0.0
    %1116 = vmatprep.subr.mxu0 0.0
    %1117 = vmatpush1.msra.mxu0 0.0
    %1118 = vmatprep.subr.mxu0 0.0
    %1119 = vmatpush1.msra.mxu0 0.0
    %1120 = vmatprep.subr.mxu0 0.0
    %1121 = vmatpush1.msra.mxu0 0.0
    %1122 = vmatprep.subr.mxu0 0.0
    %1123 = vmatpush1.msra.mxu0 0.0
    %1124 = vmatprep.subr.mxu0 0.0
    %1125 = vmatpush1.msra.mxu0 0.0
    %1126 = vmatprep.subr.mxu0 0.0
    %1127 = vmatpush1.msra.mxu0 0.0
    %1128 = vmatprep.subr.mxu0 0.0
    %1129 = vmatpush1.msra.mxu0 0.0
    %1130 = vmatprep.subr.mxu0 0.0
    %1131 = vmatpush1.msra.mxu0 0.0
    %1132 = vmatprep.subr.mxu0 0.0
    %1133 = vmatpush1.msra.mxu0 0.0
    %1134 = vmatprep.subr.mxu0 0.0
    %1135 = vmatpush1.msra.mxu0 0.0
    %1136 = vmatprep.subr.mxu0 0.0
    %1137 = vmatpush1.msra.mxu0 0.0
    %1138 = vmatprep.subr.mxu0 0.0
    %1139 = vmatpush1.msra.mxu0 0.0
    %1140 = vmatprep.subr.mxu0 0.0
    %1141 = vmatpush1.msra.mxu0 0.0
    %1142 = vmatprep.subr.mxu0 0.0
    %1143 = vmatpush1.msra.mxu0 0.0
    %1144 = vmatprep.subr.mxu0 0.0
    %1145 = vmatpush1.msra.mxu0 0.0
    %1146 = vmatprep.subr.mxu0 0.0
    %1147 = vmatpush1.msra.mxu0 0.0
    %1148 = vmatprep.subr.mxu0 0.0
    %1149 = vmatpush1.msra.mxu0 0.0
    %1150 = vmatprep.subr.mxu0 0.0
    %1151 = vmatpush1.msra.mxu0 0.0
    %1152 = vmatprep.subr.mxu0 0.0
    %1153 = vmatpush1.msra.mxu0 0.0
    %1154 = vmatprep.subr.mxu0 0.0
    %1155 = vmatpush1.msra.mxu0 0.0
    %1156 = vmatprep.subr.mxu0 0.0
    %1157 = vmatpush1.msra.mxu0 0.0
    %1158 = vmatprep.subr.mxu0 0.0
    %1159 = vmatpush1.msra.mxu0 0.0
    %1160 = vmatprep.subr.mxu0 0.0
    %1161 = vmatpush1.msra.mxu0 0.0
    %1162 = vmatprep.subr.mxu0 0.0
    %1163 = vmatpush1.msra.mxu0 0.0
    %1164 = vmatprep.subr.mxu0 0.0
    %1165 = vmatpush1.msra.mxu0 0.0
    %1166 = vmatprep.mubr.f32.mxu0 0.0
    %1167 = vmatmul.mubr.f32.gmra.mrb[0].mxu0 %v1100
    %v1168 = vpop.f32.mrb[0].mxu0
    %v1169 = vadd.f32 0.0, %v1168
    %v1170 = vpop.f32.mrb[0].mxu0
    %1171 = vdwg.mxu0
    %v1173 = vsel %vm37, %v1169, 0
    %1175 = vmatprep.subr.mxu0 0.0
    %1176 = vmatpush1.msra.mxu0 %v661
    %1177 = vmatprep.subr.mxu0 0.0
    %1178 = vmatpush1.msra.mxu0 0.0
    %1179 = vmatprep.subr.mxu0 0.0
    %1180 = vmatpush1.msra.mxu0 0.0
    %1181 = vmatprep.subr.mxu0 0.0
    %1182 = vmatpush1.msra.mxu0 0.0
    %1183 = vmatprep.subr.mxu0 0.0
    %1184 = vmatpush1.msra.mxu0 0.0
    %1185 = vmatprep.subr.mxu0 0.0
    %1186 = vmatpush1.msra.mxu0 0.0
    %1187 = vmatprep.subr.mxu0 0.0
    %1188 = vmatpush1.msra.mxu0 0.0
    %1189 = vmatprep.subr.mxu0 0.0
    %1190 = vmatpush1.msra.mxu0 0.0
    %1191 = vmatprep.subr.mxu0 0.0
    %1192 = vmatpush1.msra.mxu0 0.0
    %1193 = vmatprep.subr.mxu0 0.0
    %1194 = vmatpush1.msra.mxu0 0.0
    %1195 = vmatprep.subr.mxu0 0.0
    %1196 = vmatpush1.msra.mxu0 0.0
    %1197 = vmatprep.subr.mxu0 0.0
    %1198 = vmatpush1.msra.mxu0 0.0
    %1199 = vmatprep.subr.mxu0 0.0
    %1200 = vmatpush1.msra.mxu0 0.0
    %1201 = vmatprep.subr.mxu0 0.0
    %1202 = vmatpush1.msra.mxu0 0.0
    %1203 = vmatprep.subr.mxu0 0.0
    %1204 = vmatpush1.msra.mxu0 0.0
    %1205 = vmatprep.subr.mxu0 0.0
    %1206 = vmatpush1.msra.mxu0 0.0
    %1207 = vmatprep.subr.mxu0 0.0
    %1208 = vmatpush1.msra.mxu0 0.0
    %1209 = vmatprep.subr.mxu0 0.0
    %1210 = vmatpush1.msra.mxu0 0.0
    %1211 = vmatprep.subr.mxu0 0.0
    %1212 = vmatpush1.msra.mxu0 0.0
    %1213 = vmatprep.subr.mxu0 0.0
    %1214 = vmatpush1.msra.mxu0 0.0
    %1215 = vmatprep.subr.mxu0 0.0
    %1216 = vmatpush1.msra.mxu0 0.0
    %1217 = vmatprep.subr.mxu0 0.0
    %1218 = vmatpush1.msra.mxu0 0.0
    %1219 = vmatprep.subr.mxu0 0.0
    %1220 = vmatpush1.msra.mxu0 0.0
    %1221 = vmatprep.subr.mxu0 0.0
    %1222 = vmatpush1.msra.mxu0 0.0
    %1223 = vmatprep.subr.mxu0 0.0
    %1224 = vmatpush1.msra.mxu0 0.0
    %1225 = vmatprep.subr.mxu0 0.0
    %1226 = vmatpush1.msra.mxu0 0.0
    %1227 = vmatprep.subr.mxu0 0.0
    %1228 = vmatpush1.msra.mxu0 0.0
    %1229 = vmatprep.subr.mxu0 0.0
    %1230 = vmatpush1.msra.mxu0 0.0
    %1231 = vmatprep.subr.mxu0 0.0
    %1232 = vmatpush1.msra.mxu0 0.0
    %1233 = vmatprep.subr.mxu0 0.0
    %1234 = vmatpush1.msra.mxu0 0.0
    %1235 = vmatprep.subr.mxu0 0.0
    %1236 = vmatpush1.msra.mxu0 0.0
    %1237 = vmatprep.subr.mxu0 0.0
    %1238 = vmatpush1.msra.mxu0 0.0
    %1239 = vmatprep.mubr.f32.mxu0 0.0
    %1240 = vmatmul.mubr.f32.gmra.mrb[0].mxu0 %v1173
    %v1241 = vpop.f32.mrb[0].mxu0
    %v1242 = vadd.f32 0.0, %v1241
    %v1243 = vpop.f32.mrb[0].mxu0
    %1244 = vdwg.mxu0
    %v1245 = vrot.slane %v804, 7
    %v1247 = vrot.slane %v877, 6
    %v1249 = vrot.slane %v950, 5
    %v1251 = vrot.slane %v1023, 4
    %v1253 = vrot.slane %v1096, 3
    %v1255 = vrot.slane %v1169, 2
    %v1258 = vrot.slane %v1242, 1
    %v1260 = vsel %vm637, %v731, %v1245
    %v1261 = vsel %vm639, %v1260, %v1247
    %v1262 = vsel %vm641, %v1261, %v1249
    %v1263 = vsel %vm643, %v1262, %v1251
    %v1264 = vsel %vm645, %v1263, %v1253
    %v1265 = vsel %vm647, %v1264, %v1255
    %v1266 = vsel %vm649, %v1265, %v1258
    %s1267 = scalar_lea.vmem [#allocation5], 8
    %1268 = vst [vmem:[%s1267] sm:$0xff] %v1266
    %s1269 = smul.u32 16, 8
    %s1270 = scalar_lea.vmem [#allocation2], %s1269
    %v1271 = vld [vmem:[%s1270] sm:$0xff]
    %v1272 = vld [vmem:[%s1270 + $0x8] sm:$0xff]
    %v1273 = vld [vmem:[%s1270 + $0x10] sm:$0xff]
    %v1274 = vld [vmem:[%s1270 + $0x18] sm:$0xff]
    %v1275 = vld [vmem:[%s1270 + $0x20] sm:$0xff]
    %v1276 = vld [vmem:[%s1270 + $0x28] sm:$0xff]
    %v1277 = vld [vmem:[%s1270 + $0x30] sm:$0xff]
    %v1278 = vld [vmem:[%s1270 + $0x38] sm:$0xff]
    %v1279 = vsel %vm37, %v1242, 0
    %1281 = vmatprep.subr.mxu0 0.0
    %1282 = vmatpush1.msra.mxu0 %v1271
    %1283 = vmatprep.subr.mxu0 0.0
    %1284 = vmatpush1.msra.mxu0 0.0
    %1285 = vmatprep.subr.mxu0 0.0
    %1286 = vmatpush1.msra.mxu0 0.0
    %1287 = vmatprep.subr.mxu0 0.0
    %1288 = vmatpush1.msra.mxu0 0.0
    %1289 = vmatprep.subr.mxu0 0.0
    %1290 = vmatpush1.msra.mxu0 0.0
    %1291 = vmatprep.subr.mxu0 0.0
    %1292 = vmatpush1.msra.mxu0 0.0
    %1293 = vmatprep.subr.mxu0 0.0
    %1294 = vmatpush1.msra.mxu0 0.0
    %1295 = vmatprep.subr.mxu0 0.0
    %1296 = vmatpush1.msra.mxu0 0.0
    %1297 = vmatprep.subr.mxu0 0.0
    %1298 = vmatpush1.msra.mxu0 0.0
    %1299 = vmatprep.subr.mxu0 0.0
    %1300 = vmatpush1.msra.mxu0 0.0
    %1301 = vmatprep.subr.mxu0 0.0
    %1302 = vmatpush1.msra.mxu0 0.0
    %1303 = vmatprep.subr.mxu0 0.0
    %1304 = vmatpush1.msra.mxu0 0.0
    %1305 = vmatprep.subr.mxu0 0.0
    %1306 = vmatpush1.msra.mxu0 0.0
    %1307 = vmatprep.subr.mxu0 0.0
    %1308 = vmatpush1.msra.mxu0 0.0
    %1309 = vmatprep.subr.mxu0 0.0
    %1310 = vmatpush1.msra.mxu0 0.0
    %1311 = vmatprep.subr.mxu0 0.0
    %1312 = vmatpush1.msra.mxu0 0.0
    %1313 = vmatprep.subr.mxu0 0.0
    %1314 = vmatpush1.msra.mxu0 0.0
    %1315 = vmatprep.subr.mxu0 0.0
    %1316 = vmatpush1.msra.mxu0 0.0
    %1317 = vmatprep.subr.mxu0 0.0
    %1318 = vmatpush1.msra.mxu0 0.0
    %1319 = vmatprep.subr.mxu0 0.0
    %1320 = vmatpush1.msra.mxu0 0.0
    %1321 = vmatprep.subr.mxu0 0.0
    %1322 = vmatpush1.msra.mxu0 0.0
    %1323 = vmatprep.subr.mxu0 0.0
    %1324 = vmatpush1.msra.mxu0 0.0
    %1325 = vmatprep.subr.mxu0 0.0
    %1326 = vmatpush1.msra.mxu0 0.0
    %1327 = vmatprep.subr.mxu0 0.0
    %1328 = vmatpush1.msra.mxu0 0.0
    %1329 = vmatprep.subr.mxu0 0.0
    %1330 = vmatpush1.msra.mxu0 0.0
    %1331 = vmatprep.subr.mxu0 0.0
    %1332 = vmatpush1.msra.mxu0 0.0
    %1333 = vmatprep.subr.mxu0 0.0
    %1334 = vmatpush1.msra.mxu0 0.0
    %1335 = vmatprep.subr.mxu0 0.0
    %1336 = vmatpush1.msra.mxu0 0.0
    %1337 = vmatprep.subr.mxu0 0.0
    %1338 = vmatpush1.msra.mxu0 0.0
    %1339 = vmatprep.subr.mxu0 0.0
    %1340 = vmatpush1.msra.mxu0 0.0
    %1341 = vmatprep.subr.mxu0 0.0
    %1342 = vmatpush1.msra.mxu0 0.0
    %1343 = vmatprep.subr.mxu0 0.0
    %1344 = vmatpush1.msra.mxu0 0.0
    %1345 = vmatprep.mubr.f32.mxu0 0.0
    %1346 = vmatmul.mubr.f32.gmra.mrb[0].mxu0 %v1279
    %v1347 = vpop.f32.mrb[0].mxu0
    %v1348 = vadd.f32 0.0, %v1347
    %v1349 = vpop.f32.mrb[0].mxu0
    %1350 = vdwg.mxu0
    %v1352 = vsel %vm37, %v1348, 0
    %1354 = vmatprep.subr.mxu0 0.0
    %1355 = vmatpush1.msra.mxu0 %v1272
    %1356 = vmatprep.subr.mxu0 0.0
    %1357 = vmatpush1.msra.mxu0 0.0
    %1358 = vmatprep.subr.mxu0 0.0
    %1359 = vmatpush1.msra.mxu0 0.0
    %1360 = vmatprep.subr.mxu0 0.0
    %1361 = vmatpush1.msra.mxu0 0.0
    %1362 = vmatprep.subr.mxu0 0.0
    %1363 = vmatpush1.msra.mxu0 0.0
    %1364 = vmatprep.subr.mxu0 0.0
    %1365 = vmatpush1.msra.mxu0 0.0
    %1366 = vmatprep.subr.mxu0 0.0
    %1367 = vmatpush1.msra.mxu0 0.0
    %1368 = vmatprep.subr.mxu0 0.0
    %1369 = vmatpush1.msra.mxu0 0.0
    %1370 = vmatprep.subr.mxu0 0.0
    %1371 = vmatpush1.msra.mxu0 0.0
    %1372 = vmatprep.subr.mxu0 0.0
    %1373 = vmatpush1.msra.mxu0 0.0
    %1374 = vmatprep.subr.mxu0 0.0
    %1375 = vmatpush1.msra.mxu0 0.0
    %1376 = vmatprep.subr.mxu0 0.0
    %1377 = vmatpush1.msra.mxu0 0.0
    %1378 = vmatprep.subr.mxu0 0.0
    %1379 = vmatpush1.msra.mxu0 0.0
    %1380 = vmatprep.subr.mxu0 0.0
    %1381 = vmatpush1.msra.mxu0 0.0
    %1382 = vmatprep.subr.mxu0 0.0
    %1383 = vmatpush1.msra.mxu0 0.0
    %1384 = vmatprep.subr.mxu0 0.0
    %1385 = vmatpush1.msra.mxu0 0.0
    %1386 = vmatprep.subr.mxu0 0.0
    %1387 = vmatpush1.msra.mxu0 0.0
    %1388 = vmatprep.subr.mxu0 0.0
    %1389 = vmatpush1.msra.mxu0 0.0
    %1390 = vmatprep.subr.mxu0 0.0
    %1391 = vmatpush1.msra.mxu0 0.0
    %1392 = vmatprep.subr.mxu0 0.0
    %1393 = vmatpush1.msra.mxu0 0.0
    %1394 = vmatprep.subr.mxu0 0.0
    %1395 = vmatpush1.msra.mxu0 0.0
    %1396 = vmatprep.subr.mxu0 0.0
    %1397 = vmatpush1.msra.mxu0 0.0
    %1398 = vmatprep.subr.mxu0 0.0
    %1399 = vmatpush1.msra.mxu0 0.0
    %1400 = vmatprep.subr.mxu0 0.0
    %1401 = vmatpush1.msra.mxu0 0.0
    %1402 = vmatprep.subr.mxu0 0.0
    %1403 = vmatpush1.msra.mxu0 0.0
    %1404 = vmatprep.subr.mxu0 0.0
    %1405 = vmatpush1.msra.mxu0 0.0
    %1406 = vmatprep.subr.mxu0 0.0
    %1407 = vmatpush1.msra.mxu0 0.0
    %1408 = vmatprep.subr.mxu0 0.0
    %1409 = vmatpush1.msra.mxu0 0.0
    %1410 = vmatprep.subr.mxu0 0.0
    %1411 = vmatpush1.msra.mxu0 0.0
    %1412 = vmatprep.subr.mxu0 0.0
    %1413 = vmatpush1.msra.mxu0 0.0
    %1414 = vmatprep.subr.mxu0 0.0
    %1415 = vmatpush1.msra.mxu0 0.0
    %1416 = vmatprep.subr.mxu0 0.0
    %1417 = vmatpush1.msra.mxu0 0.0
    %1418 = vmatprep.mubr.f32.mxu0 0.0
    %1419 = vmatmul.mubr.f32.gmra.mrb[0].mxu0 %v1352
    %v1420 = vpop.f32.mrb[0].mxu0
    %v1421 = vadd.f32 0.0, %v1420
    %v1422 = vpop.f32.mrb[0].mxu0
    %1423 = vdwg.mxu0
    %v1425 = vsel %vm37, %v1421, 0
    %1427 = vmatprep.subr.mxu0 0.0
    %1428 = vmatpush1.msra.mxu0 %v1273
    %1429 = vmatprep.subr.mxu0 0.0
    %1430 = vmatpush1.msra.mxu0 0.0
    %1431 = vmatprep.subr.mxu0 0.0
    %1432 = vmatpush1.msra.mxu0 0.0
    %1433 = vmatprep.subr.mxu0 0.0
    %1434 = vmatpush1.msra.mxu0 0.0
    %1435 = vmatprep.subr.mxu0 0.0
    %1436 = vmatpush1.msra.mxu0 0.0
    %1437 = vmatprep.subr.mxu0 0.0
    %1438 = vmatpush1.msra.mxu0 0.0
    %1439 = vmatprep.subr.mxu0 0.0
    %1440 = vmatpush1.msra.mxu0 0.0
    %1441 = vmatprep.subr.mxu0 0.0
    %1442 = vmatpush1.msra.mxu0 0.0
    %1443 = vmatprep.subr.mxu0 0.0
    %1444 = vmatpush1.msra.mxu0 0.0
    %1445 = vmatprep.subr.mxu0 0.0
    %1446 = vmatpush1.msra.mxu0 0.0
    %1447 = vmatprep.subr.mxu0 0.0
    %1448 = vmatpush1.msra.mxu0 0.0
    %1449 = vmatprep.subr.mxu0 0.0
    %1450 = vmatpush1.msra.mxu0 0.0
    %1451 = vmatprep.subr.mxu0 0.0
    %1452 = vmatpush1.msra.mxu0 0.0
    %1453 = vmatprep.subr.mxu0 0.0
    %1454 = vmatpush1.msra.mxu0 0.0
    %1455 = vmatprep.subr.mxu0 0.0
    %1456 = vmatpush1.msra.mxu0 0.0
    %1457 = vmatprep.subr.mxu0 0.0
    %1458 = vmatpush1.msra.mxu0 0.0
    %1459 = vmatprep.subr.mxu0 0.0
    %1460 = vmatpush1.msra.mxu0 0.0
    %1461 = vmatprep.subr.mxu0 0.0
    %1462 = vmatpush1.msra.mxu0 0.0
    %1463 = vmatprep.subr.mxu0 0.0
    %1464 = vmatpush1.msra.mxu0 0.0
    %1465 = vmatprep.subr.mxu0 0.0
    %1466 = vmatpush1.msra.mxu0 0.0
    %1467 = vmatprep.subr.mxu0 0.0
    %1468 = vmatpush1.msra.mxu0 0.0
    %1469 = vmatprep.subr.mxu0 0.0
    %1470 = vmatpush1.msra.mxu0 0.0
    %1471 = vmatprep.subr.mxu0 0.0
    %1472 = vmatpush1.msra.mxu0 0.0
    %1473 = vmatprep.subr.mxu0 0.0
    %1474 = vmatpush1.msra.mxu0 0.0
    %1475 = vmatprep.subr.mxu0 0.0
    %1476 = vmatpush1.msra.mxu0 0.0
    %1477 = vmatprep.subr.mxu0 0.0
    %1478 = vmatpush1.msra.mxu0 0.0
    %1479 = vmatprep.subr.mxu0 0.0
    %1480 = vmatpush1.msra.mxu0 0.0
    %1481 = vmatprep.subr.mxu0 0.0
    %1482 = vmatpush1.msra.mxu0 0.0
    %1483 = vmatprep.subr.mxu0 0.0
    %1484 = vmatpush1.msra.mxu0 0.0
    %1485 = vmatprep.subr.mxu0 0.0
    %1486 = vmatpush1.msra.mxu0 0.0
    %1487 = vmatprep.subr.mxu0 0.0
    %1488 = vmatpush1.msra.mxu0 0.0
    %1489 = vmatprep.subr.mxu0 0.0
    %1490 = vmatpush1.msra.mxu0 0.0
    %1491 = vmatprep.mubr.f32.mxu0 0.0
    %1492 = vmatmul.mubr.f32.gmra.mrb[0].mxu0 %v1425
    %v1493 = vpop.f32.mrb[0].mxu0
    %v1494 = vadd.f32 0.0, %v1493
    %v1495 = vpop.f32.mrb[0].mxu0
    %1496 = vdwg.mxu0
    %v1498 = vsel %vm37, %v1494, 0
    %1500 = vmatprep.subr.mxu0 0.0
    %1501 = vmatpush1.msra.mxu0 %v1274
    %1502 = vmatprep.subr.mxu0 0.0
    %1503 = vmatpush1.msra.mxu0 0.0
    %1504 = vmatprep.subr.mxu0 0.0
    %1505 = vmatpush1.msra.mxu0 0.0
    %1506 = vmatprep.subr.mxu0 0.0
    %1507 = vmatpush1.msra.mxu0 0.0
    %1508 = vmatprep.subr.mxu0 0.0
    %1509 = vmatpush1.msra.mxu0 0.0
    %1510 = vmatprep.subr.mxu0 0.0
    %1511 = vmatpush1.msra.mxu0 0.0
    %1512 = vmatprep.subr.mxu0 0.0
    %1513 = vmatpush1.msra.mxu0 0.0
    %1514 = vmatprep.subr.mxu0 0.0
    %1515 = vmatpush1.msra.mxu0 0.0
    %1516 = vmatprep.subr.mxu0 0.0
    %1517 = vmatpush1.msra.mxu0 0.0
    %1518 = vmatprep.subr.mxu0 0.0
    %1519 = vmatpush1.msra.mxu0 0.0
    %1520 = vmatprep.subr.mxu0 0.0
    %1521 = vmatpush1.msra.mxu0 0.0
    %1522 = vmatprep.subr.mxu0 0.0
    %1523 = vmatpush1.msra.mxu0 0.0
    %1524 = vmatprep.subr.mxu0 0.0
    %1525 = vmatpush1.msra.mxu0 0.0
    %1526 = vmatprep.subr.mxu0 0.0
    %1527 = vmatpush1.msra.mxu0 0.0
    %1528 = vmatprep.subr.mxu0 0.0
    %1529 = vmatpush1.msra.mxu0 0.0
    %1530 = vmatprep.subr.mxu0 0.0
    %1531 = vmatpush1.msra.mxu0 0.0
    %1532 = vmatprep.subr.mxu0 0.0
    %1533 = vmatpush1.msra.mxu0 0.0
    %1534 = vmatprep.subr.mxu0 0.0
    %1535 = vmatpush1.msra.mxu0 0.0
    %1536 = vmatprep.subr.mxu0 0.0
    %1537 = vmatpush1.msra.mxu0 0.0
    %1538 = vmatprep.subr.mxu0 0.0
    %1539 = vmatpush1.msra.mxu0 0.0
    %1540 = vmatprep.subr.mxu0 0.0
    %1541 = vmatpush1.msra.mxu0 0.0
    %1542 = vmatprep.subr.mxu0 0.0
    %1543 = vmatpush1.msra.mxu0 0.0
    %1544 = vmatprep.subr.mxu0 0.0
    %1545 = vmatpush1.msra.mxu0 0.0
    %1546 = vmatprep.subr.mxu0 0.0
    %1547 = vmatpush1.msra.mxu0 0.0
    %1548 = vmatprep.subr.mxu0 0.0
    %1549 = vmatpush1.msra.mxu0 0.0
    %1550 = vmatprep.subr.mxu0 0.0
    %1551 = vmatpush1.msra.mxu0 0.0
    %1552 = vmatprep.subr.mxu0 0.0
    %1553 = vmatpush1.msra.mxu0 0.0
    %1554 = vmatprep.subr.mxu0 0.0
    %1555 = vmatpush1.msra.mxu0 0.0
    %1556 = vmatprep.subr.mxu0 0.0
    %1557 = vmatpush1.msra.mxu0 0.0
    %1558 = vmatprep.subr.mxu0 0.0
    %1559 = vmatpush1.msra.mxu0 0.0
    %1560 = vmatprep.subr.mxu0 0.0
    %1561 = vmatpush1.msra.mxu0 0.0
    %1562 = vmatprep.subr.mxu0 0.0
    %1563 = vmatpush1.msra.mxu0 0.0
    %1564 = vmatprep.mubr.f32.mxu0 0.0
    %1565 = vmatmul.mubr.f32.gmra.mrb[0].mxu0 %v1498
    %v1566 = vpop.f32.mrb[0].mxu0
    %v1567 = vadd.f32 0.0, %v1566
    %v1568 = vpop.f32.mrb[0].mxu0
    %1569 = vdwg.mxu0
    %v1571 = vsel %vm37, %v1567, 0
    %1573 = vmatprep.subr.mxu0 0.0
    %1574 = vmatpush1.msra.mxu0 %v1275
    %1575 = vmatprep.subr.mxu0 0.0
    %1576 = vmatpush1.msra.mxu0 0.0
    %1577 = vmatprep.subr.mxu0 0.0
    %1578 = vmatpush1.msra.mxu0 0.0
    %1579 = vmatprep.subr.mxu0 0.0
    %1580 = vmatpush1.msra.mxu0 0.0
    %1581 = vmatprep.subr.mxu0 0.0
    %1582 = vmatpush1.msra.mxu0 0.0
    %1583 = vmatprep.subr.mxu0 0.0
    %1584 = vmatpush1.msra.mxu0 0.0
    %1585 = vmatprep.subr.mxu0 0.0
    %1586 = vmatpush1.msra.mxu0 0.0
    %1587 = vmatprep.subr.mxu0 0.0
    %1588 = vmatpush1.msra.mxu0 0.0
    %1589 = vmatprep.subr.mxu0 0.0
    %1590 = vmatpush1.msra.mxu0 0.0
    %1591 = vmatprep.subr.mxu0 0.0
    %1592 = vmatpush1.msra.mxu0 0.0
    %1593 = vmatprep.subr.mxu0 0.0
    %1594 = vmatpush1.msra.mxu0 0.0
    %1595 = vmatprep.subr.mxu0 0.0
    %1596 = vmatpush1.msra.mxu0 0.0
    %1597 = vmatprep.subr.mxu0 0.0
    %1598 = vmatpush1.msra.mxu0 0.0
    %1599 = vmatprep.subr.mxu0 0.0
    %1600 = vmatpush1.msra.mxu0 0.0
    %1601 = vmatprep.subr.mxu0 0.0
    %1602 = vmatpush1.msra.mxu0 0.0
    %1603 = vmatprep.subr.mxu0 0.0
    %1604 = vmatpush1.msra.mxu0 0.0
    %1605 = vmatprep.subr.mxu0 0.0
    %1606 = vmatpush1.msra.mxu0 0.0
    %1607 = vmatprep.subr.mxu0 0.0
    %1608 = vmatpush1.msra.mxu0 0.0
    %1609 = vmatprep.subr.mxu0 0.0
    %1610 = vmatpush1.msra.mxu0 0.0
    %1611 = vmatprep.subr.mxu0 0.0
    %1612 = vmatpush1.msra.mxu0 0.0
    %1613 = vmatprep.subr.mxu0 0.0
    %1614 = vmatpush1.msra.mxu0 0.0
    %1615 = vmatprep.subr.mxu0 0.0
    %1616 = vmatpush1.msra.mxu0 0.0
    %1617 = vmatprep.subr.mxu0 0.0
    %1618 = vmatpush1.msra.mxu0 0.0
    %1619 = vmatprep.subr.mxu0 0.0
    %1620 = vmatpush1.msra.mxu0 0.0
    %1621 = vmatprep.subr.mxu0 0.0
    %1622 = vmatpush1.msra.mxu0 0.0
    %1623 = vmatprep.subr.mxu0 0.0
    %1624 = vmatpush1.msra.mxu0 0.0
    %1625 = vmatprep.subr.mxu0 0.0
    %1626 = vmatpush1.msra.mxu0 0.0
    %1627 = vmatprep.subr.mxu0 0.0
    %1628 = vmatpush1.msra.mxu0 0.0
    %1629 = vmatprep.subr.mxu0 0.0
    %1630 = vmatpush1.msra.mxu0 0.0
    %1631 = vmatprep.subr.mxu0 0.0
    %1632 = vmatpush1.msra.mxu0 0.0
    %1633 = vmatprep.subr.mxu0 0.0
    %1634 = vmatpush1.msra.mxu0 0.0
    %1635 = vmatprep.subr.mxu0 0.0
    %1636 = vmatpush1.msra.mxu0 0.0
    %1637 = vmatprep.mubr.f32.mxu0 0.0
    %1638 = vmatmul.mubr.f32.gmra.mrb[0].mxu0 %v1571
    %v1639 = vpop.f32.mrb[0].mxu0
    %v1640 = vadd.f32 0.0, %v1639
    %v1641 = vpop.f32.mrb[0].mxu0
    %1642 = vdwg.mxu0
    %v1644 = vsel %vm37, %v1640, 0
    %1646 = vmatprep.subr.mxu0 0.0
    %1647 = vmatpush1.msra.mxu0 %v1276
    %1648 = vmatprep.subr.mxu0 0.0
    %1649 = vmatpush1.msra.mxu0 0.0
    %1650 = vmatprep.subr.mxu0 0.0
    %1651 = vmatpush1.msra.mxu0 0.0
    %1652 = vmatprep.subr.mxu0 0.0
    %1653 = vmatpush1.msra.mxu0 0.0
    %1654 = vmatprep.subr.mxu0 0.0
    %1655 = vmatpush1.msra.mxu0 0.0
    %1656 = vmatprep.subr.mxu0 0.0
    %1657 = vmatpush1.msra.mxu0 0.0
    %1658 = vmatprep.subr.mxu0 0.0
    %1659 = vmatpush1.msra.mxu0 0.0
    %1660 = vmatprep.subr.mxu0 0.0
    %1661 = vmatpush1.msra.mxu0 0.0
    %1662 = vmatprep.subr.mxu0 0.0
    %1663 = vmatpush1.msra.mxu0 0.0
    %1664 = vmatprep.subr.mxu0 0.0
    %1665 = vmatpush1.msra.mxu0 0.0
    %1666 = vmatprep.subr.mxu0 0.0
    %1667 = vmatpush1.msra.mxu0 0.0
    %1668 = vmatprep.subr.mxu0 0.0
    %1669 = vmatpush1.msra.mxu0 0.0
    %1670 = vmatprep.subr.mxu0 0.0
    %1671 = vmatpush1.msra.mxu0 0.0
    %1672 = vmatprep.subr.mxu0 0.0
    %1673 = vmatpush1.msra.mxu0 0.0
    %1674 = vmatprep.subr.mxu0 0.0
    %1675 = vmatpush1.msra.mxu0 0.0
    %1676 = vmatprep.subr.mxu0 0.0
    %1677 = vmatpush1.msra.mxu0 0.0
    %1678 = vmatprep.subr.mxu0 0.0
    %1679 = vmatpush1.msra.mxu0 0.0
    %1680 = vmatprep.subr.mxu0 0.0
    %1681 = vmatpush1.msra.mxu0 0.0
    %1682 = vmatprep.subr.mxu0 0.0
    %1683 = vmatpush1.msra.mxu0 0.0
    %1684 = vmatprep.subr.mxu0 0.0
    %1685 = vmatpush1.msra.mxu0 0.0
    %1686 = vmatprep.subr.mxu0 0.0
    %1687 = vmatpush1.msra.mxu0 0.0
    %1688 = vmatprep.subr.mxu0 0.0
    %1689 = vmatpush1.msra.mxu0 0.0
    %1690 = vmatprep.subr.mxu0 0.0
    %1691 = vmatpush1.msra.mxu0 0.0
    %1692 = vmatprep.subr.mxu0 0.0
    %1693 = vmatpush1.msra.mxu0 0.0
    %1694 = vmatprep.subr.mxu0 0.0
    %1695 = vmatpush1.msra.mxu0 0.0
    %1696 = vmatprep.subr.mxu0 0.0
    %1697 = vmatpush1.msra.mxu0 0.0
    %1698 = vmatprep.subr.mxu0 0.0
    %1699 = vmatpush1.msra.mxu0 0.0
    %1700 = vmatprep.subr.mxu0 0.0
    %1701 = vmatpush1.msra.mxu0 0.0
    %1702 = vmatprep.subr.mxu0 0.0
    %1703 = vmatpush1.msra.mxu0 0.0
    %1704 = vmatprep.subr.mxu0 0.0
    %1705 = vmatpush1.msra.mxu0 0.0
    %1706 = vmatprep.subr.mxu0 0.0
    %1707 = vmatpush1.msra.mxu0 0.0
    %1708 = vmatprep.subr.mxu0 0.0
    %1709 = vmatpush1.msra.mxu0 0.0
    %1710 = vmatprep.mubr.f32.mxu0 0.0
    %1711 = vmatmul.mubr.f32.gmra.mrb[0].mxu0 %v1644
    %v1712 = vpop.f32.mrb[0].mxu0
    %v1713 = vadd.f32 0.0, %v1712
    %v1714 = vpop.f32.mrb[0].mxu0
    %1715 = vdwg.mxu0
    %v1717 = vsel %vm37, %v1713, 0
    %1719 = vmatprep.subr.mxu0 0.0
    %1720 = vmatpush1.msra.mxu0 %v1277
    %1721 = vmatprep.subr.mxu0 0.0
    %1722 = vmatpush1.msra.mxu0 0.0
    %1723 = vmatprep.subr.mxu0 0.0
    %1724 = vmatpush1.msra.mxu0 0.0
    %1725 = vmatprep.subr.mxu0 0.0
    %1726 = vmatpush1.msra.mxu0 0.0
    %1727 = vmatprep.subr.mxu0 0.0
    %1728 = vmatpush1.msra.mxu0 0.0
    %1729 = vmatprep.subr.mxu0 0.0
    %1730 = vmatpush1.msra.mxu0 0.0
    %1731 = vmatprep.subr.mxu0 0.0
    %1732 = vmatpush1.msra.mxu0 0.0
    %1733 = vmatprep.subr.mxu0 0.0
    %1734 = vmatpush1.msra.mxu0 0.0
    %1735 = vmatprep.subr.mxu0 0.0
    %1736 = vmatpush1.msra.mxu0 0.0
    %1737 = vmatprep.subr.mxu0 0.0
    %1738 = vmatpush1.msra.mxu0 0.0
    %1739 = vmatprep.subr.mxu0 0.0
    %1740 = vmatpush1.msra.mxu0 0.0
    %1741 = vmatprep.subr.mxu0 0.0
    %1742 = vmatpush1.msra.mxu0 0.0
    %1743 = vmatprep.subr.mxu0 0.0
    %1744 = vmatpush1.msra.mxu0 0.0
    %1745 = vmatprep.subr.mxu0 0.0
    %1746 = vmatpush1.msra.mxu0 0.0
    %1747 = vmatprep.subr.mxu0 0.0
    %1748 = vmatpush1.msra.mxu0 0.0
    %1749 = vmatprep.subr.mxu0 0.0
    %1750 = vmatpush1.msra.mxu0 0.0
    %1751 = vmatprep.subr.mxu0 0.0
    %1752 = vmatpush1.msra.mxu0 0.0
    %1753 = vmatprep.subr.mxu0 0.0
    %1754 = vmatpush1.msra.mxu0 0.0
    %1755 = vmatprep.subr.mxu0 0.0
    %1756 = vmatpush1.msra.mxu0 0.0
    %1757 = vmatprep.subr.mxu0 0.0
    %1758 = vmatpush1.msra.mxu0 0.0
    %1759 = vmatprep.subr.mxu0 0.0
    %1760 = vmatpush1.msra.mxu0 0.0
    %1761 = vmatprep.subr.mxu0 0.0
    %1762 = vmatpush1.msra.mxu0 0.0
    %1763 = vmatprep.subr.mxu0 0.0
    %1764 = vmatpush1.msra.mxu0 0.0
    %1765 = vmatprep.subr.mxu0 0.0
    %1766 = vmatpush1.msra.mxu0 0.0
    %1767 = vmatprep.subr.mxu0 0.0
    %1768 = vmatpush1.msra.mxu0 0.0
    %1769 = vmatprep.subr.mxu0 0.0
    %1770 = vmatpush1.msra.mxu0 0.0
    %1771 = vmatprep.subr.mxu0 0.0
    %1772 = vmatpush1.msra.mxu0 0.0
    %1773 = vmatprep.subr.mxu0 0.0
    %1774 = vmatpush1.msra.mxu0 0.0
    %1775 = vmatprep.subr.mxu0 0.0
    %1776 = vmatpush1.msra.mxu0 0.0
    %1777 = vmatprep.subr.mxu0 0.0
    %1778 = vmatpush1.msra.mxu0 0.0
    %1779 = vmatprep.subr.mxu0 0.0
    %1780 = vmatpush1.msra.mxu0 0.0
    %1781 = vmatprep.subr.mxu0 0.0
    %1782 = vmatpush1.msra.mxu0 0.0
    %1783 = vmatprep.mubr.f32.mxu0 0.0
    %1784 = vmatmul.mubr.f32.gmra.mrb[0].mxu0 %v1717
    %v1785 = vpop.f32.mrb[0].mxu0
    %v1786 = vadd.f32 0.0, %v1785
    %v1787 = vpop.f32.mrb[0].mxu0
    %1788 = vdwg.mxu0
    %v1790 = vsel %vm37, %v1786, 0
    %1792 = vmatprep.subr.mxu0 0.0
    %1793 = vmatpush1.msra.mxu0 %v1278
    %1794 = vmatprep.subr.mxu0 0.0
    %1795 = vmatpush1.msra.mxu0 0.0
    %1796 = vmatprep.subr.mxu0 0.0
    %1797 = vmatpush1.msra.mxu0 0.0
    %1798 = vmatprep.subr.mxu0 0.0
    %1799 = vmatpush1.msra.mxu0 0.0
    %1800 = vmatprep.subr.mxu0 0.0
    %1801 = vmatpush1.msra.mxu0 0.0
    %1802 = vmatprep.subr.mxu0 0.0
    %1803 = vmatpush1.msra.mxu0 0.0
    %1804 = vmatprep.subr.mxu0 0.0
    %1805 = vmatpush1.msra.mxu0 0.0
    %1806 = vmatprep.subr.mxu0 0.0
    %1807 = vmatpush1.msra.mxu0 0.0
    %1808 = vmatprep.subr.mxu0 0.0
    %1809 = vmatpush1.msra.mxu0 0.0
    %1810 = vmatprep.subr.mxu0 0.0
    %1811 = vmatpush1.msra.mxu0 0.0
    %1812 = vmatprep.subr.mxu0 0.0
    %1813 = vmatpush1.msra.mxu0 0.0
    %1814 = vmatprep.subr.mxu0 0.0
    %1815 = vmatpush1.msra.mxu0 0.0
    %1816 = vmatprep.subr.mxu0 0.0
    %1817 = vmatpush1.msra.mxu0 0.0
    %1818 = vmatprep.subr.mxu0 0.0
    %1819 = vmatpush1.msra.mxu0 0.0
    %1820 = vmatprep.subr.mxu0 0.0
    %1821 = vmatpush1.msra.mxu0 0.0
    %1822 = vmatprep.subr.mxu0 0.0
    %1823 = vmatpush1.msra.mxu0 0.0
    %1824 = vmatprep.subr.mxu0 0.0
    %1825 = vmatpush1.msra.mxu0 0.0
    %1826 = vmatprep.subr.mxu0 0.0
    %1827 = vmatpush1.msra.mxu0 0.0
    %1828 = vmatprep.subr.mxu0 0.0
    %1829 = vmatpush1.msra.mxu0 0.0
    %1830 = vmatprep.subr.mxu0 0.0
    %1831 = vmatpush1.msra.mxu0 0.0
    %1832 = vmatprep.subr.mxu0 0.0
    %1833 = vmatpush1.msra.mxu0 0.0
    %1834 = vmatprep.subr.mxu0 0.0
    %1835 = vmatpush1.msra.mxu0 0.0
    %1836 = vmatprep.subr.mxu0 0.0
    %1837 = vmatpush1.msra.mxu0 0.0
    %1838 = vmatprep.subr.mxu0 0.0
    %1839 = vmatpush1.msra.mxu0 0.0
    %1840 = vmatprep.subr.mxu0 0.0
    %1841 = vmatpush1.msra.mxu0 0.0
    %1842 = vmatprep.subr.mxu0 0.0
    %1843 = vmatpush1.msra.mxu0 0.0
    %1844 = vmatprep.subr.mxu0 0.0
    %1845 = vmatpush1.msra.mxu0 0.0
    %1846 = vmatprep.subr.mxu0 0.0
    %1847 = vmatpush1.msra.mxu0 0.0
    %1848 = vmatprep.subr.mxu0 0.0
    %1849 = vmatpush1.msra.mxu0 0.0
    %1850 = vmatprep.subr.mxu0 0.0
    %1851 = vmatpush1.msra.mxu0 0.0
    %1852 = vmatprep.subr.mxu0 0.0
    %1853 = vmatpush1.msra.mxu0 0.0
    %1854 = vmatprep.subr.mxu0 0.0
    %1855 = vmatpush1.msra.mxu0 0.0
    %1856 = vmatprep.mubr.f32.mxu0 0.0
    %1857 = vmatmul.mubr.f32.gmra.mrb[0].mxu0 %v1790
    %v1858 = vpop.f32.mrb[0].mxu0
    %v1859 = vadd.f32 0.0, %v1858
    %v1860 = vpop.f32.mrb[0].mxu0
    %1861 = vdwg.mxu0
    %v1862 = vrot.slane %v1421, 7
    %v1864 = vrot.slane %v1494, 6
    %v1866 = vrot.slane %v1567, 5
    %v1868 = vrot.slane %v1640, 4
    %v1870 = vrot.slane %v1713, 3
    %v1872 = vrot.slane %v1786, 2
    %v1875 = vrot.slane %v1859, 1
    %v1877 = vsel %vm637, %v1348, %v1862
    %v1878 = vsel %vm639, %v1877, %v1864
    %v1879 = vsel %vm641, %v1878, %v1866
    %v1880 = vsel %vm643, %v1879, %v1868
    %v1881 = vsel %vm645, %v1880, %v1870
    %v1882 = vsel %vm647, %v1881, %v1872
    %v1883 = vsel %vm649, %v1882, %v1875
    %s1884 = scalar_lea.vmem [#allocation5], 16
    %1885 = vst [vmem:[%s1884] sm:$0xff] %v1883
    %s1886 = smul.u32 24, 8
    %s1887 = scalar_lea.vmem [#allocation2], %s1886
    %v1888 = vld [vmem:[%s1887] sm:$0xff]
    %v1889 = vld [vmem:[%s1887 + $0x8] sm:$0xff]
    %v1890 = vld [vmem:[%s1887 + $0x10] sm:$0xff]
    %v1891 = vld [vmem:[%s1887 + $0x18] sm:$0xff]
    %v1892 = vld [vmem:[%s1887 + $0x20] sm:$0xff]
    %v1893 = vld [vmem:[%s1887 + $0x28] sm:$0xff]
    %v1894 = vld [vmem:[%s1887 + $0x30] sm:$0xff]
    %v1895 = vld [vmem:[%s1887 + $0x38] sm:$0xff]
    %v1896 = vsel %vm37, %v1859, 0
    %1898 = vmatprep.subr.mxu0 0.0
    %1899 = vmatpush1.msra.mxu0 %v1888
    %1900 = vmatprep.subr.mxu0 0.0
    %1901 = vmatpush1.msra.mxu0 0.0
    %1902 = vmatprep.subr.mxu0 0.0
    %1903 = vmatpush1.msra.mxu0 0.0
    %1904 = vmatprep.subr.mxu0 0.0
    %1905 = vmatpush1.msra.mxu0 0.0
    %1906 = vmatprep.subr.mxu0 0.0
    %1907 = vmatpush1.msra.mxu0 0.0
    %1908 = vmatprep.subr.mxu0 0.0
    %1909 = vmatpush1.msra.mxu0 0.0
    %1910 = vmatprep.subr.mxu0 0.0
    %1911 = vmatpush1.msra.mxu0 0.0
    %1912 = vmatprep.subr.mxu0 0.0
    %1913 = vmatpush1.msra.mxu0 0.0
    %1914 = vmatprep.subr.mxu0 0.0
    %1915 = vmatpush1.msra.mxu0 0.0
    %1916 = vmatprep.subr.mxu0 0.0
    %1917 = vmatpush1.msra.mxu0 0.0
    %1918 = vmatprep.subr.mxu0 0.0
    %1919 = vmatpush1.msra.mxu0 0.0
    %1920 = vmatprep.subr.mxu0 0.0
    %1921 = vmatpush1.msra.mxu0 0.0
    %1922 = vmatprep.subr.mxu0 0.0
    %1923 = vmatpush1.msra.mxu0 0.0
    %1924 = vmatprep.subr.mxu0 0.0
    %1925 = vmatpush1.msra.mxu0 0.0
    %1926 = vmatprep.subr.mxu0 0.0
    %1927 = vmatpush1.msra.mxu0 0.0
    %1928 = vmatprep.subr.mxu0 0.0
    %1929 = vmatpush1.msra.mxu0 0.0
    %1930 = vmatprep.subr.mxu0 0.0
    %1931 = vmatpush1.msra.mxu0 0.0
    %1932 = vmatprep.subr.mxu0 0.0
    %1933 = vmatpush1.msra.mxu0 0.0
    %1934 = vmatprep.subr.mxu0 0.0
    %1935 = vmatpush1.msra.mxu0 0.0
    %1936 = vmatprep.subr.mxu0 0.0
    %1937 = vmatpush1.msra.mxu0 0.0
    %1938 = vmatprep.subr.mxu0 0.0
    %1939 = vmatpush1.msra.mxu0 0.0
    %1940 = vmatprep.subr.mxu0 0.0
    %1941 = vmatpush1.msra.mxu0 0.0
    %1942 = vmatprep.subr.mxu0 0.0
    %1943 = vmatpush1.msra.mxu0 0.0
    %1944 = vmatprep.subr.mxu0 0.0
    %1945 = vmatpush1.msra.mxu0 0.0
    %1946 = vmatprep.subr.mxu0 0.0
    %1947 = vmatpush1.msra.mxu0 0.0
    %1948 = vmatprep.subr.mxu0 0.0
    %1949 = vmatpush1.msra.mxu0 0.0
    %1950 = vmatprep.subr.mxu0 0.0
    %1951 = vmatpush1.msra.mxu0 0.0
    %1952 = vmatprep.subr.mxu0 0.0
    %1953 = vmatpush1.msra.mxu0 0.0
    %1954 = vmatprep.subr.mxu0 0.0
    %1955 = vmatpush1.msra.mxu0 0.0
    %1956 = vmatprep.subr.mxu0 0.0
    %1957 = vmatpush1.msra.mxu0 0.0
    %1958 = vmatprep.subr.mxu0 0.0
    %1959 = vmatpush1.msra.mxu0 0.0
    %1960 = vmatprep.subr.mxu0 0.0
    %1961 = vmatpush1.msra.mxu0 0.0
    %1962 = vmatprep.mubr.f32.mxu0 0.0
    %1963 = vmatmul.mubr.f32.gmra.mrb[0].mxu0 %v1896
    %v1964 = vpop.f32.mrb[0].mxu0
    %v1965 = vadd.f32 0.0, %v1964
    %v1966 = vpop.f32.mrb[0].mxu0
    %1967 = vdwg.mxu0
    %v1969 = vsel %vm37, %v1965, 0
    %1971 = vmatprep.subr.mxu0 0.0
    %1972 = vmatpush1.msra.mxu0 %v1889
    %1973 = vmatprep.subr.mxu0 0.0
    %1974 = vmatpush1.msra.mxu0 0.0
    %1975 = vmatprep.subr.mxu0 0.0
    %1976 = vmatpush1.msra.mxu0 0.0
    %1977 = vmatprep.subr.mxu0 0.0
    %1978 = vmatpush1.msra.mxu0 0.0
    %1979 = vmatprep.subr.mxu0 0.0
    %1980 = vmatpush1.msra.mxu0 0.0
    %1981 = vmatprep.subr.mxu0 0.0
    %1982 = vmatpush1.msra.mxu0 0.0
    %1983 = vmatprep.subr.mxu0 0.0
    %1984 = vmatpush1.msra.mxu0 0.0
    %1985 = vmatprep.subr.mxu0 0.0
    %1986 = vmatpush1.msra.mxu0 0.0
    %1987 = vmatprep.subr.mxu0 0.0
    %1988 = vmatpush1.msra.mxu0 0.0
    %1989 = vmatprep.subr.mxu0 0.0
    %1990 = vmatpush1.msra.mxu0 0.0
    %1991 = vmatprep.subr.mxu0 0.0
    %1992 = vmatpush1.msra.mxu0 0.0
    %1993 = vmatprep.subr.mxu0 0.0
    %1994 = vmatpush1.msra.mxu0 0.0
    %1995 = vmatprep.subr.mxu0 0.0
    %1996 = vmatpush1.msra.mxu0 0.0
    %1997 = vmatprep.subr.mxu0 0.0
    %1998 = vmatpush1.msra.mxu0 0.0
    %1999 = vmatprep.subr.mxu0 0.0
    %2000 = vmatpush1.msra.mxu0 0.0
    %2001 = vmatprep.subr.mxu0 0.0
    %2002 = vmatpush1.msra.mxu0 0.0
    %2003 = vmatprep.subr.mxu0 0.0
    %2004 = vmatpush1.msra.mxu0 0.0
    %2005 = vmatprep.subr.mxu0 0.0
    %2006 = vmatpush1.msra.mxu0 0.0
    %2007 = vmatprep.subr.mxu0 0.0
    %2008 = vmatpush1.msra.mxu0 0.0
    %2009 = vmatprep.subr.mxu0 0.0
    %2010 = vmatpush1.msra.mxu0 0.0
    %2011 = vmatprep.subr.mxu0 0.0
    %2012 = vmatpush1.msra.mxu0 0.0
    %2013 = vmatprep.subr.mxu0 0.0
    %2014 = vmatpush1.msra.mxu0 0.0
    %2015 = vmatprep.subr.mxu0 0.0
    %2016 = vmatpush1.msra.mxu0 0.0
    %2017 = vmatprep.subr.mxu0 0.0
    %2018 = vmatpush1.msra.mxu0 0.0
    %2019 = vmatprep.subr.mxu0 0.0
    %2020 = vmatpush1.msra.mxu0 0.0
    %2021 = vmatprep.subr.mxu0 0.0
    %2022 = vmatpush1.msra.mxu0 0.0
    %2023 = vmatprep.subr.mxu0 0.0
    %2024 = vmatpush1.msra.mxu0 0.0
    %2025 = vmatprep.subr.mxu0 0.0
    %2026 = vmatpush1.msra.mxu0 0.0
    %2027 = vmatprep.subr.mxu0 0.0
    %2028 = vmatpush1.msra.mxu0 0.0
    %2029 = vmatprep.subr.mxu0 0.0
    %2030 = vmatpush1.msra.mxu0 0.0
    %2031 = vmatprep.subr.mxu0 0.0
    %2032 = vmatpush1.msra.mxu0 0.0
    %2033 = vmatprep.subr.mxu0 0.0
    %2034 = vmatpush1.msra.mxu0 0.0
    %2035 = vmatprep.mubr.f32.mxu0 0.0
    %2036 = vmatmul.mubr.f32.gmra.mrb[0].mxu0 %v1969
    %v2037 = vpop.f32.mrb[0].mxu0
    %v2038 = vadd.f32 0.0, %v2037
    %v2039 = vpop.f32.mrb[0].mxu0
    %2040 = vdwg.mxu0
    %v2042 = vsel %vm37, %v2038, 0
    %2044 = vmatprep.subr.mxu0 0.0
    %2045 = vmatpush1.msra.mxu0 %v1890
    %2046 = vmatprep.subr.mxu0 0.0
    %2047 = vmatpush1.msra.mxu0 0.0
    %2048 = vmatprep.subr.mxu0 0.0
    %2049 = vmatpush1.msra.mxu0 0.0
    %2050 = vmatprep.subr.mxu0 0.0
    %2051 = vmatpush1.msra.mxu0 0.0
    %2052 = vmatprep.subr.mxu0 0.0
    %2053 = vmatpush1.msra.mxu0 0.0
    %2054 = vmatprep.subr.mxu0 0.0
    %2055 = vmatpush1.msra.mxu0 0.0
    %2056 = vmatprep.subr.mxu0 0.0
    %2057 = vmatpush1.msra.mxu0 0.0
    %2058 = vmatprep.subr.mxu0 0.0
    %2059 = vmatpush1.msra.mxu0 0.0
    %2060 = vmatprep.subr.mxu0 0.0
    %2061 = vmatpush1.msra.mxu0 0.0
    %2062 = vmatprep.subr.mxu0 0.0
    %2063 = vmatpush1.msra.mxu0 0.0
    %2064 = vmatprep.subr.mxu0 0.0
    %2065 = vmatpush1.msra.mxu0 0.0
    %2066 = vmatprep.subr.mxu0 0.0
    %2067 = vmatpush1.msra.mxu0 0.0
    %2068 = vmatprep.subr.mxu0 0.0
    %2069 = vmatpush1.msra.mxu0 0.0
    %2070 = vmatprep.subr.mxu0 0.0
    %2071 = vmatpush1.msra.mxu0 0.0
    %2072 = vmatprep.subr.mxu0 0.0
    %2073 = vmatpush1.msra.mxu0 0.0
    %2074 = vmatprep.subr.mxu0 0.0
    %2075 = vmatpush1.msra.mxu0 0.0
    %2076 = vmatprep.subr.mxu0 0.0
    %2077 = vmatpush1.msra.mxu0 0.0
    %2078 = vmatprep.subr.mxu0 0.0
    %2079 = vmatpush1.msra.mxu0 0.0
    %2080 = vmatprep.subr.mxu0 0.0
    %2081 = vmatpush1.msra.mxu0 0.0
    %2082 = vmatprep.subr.mxu0 0.0
    %2083 = vmatpush1.msra.mxu0 0.0
    %2084 = vmatprep.subr.mxu0 0.0
    %2085 = vmatpush1.msra.mxu0 0.0
    %2086 = vmatprep.subr.mxu0 0.0
    %2087 = vmatpush1.msra.mxu0 0.0
    %2088 = vmatprep.subr.mxu0 0.0
    %2089 = vmatpush1.msra.mxu0 0.0
    %2090 = vmatprep.subr.mxu0 0.0
    %2091 = vmatpush1.msra.mxu0 0.0
    %2092 = vmatprep.subr.mxu0 0.0
    %2093 = vmatpush1.msra.mxu0 0.0
    %2094 = vmatprep.subr.mxu0 0.0
    %2095 = vmatpush1.msra.mxu0 0.0
    %2096 = vmatprep.subr.mxu0 0.0
    %2097 = vmatpush1.msra.mxu0 0.0
    %2098 = vmatprep.subr.mxu0 0.0
    %2099 = vmatpush1.msra.mxu0 0.0
    %2100 = vmatprep.subr.mxu0 0.0
    %2101 = vmatpush1.msra.mxu0 0.0
    %2102 = vmatprep.subr.mxu0 0.0
    %2103 = vmatpush1.msra.mxu0 0.0
    %2104 = vmatprep.subr.mxu0 0.0
    %2105 = vmatpush1.msra.mxu0 0.0
    %2106 = vmatprep.subr.mxu0 0.0
    %2107 = vmatpush1.msra.mxu0 0.0
    %2108 = vmatprep.mubr.f32.mxu0 0.0
    %2109 = vmatmul.mubr.f32.gmra.mrb[0].mxu0 %v2042
    %v2110 = vpop.f32.mrb[0].mxu0
    %v2111 = vadd.f32 0.0, %v2110
    %v2112 = vpop.f32.mrb[0].mxu0
    %2113 = vdwg.mxu0
    %v2115 = vsel %vm37, %v2111, 0
    %2117 = vmatprep.subr.mxu0 0.0
    %2118 = vmatpush1.msra.mxu0 %v1891
    %2119 = vmatprep.subr.mxu0 0.0
    %2120 = vmatpush1.msra.mxu0 0.0
    %2121 = vmatprep.subr.mxu0 0.0
    %2122 = vmatpush1.msra.mxu0 0.0
    %2123 = vmatprep.subr.mxu0 0.0
    %2124 = vmatpush1.msra.mxu0 0.0
    %2125 = vmatprep.subr.mxu0 0.0
    %2126 = vmatpush1.msra.mxu0 0.0
    %2127 = vmatprep.subr.mxu0 0.0
    %2128 = vmatpush1.msra.mxu0 0.0
    %2129 = vmatprep.subr.mxu0 0.0
    %2130 = vmatpush1.msra.mxu0 0.0
    %2131 = vmatprep.subr.mxu0 0.0
    %2132 = vmatpush1.msra.mxu0 0.0
    %2133 = vmatprep.subr.mxu0 0.0
    %2134 = vmatpush1.msra.mxu0 0.0
    %2135 = vmatprep.subr.mxu0 0.0
    %2136 = vmatpush1.msra.mxu0 0.0
    %2137 = vmatprep.subr.mxu0 0.0
    %2138 = vmatpush1.msra.mxu0 0.0
    %2139 = vmatprep.subr.mxu0 0.0
    %2140 = vmatpush1.msra.mxu0 0.0
    %2141 = vmatprep.subr.mxu0 0.0
    %2142 = vmatpush1.msra.mxu0 0.0
    %2143 = vmatprep.subr.mxu0 0.0
    %2144 = vmatpush1.msra.mxu0 0.0
    %2145 = vmatprep.subr.mxu0 0.0
    %2146 = vmatpush1.msra.mxu0 0.0
    %2147 = vmatprep.subr.mxu0 0.0
    %2148 = vmatpush1.msra.mxu0 0.0
    %2149 = vmatprep.subr.mxu0 0.0
    %2150 = vmatpush1.msra.mxu0 0.0
    %2151 = vmatprep.subr.mxu0 0.0
    %2152 = vmatpush1.msra.mxu0 0.0
    %2153 = vmatprep.subr.mxu0 0.0
    %2154 = vmatpush1.msra.mxu0 0.0
    %2155 = vmatprep.subr.mxu0 0.0
    %2156 = vmatpush1.msra.mxu0 0.0
    %2157 = vmatprep.subr.mxu0 0.0
    %2158 = vmatpush1.msra.mxu0 0.0
    %2159 = vmatprep.subr.mxu0 0.0
    %2160 = vmatpush1.msra.mxu0 0.0
    %2161 = vmatprep.subr.mxu0 0.0
    %2162 = vmatpush1.msra.mxu0 0.0
    %2163 = vmatprep.subr.mxu0 0.0
    %2164 = vmatpush1.msra.mxu0 0.0
    %2165 = vmatprep.subr.mxu0 0.0
    %2166 = vmatpush1.msra.mxu0 0.0
    %2167 = vmatprep.subr.mxu0 0.0
    %2168 = vmatpush1.msra.mxu0 0.0
    %2169 = vmatprep.subr.mxu0 0.0
    %2170 = vmatpush1.msra.mxu0 0.0
    %2171 = vmatprep.subr.mxu0 0.0
    %2172 = vmatpush1.msra.mxu0 0.0
    %2173 = vmatprep.subr.mxu0 0.0
    %2174 = vmatpush1.msra.mxu0 0.0
    %2175 = vmatprep.subr.mxu0 0.0
    %2176 = vmatpush1.msra.mxu0 0.0
    %2177 = vmatprep.subr.mxu0 0.0
    %2178 = vmatpush1.msra.mxu0 0.0
    %2179 = vmatprep.subr.mxu0 0.0
    %2180 = vmatpush1.msra.mxu0 0.0
    %2181 = vmatprep.mubr.f32.mxu0 0.0
    %2182 = vmatmul.mubr.f32.gmra.mrb[0].mxu0 %v2115
    %v2183 = vpop.f32.mrb[0].mxu0
    %v2184 = vadd.f32 0.0, %v2183
    %v2185 = vpop.f32.mrb[0].mxu0
    %2186 = vdwg.mxu0
    %v2188 = vsel %vm37, %v2184, 0
    %2190 = vmatprep.subr.mxu0 0.0
    %2191 = vmatpush1.msra.mxu0 %v1892
    %2192 = vmatprep.subr.mxu0 0.0
    %2193 = vmatpush1.msra.mxu0 0.0
    %2194 = vmatprep.subr.mxu0 0.0
    %2195 = vmatpush1.msra.mxu0 0.0
    %2196 = vmatprep.subr.mxu0 0.0
    %2197 = vmatpush1.msra.mxu0 0.0
    %2198 = vmatprep.subr.mxu0 0.0
    %2199 = vmatpush1.msra.mxu0 0.0
    %2200 = vmatprep.subr.mxu0 0.0
    %2201 = vmatpush1.msra.mxu0 0.0
    %2202 = vmatprep.subr.mxu0 0.0
    %2203 = vmatpush1.msra.mxu0 0.0
    %2204 = vmatprep.subr.mxu0 0.0
    %2205 = vmatpush1.msra.mxu0 0.0
    %2206 = vmatprep.subr.mxu0 0.0
    %2207 = vmatpush1.msra.mxu0 0.0
    %2208 = vmatprep.subr.mxu0 0.0
    %2209 = vmatpush1.msra.mxu0 0.0
    %2210 = vmatprep.subr.mxu0 0.0
    %2211 = vmatpush1.msra.mxu0 0.0
    %2212 = vmatprep.subr.mxu0 0.0
    %2213 = vmatpush1.msra.mxu0 0.0
    %2214 = vmatprep.subr.mxu0 0.0
    %2215 = vmatpush1.msra.mxu0 0.0
    %2216 = vmatprep.subr.mxu0 0.0
    %2217 = vmatpush1.msra.mxu0 0.0
    %2218 = vmatprep.subr.mxu0 0.0
    %2219 = vmatpush1.msra.mxu0 0.0
    %2220 = vmatprep.subr.mxu0 0.0
    %2221 = vmatpush1.msra.mxu0 0.0
    %2222 = vmatprep.subr.mxu0 0.0
    %2223 = vmatpush1.msra.mxu0 0.0
    %2224 = vmatprep.subr.mxu0 0.0
    %2225 = vmatpush1.msra.mxu0 0.0
    %2226 = vmatprep.subr.mxu0 0.0
    %2227 = vmatpush1.msra.mxu0 0.0
    %2228 = vmatprep.subr.mxu0 0.0
    %2229 = vmatpush1.msra.mxu0 0.0
    %2230 = vmatprep.subr.mxu0 0.0
    %2231 = vmatpush1.msra.mxu0 0.0
    %2232 = vmatprep.subr.mxu0 0.0
    %2233 = vmatpush1.msra.mxu0 0.0
    %2234 = vmatprep.subr.mxu0 0.0
    %2235 = vmatpush1.msra.mxu0 0.0
    %2236 = vmatprep.subr.mxu0 0.0
    %2237 = vmatpush1.msra.mxu0 0.0
    %2238 = vmatprep.subr.mxu0 0.0
    %2239 = vmatpush1.msra.mxu0 0.0
    %2240 = vmatprep.subr.mxu0 0.0
    %2241 = vmatpush1.msra.mxu0 0.0
    %2242 = vmatprep.subr.mxu0 0.0
    %2243 = vmatpush1.msra.mxu0 0.0
    %2244 = vmatprep.subr.mxu0 0.0
    %2245 = vmatpush1.msra.mxu0 0.0
    %2246 = vmatprep.subr.mxu0 0.0
    %2247 = vmatpush1.msra.mxu0 0.0
    %2248 = vmatprep.subr.mxu0 0.0
    %2249 = vmatpush1.msra.mxu0 0.0
    %2250 = vmatprep.subr.mxu0 0.0
    %2251 = vmatpush1.msra.mxu0 0.0
    %2252 = vmatprep.subr.mxu0 0.0
    %2253 = vmatpush1.msra.mxu0 0.0
    %2254 = vmatprep.mubr.f32.mxu0 0.0
    %2255 = vmatmul.mubr.f32.gmra.mrb[0].mxu0 %v2188
    %v2256 = vpop.f32.mrb[0].mxu0
    %v2257 = vadd.f32 0.0, %v2256
    %v2258 = vpop.f32.mrb[0].mxu0
    %2259 = vdwg.mxu0
    %v2261 = vsel %vm37, %v2257, 0
    %2263 = vmatprep.subr.mxu0 0.0
    %2264 = vmatpush1.msra.mxu0 %v1893
    %2265 = vmatprep.subr.mxu0 0.0
    %2266 = vmatpush1.msra.mxu0 0.0
    %2267 = vmatprep.subr.mxu0 0.0
    %2268 = vmatpush1.msra.mxu0 0.0
    %2269 = vmatprep.subr.mxu0 0.0
    %2270 = vmatpush1.msra.mxu0 0.0
    %2271 = vmatprep.subr.mxu0 0.0
    %2272 = vmatpush1.msra.mxu0 0.0
    %2273 = vmatprep.subr.mxu0 0.0
    %2274 = vmatpush1.msra.mxu0 0.0
    %2275 = vmatprep.subr.mxu0 0.0
    %2276 = vmatpush1.msra.mxu0 0.0
    %2277 = vmatprep.subr.mxu0 0.0
    %2278 = vmatpush1.msra.mxu0 0.0
    %2279 = vmatprep.subr.mxu0 0.0
    %2280 = vmatpush1.msra.mxu0 0.0
    %2281 = vmatprep.subr.mxu0 0.0
    %2282 = vmatpush1.msra.mxu0 0.0
    %2283 = vmatprep.subr.mxu0 0.0
    %2284 = vmatpush1.msra.mxu0 0.0
    %2285 = vmatprep.subr.mxu0 0.0
    %2286 = vmatpush1.msra.mxu0 0.0
    %2287 = vmatprep.subr.mxu0 0.0
    %2288 = vmatpush1.msra.mxu0 0.0
    %2289 = vmatprep.subr.mxu0 0.0
    %2290 = vmatpush1.msra.mxu0 0.0
    %2291 = vmatprep.subr.mxu0 0.0
    %2292 = vmatpush1.msra.mxu0 0.0
    %2293 = vmatprep.subr.mxu0 0.0
    %2294 = vmatpush1.msra.mxu0 0.0
    %2295 = vmatprep.subr.mxu0 0.0
    %2296 = vmatpush1.msra.mxu0 0.0
    %2297 = vmatprep.subr.mxu0 0.0
    %2298 = vmatpush1.msra.mxu0 0.0
    %2299 = vmatprep.subr.mxu0 0.0
    %2300 = vmatpush1.msra.mxu0 0.0
    %2301 = vmatprep.subr.mxu0 0.0
    %2302 = vmatpush1.msra.mxu0 0.0
    %2303 = vmatprep.subr.mxu0 0.0
    %2304 = vmatpush1.msra.mxu0 0.0
    %2305 = vmatprep.subr.mxu0 0.0
    %2306 = vmatpush1.msra.mxu0 0.0
    %2307 = vmatprep.subr.mxu0 0.0
    %2308 = vmatpush1.msra.mxu0 0.0
    %2309 = vmatprep.subr.mxu0 0.0
    %2310 = vmatpush1.msra.mxu0 0.0
    %2311 = vmatprep.subr.mxu0 0.0
    %2312 = vmatpush1.msra.mxu0 0.0
    %2313 = vmatprep.subr.mxu0 0.0
    %2314 = vmatpush1.msra.mxu0 0.0
    %2315 = vmatprep.subr.mxu0 0.0
    %2316 = vmatpush1.msra.mxu0 0.0
    %2317 = vmatprep.subr.mxu0 0.0
    %2318 = vmatpush1.msra.mxu0 0.0
    %2319 = vmatprep.subr.mxu0 0.0
    %2320 = vmatpush1.msra.mxu0 0.0
    %2321 = vmatprep.subr.mxu0 0.0
    %2322 = vmatpush1.msra.mxu0 0.0
    %2323 = vmatprep.subr.mxu0 0.0
    %2324 = vmatpush1.msra.mxu0 0.0
    %2325 = vmatprep.subr.mxu0 0.0
    %2326 = vmatpush1.msra.mxu0 0.0
    %2327 = vmatprep.mubr.f32.mxu0 0.0
    %2328 = vmatmul.mubr.f32.gmra.mrb[0].mxu0 %v2261
    %v2329 = vpop.f32.mrb[0].mxu0
    %v2330 = vadd.f32 0.0, %v2329
    %v2331 = vpop.f32.mrb[0].mxu0
    %2332 = vdwg.mxu0
    %v2334 = vsel %vm37, %v2330, 0
    %2336 = vmatprep.subr.mxu0 0.0
    %2337 = vmatpush1.msra.mxu0 %v1894
    %2338 = vmatprep.subr.mxu0 0.0
    %2339 = vmatpush1.msra.mxu0 0.0
    %2340 = vmatprep.subr.mxu0 0.0
    %2341 = vmatpush1.msra.mxu0 0.0
    %2342 = vmatprep.subr.mxu0 0.0
    %2343 = vmatpush1.msra.mxu0 0.0
    %2344 = vmatprep.subr.mxu0 0.0
    %2345 = vmatpush1.msra.mxu0 0.0
    %2346 = vmatprep.subr.mxu0 0.0
    %2347 = vmatpush1.msra.mxu0 0.0
    %2348 = vmatprep.subr.mxu0 0.0
    %2349 = vmatpush1.msra.mxu0 0.0
    %2350 = vmatprep.subr.mxu0 0.0
    %2351 = vmatpush1.msra.mxu0 0.0
    %2352 = vmatprep.subr.mxu0 0.0
    %2353 = vmatpush1.msra.mxu0 0.0
    %2354 = vmatprep.subr.mxu0 0.0
    %2355 = vmatpush1.msra.mxu0 0.0
    %2356 = vmatprep.subr.mxu0 0.0
    %2357 = vmatpush1.msra.mxu0 0.0
    %2358 = vmatprep.subr.mxu0 0.0
    %2359 = vmatpush1.msra.mxu0 0.0
    %2360 = vmatprep.subr.mxu0 0.0
    %2361 = vmatpush1.msra.mxu0 0.0
    %2362 = vmatprep.subr.mxu0 0.0
    %2363 = vmatpush1.msra.mxu0 0.0
    %2364 = vmatprep.subr.mxu0 0.0
    %2365 = vmatpush1.msra.mxu0 0.0
    %2366 = vmatprep.subr.mxu0 0.0
    %2367 = vmatpush1.msra.mxu0 0.0
    %2368 = vmatprep.subr.mxu0 0.0
    %2369 = vmatpush1.msra.mxu0 0.0
    %2370 = vmatprep.subr.mxu0 0.0
    %2371 = vmatpush1.msra.mxu0 0.0
    %2372 = vmatprep.subr.mxu0 0.0
    %2373 = vmatpush1.msra.mxu0 0.0
    %2374 = vmatprep.subr.mxu0 0.0
    %2375 = vmatpush1.msra.mxu0 0.0
    %2376 = vmatprep.subr.mxu0 0.0
    %2377 = vmatpush1.msra.mxu0 0.0
    %2378 = vmatprep.subr.mxu0 0.0
    %2379 = vmatpush1.msra.mxu0 0.0
    %2380 = vmatprep.subr.mxu0 0.0
    %2381 = vmatpush1.msra.mxu0 0.0
    %2382 = vmatprep.subr.mxu0 0.0
    %2383 = vmatpush1.msra.mxu0 0.0
    %2384 = vmatprep.subr.mxu0 0.0
    %2385 = vmatpush1.msra.mxu0 0.0
    %2386 = vmatprep.subr.mxu0 0.0
    %2387 = vmatpush1.msra.mxu0 0.0
    %2388 = vmatprep.subr.mxu0 0.0
    %2389 = vmatpush1.msra.mxu0 0.0
    %2390 = vmatprep.subr.mxu0 0.0
    %2391 = vmatpush1.msra.mxu0 0.0
    %2392 = vmatprep.subr.mxu0 0.0
    %2393 = vmatpush1.msra.mxu0 0.0
    %2394 = vmatprep.subr.mxu0 0.0
    %2395 = vmatpush1.msra.mxu0 0.0
    %2396 = vmatprep.subr.mxu0 0.0
    %2397 = vmatpush1.msra.mxu0 0.0
    %2398 = vmatprep.subr.mxu0 0.0
    %2399 = vmatpush1.msra.mxu0 0.0
    %2400 = vmatprep.mubr.f32.mxu0 0.0
    %2401 = vmatmul.mubr.f32.gmra.mrb[0].mxu0 %v2334
    %v2402 = vpop.f32.mrb[0].mxu0
    %v2403 = vadd.f32 0.0, %v2402
    %v2404 = vpop.f32.mrb[0].mxu0
    %2405 = vdwg.mxu0
    %v2407 = vsel %vm37, %v2403, 0
    %2409 = vmatprep.subr.mxu0 0.0
    %2410 = vmatpush1.msra.mxu0 %v1895
    %2411 = vmatprep.subr.mxu0 0.0
    %2412 = vmatpush1.msra.mxu0 0.0
    %2413 = vmatprep.subr.mxu0 0.0
    %2414 = vmatpush1.msra.mxu0 0.0
    %2415 = vmatprep.subr.mxu0 0.0
    %2416 = vmatpush1.msra.mxu0 0.0
    %2417 = vmatprep.subr.mxu0 0.0
    %2418 = vmatpush1.msra.mxu0 0.0
    %2419 = vmatprep.subr.mxu0 0.0
    %2420 = vmatpush1.msra.mxu0 0.0
    %2421 = vmatprep.subr.mxu0 0.0
    %2422 = vmatpush1.msra.mxu0 0.0
    %2423 = vmatprep.subr.mxu0 0.0
    %2424 = vmatpush1.msra.mxu0 0.0
    %2425 = vmatprep.subr.mxu0 0.0
    %2426 = vmatpush1.msra.mxu0 0.0
    %2427 = vmatprep.subr.mxu0 0.0
    %2428 = vmatpush1.msra.mxu0 0.0
    %2429 = vmatprep.subr.mxu0 0.0
    %2430 = vmatpush1.msra.mxu0 0.0
    %2431 = vmatprep.subr.mxu0 0.0
    %2432 = vmatpush1.msra.mxu0 0.0
    %2433 = vmatprep.subr.mxu0 0.0
    %2434 = vmatpush1.msra.mxu0 0.0
    %2435 = vmatprep.subr.mxu0 0.0
    %2436 = vmatpush1.msra.mxu0 0.0
    %2437 = vmatprep.subr.mxu0 0.0
    %2438 = vmatpush1.msra.mxu0 0.0
    %2439 = vmatprep.subr.mxu0 0.0
    %2440 = vmatpush1.msra.mxu0 0.0
    %2441 = vmatprep.subr.mxu0 0.0
    %2442 = vmatpush1.msra.mxu0 0.0
    %2443 = vmatprep.subr.mxu0 0.0
    %2444 = vmatpush1.msra.mxu0 0.0
    %2445 = vmatprep.subr.mxu0 0.0
    %2446 = vmatpush1.msra.mxu0 0.0
    %2447 = vmatprep.subr.mxu0 0.0
    %2448 = vmatpush1.msra.mxu0 0.0
    %2449 = vmatprep.subr.mxu0 0.0
    %2450 = vmatpush1.msra.mxu0 0.0
    %2451 = vmatprep.subr.mxu0 0.0
    %2452 = vmatpush1.msra.mxu0 0.0
    %2453 = vmatprep.subr.mxu0 0.0
    %2454 = vmatpush1.msra.mxu0 0.0
    %2455 = vmatprep.subr.mxu0 0.0
    %2456 = vmatpush1.msra.mxu0 0.0
    %2457 = vmatprep.subr.mxu0 0.0
    %2458 = vmatpush1.msra.mxu0 0.0
    %2459 = vmatprep.subr.mxu0 0.0
    %2460 = vmatpush1.msra.mxu0 0.0
    %2461 = vmatprep.subr.mxu0 0.0
    %2462 = vmatpush1.msra.mxu0 0.0
    %2463 = vmatprep.subr.mxu0 0.0
    %2464 = vmatpush1.msra.mxu0 0.0
    %2465 = vmatprep.subr.mxu0 0.0
    %2466 = vmatpush1.msra.mxu0 0.0
    %2467 = vmatprep.subr.mxu0 0.0
    %2468 = vmatpush1.msra.mxu0 0.0
    %2469 = vmatprep.subr.mxu0 0.0
    %2470 = vmatpush1.msra.mxu0 0.0
    %2471 = vmatprep.subr.mxu0 0.0
    %2472 = vmatpush1.msra.mxu0 0.0
    %2473 = vmatprep.mubr.f32.mxu0 0.0
    %2474 = vmatmul.mubr.f32.gmra.mrb[0].mxu0 %v2407
    %v2475 = vpop.f32.mrb[0].mxu0
    %v2476 = vadd.f32 0.0, %v2475
    %v2477 = vpop.f32.mrb[0].mxu0
    %2478 = vdwg.mxu0
    %v2479 = vrot.slane %v2038, 7
    %v2481 = vrot.slane %v2111, 6
    %v2483 = vrot.slane %v2184, 5
    %v2485 = vrot.slane %v2257, 4
    %v2487 = vrot.slane %v2330, 3
    %v2489 = vrot.slane %v2403, 2
    %v2492 = vrot.slane %v2476, 1
    %v2494 = vsel %vm637, %v1965, %v2479
    %v2495 = vsel %vm639, %v2494, %v2481
    %v2496 = vsel %vm641, %v2495, %v2483
    %v2497 = vsel %vm643, %v2496, %v2485
    %v2498 = vsel %vm645, %v2497, %v2487
    %v2499 = vsel %vm647, %v2498, %v2489
    %v2500 = vsel %vm649, %v2499, %v2492
    %s2501 = scalar_lea.vmem [#allocation5], 24
    %2502 = vst [vmem:[%s2501] sm:$0xff] %v2500
    %s2503 = smul.u32 32, 8
    %s2504 = scalar_lea.vmem [#allocation2], %s2503
    %v2505 = vld [vmem:[%s2504] sm:$0xff]
    %v2506 = vld [vmem:[%s2504 + $0x8] sm:$0xff]
    %v2507 = vld [vmem:[%s2504 + $0x10] sm:$0xff]
    %v2508 = vld [vmem:[%s2504 + $0x18] sm:$0xff]
    %v2509 = vld [vmem:[%s2504 + $0x20] sm:$0xff]
    %v2510 = vld [vmem:[%s2504 + $0x28] sm:$0xff]
    %v2511 = vld [vmem:[%s2504 + $0x30] sm:$0xff]
    %v2512 = vld [vmem:[%s2504 + $0x38] sm:$0xff]
    %v2513 = vsel %vm37, %v2476, 0
    %2515 = vmatprep.subr.mxu0 0.0
    %2516 = vmatpush1.msra.mxu0 %v2505
    %2517 = vmatprep.subr.mxu0 0.0
    %2518 = vmatpush1.msra.mxu0 0.0
    %2519 = vmatprep.subr.mxu0 0.0
    %2520 = vmatpush1.msra.mxu0 0.0
    %2521 = vmatprep.subr.mxu0 0.0
    %2522 = vmatpush1.msra.mxu0 0.0
    %2523 = vmatprep.subr.mxu0 0.0
    %2524 = vmatpush1.msra.mxu0 0.0
    %2525 = vmatprep.subr.mxu0 0.0
    %2526 = vmatpush1.msra.mxu0 0.0
    %2527 = vmatprep.subr.mxu0 0.0
    %2528 = vmatpush1.msra.mxu0 0.0
    %2529 = vmatprep.subr.mxu0 0.0
    %2530 = vmatpush1.msra.mxu0 0.0
    %2531 = vmatprep.subr.mxu0 0.0
    %2532 = vmatpush1.msra.mxu0 0.0
    %2533 = vmatprep.subr.mxu0 0.0
    %2534 = vmatpush1.msra.mxu0 0.0
    %2535 = vmatprep.subr.mxu0 0.0
    %2536 = vmatpush1.msra.mxu0 0.0
    %2537 = vmatprep.subr.mxu0 0.0
    %2538 = vmatpush1.msra.mxu0 0.0
    %2539 = vmatprep.subr.mxu0 0.0
    %2540 = vmatpush1.msra.mxu0 0.0
    %2541 = vmatprep.subr.mxu0 0.0
    %2542 = vmatpush1.msra.mxu0 0.0
    %2543 = vmatprep.subr.mxu0 0.0
    %2544 = vmatpush1.msra.mxu0 0.0
    %2545 = vmatprep.subr.mxu0 0.0
    %2546 = vmatpush1.msra.mxu0 0.0
    %2547 = vmatprep.subr.mxu0 0.0
    %2548 = vmatpush1.msra.mxu0 0.0
    %2549 = vmatprep.subr.mxu0 0.0
    %2550 = vmatpush1.msra.mxu0 0.0
    %2551 = vmatprep.subr.mxu0 0.0
    %2552 = vmatpush1.msra.mxu0 0.0
    %2553 = vmatprep.subr.mxu0 0.0
    %2554 = vmatpush1.msra.mxu0 0.0
    %2555 = vmatprep.subr.mxu0 0.0
    %2556 = vmatpush1.msra.mxu0 0.0
    %2557 = vmatprep.subr.mxu0 0.0
    %2558 = vmatpush1.msra.mxu0 0.0
    %2559 = vmatprep.subr.mxu0 0.0
    %2560 = vmatpush1.msra.mxu0 0.0
    %2561 = vmatprep.subr.mxu0 0.0
    %2562 = vmatpush1.msra.mxu0 0.0
    %2563 = vmatprep.subr.mxu0 0.0
    %2564 = vmatpush1.msra.mxu0 0.0
    %2565 = vmatprep.subr.mxu0 0.0
    %2566 = vmatpush1.msra.mxu0 0.0
    %2567 = vmatprep.subr.mxu0 0.0
    %2568 = vmatpush1.msra.mxu0 0.0
    %2569 = vmatprep.subr.mxu0 0.0
    %2570 = vmatpush1.msra.mxu0 0.0
    %2571 = vmatprep.subr.mxu0 0.0
    %2572 = vmatpush1.msra.mxu0 0.0
    %2573 = vmatprep.subr.mxu0 0.0
    %2574 = vmatpush1.msra.mxu0 0.0
    %2575 = vmatprep.subr.mxu0 0.0
    %2576 = vmatpush1.msra.mxu0 0.0
    %2577 = vmatprep.subr.mxu0 0.0
    %2578 = vmatpush1.msra.mxu0 0.0
    %2579 = vmatprep.mubr.f32.mxu0 0.0
    %2580 = vmatmul.mubr.f32.gmra.mrb[0].mxu0 %v2513
    %v2581 = vpop.f32.mrb[0].mxu0
    %v2582 = vadd.f32 0.0, %v2581
    %v2583 = vpop.f32.mrb[0].mxu0
    %2584 = vdwg.mxu0
    %v2586 = vsel %vm37, %v2582, 0
    %2588 = vmatprep.subr.mxu0 0.0
    %2589 = vmatpush1.msra.mxu0 %v2506
    %2590 = vmatprep.subr.mxu0 0.0
    %2591 = vmatpush1.msra.mxu0 0.0
    %2592 = vmatprep.subr.mxu0 0.0
    %2593 = vmatpush1.msra.mxu0 0.0
    %2594 = vmatprep.subr.mxu0 0.0
    %2595 = vmatpush1.msra.mxu0 0.0
    %2596 = vmatprep.subr.mxu0 0.0
    %2597 = vmatpush1.msra.mxu0 0.0
    %2598 = vmatprep.subr.mxu0 0.0
    %2599 = vmatpush1.msra.mxu0 0.0
    %2600 = vmatprep.subr.mxu0 0.0
    %2601 = vmatpush1.msra.mxu0 0.0
    %2602 = vmatprep.subr.mxu0 0.0
    %2603 = vmatpush1.msra.mxu0 0.0
    %2604 = vmatprep.subr.mxu0 0.0
    %2605 = vmatpush1.msra.mxu0 0.0
    %2606 = vmatprep.subr.mxu0 0.0
    %2607 = vmatpush1.msra.mxu0 0.0
    %2608 = vmatprep.subr.mxu0 0.0
    %2609 = vmatpush1.msra.mxu0 0.0
    %2610 = vmatprep.subr.mxu0 0.0
    %2611 = vmatpush1.msra.mxu0 0.0
    %2612 = vmatprep.subr.mxu0 0.0
    %2613 = vmatpush1.msra.mxu0 0.0
    %2614 = vmatprep.subr.mxu0 0.0
    %2615 = vmatpush1.msra.mxu0 0.0
    %2616 = vmatprep.subr.mxu0 0.0
    %2617 = vmatpush1.msra.mxu0 0.0
    %2618 = vmatprep.subr.mxu0 0.0
    %2619 = vmatpush1.msra.mxu0 0.0
    %2620 = vmatprep.subr.mxu0 0.0
    %2621 = vmatpush1.msra.mxu0 0.0
    %2622 = vmatprep.subr.mxu0 0.0
    %2623 = vmatpush1.msra.mxu0 0.0
    %2624 = vmatprep.subr.mxu0 0.0
    %2625 = vmatpush1.msra.mxu0 0.0
    %2626 = vmatprep.subr.mxu0 0.0
    %2627 = vmatpush1.msra.mxu0 0.0
    %2628 = vmatprep.subr.mxu0 0.0
    %2629 = vmatpush1.msra.mxu0 0.0
    %2630 = vmatprep.subr.mxu0 0.0
    %2631 = vmatpush1.msra.mxu0 0.0
    %2632 = vmatprep.subr.mxu0 0.0
    %2633 = vmatpush1.msra.mxu0 0.0
    %2634 = vmatprep.subr.mxu0 0.0
    %2635 = vmatpush1.msra.mxu0 0.0
    %2636 = vmatprep.subr.mxu0 0.0
    %2637 = vmatpush1.msra.mxu0 0.0
    %2638 = vmatprep.subr.mxu0 0.0
    %2639 = vmatpush1.msra.mxu0 0.0
    %2640 = vmatprep.subr.mxu0 0.0
    %2641 = vmatpush1.msra.mxu0 0.0
    %2642 = vmatprep.subr.mxu0 0.0
    %2643 = vmatpush1.msra.mxu0 0.0
    %2644 = vmatprep.subr.mxu0 0.0
    %2645 = vmatpush1.msra.mxu0 0.0
    %2646 = vmatprep.subr.mxu0 0.0
    %2647 = vmatpush1.msra.mxu0 0.0
    %2648 = vmatprep.subr.mxu0 0.0
    %2649 = vmatpush1.msra.mxu0 0.0
    %2650 = vmatprep.subr.mxu0 0.0
    %2651 = vmatpush1.msra.mxu0 0.0
    %2652 = vmatprep.mubr.f32.mxu0 0.0
    %2653 = vmatmul.mubr.f32.gmra.mrb[0].mxu0 %v2586
    %v2654 = vpop.f32.mrb[0].mxu0
    %v2655 = vadd.f32 0.0, %v2654
    %v2656 = vpop.f32.mrb[0].mxu0
    %2657 = vdwg.mxu0
    %v2659 = vsel %vm37, %v2655, 0
    %2661 = vmatprep.subr.mxu0 0.0
    %2662 = vmatpush1.msra.mxu0 %v2507
    %2663 = vmatprep.subr.mxu0 0.0
    %2664 = vmatpush1.msra.mxu0 0.0
    %2665 = vmatprep.subr.mxu0 0.0
    %2666 = vmatpush1.msra.mxu0 0.0
    %2667 = vmatprep.subr.mxu0 0.0
    %2668 = vmatpush1.msra.mxu0 0.0
    %2669 = vmatprep.subr.mxu0 0.0
    %2670 = vmatpush1.msra.mxu0 0.0
    %2671 = vmatprep.subr.mxu0 0.0
    %2672 = vmatpush1.msra.mxu0 0.0
    %2673 = vmatprep.subr.mxu0 0.0
    %2674 = vmatpush1.msra.mxu0 0.0
    %2675 = vmatprep.subr.mxu0 0.0
    %2676 = vmatpush1.msra.mxu0 0.0
    %2677 = vmatprep.subr.mxu0 0.0
    %2678 = vmatpush1.msra.mxu0 0.0
    %2679 = vmatprep.subr.mxu0 0.0
    %2680 = vmatpush1.msra.mxu0 0.0
    %2681 = vmatprep.subr.mxu0 0.0
    %2682 = vmatpush1.msra.mxu0 0.0
    %2683 = vmatprep.subr.mxu0 0.0
    %2684 = vmatpush1.msra.mxu0 0.0
    %2685 = vmatprep.subr.mxu0 0.0
    %2686 = vmatpush1.msra.mxu0 0.0
    %2687 = vmatprep.subr.mxu0 0.0
    %2688 = vmatpush1.msra.mxu0 0.0
    %2689 = vmatprep.subr.mxu0 0.0
    %2690 = vmatpush1.msra.mxu0 0.0
    %2691 = vmatprep.subr.mxu0 0.0
    %2692 = vmatpush1.msra.mxu0 0.0
    %2693 = vmatprep.subr.mxu0 0.0
    %2694 = vmatpush1.msra.mxu0 0.0
    %2695 = vmatprep.subr.mxu0 0.0
    %2696 = vmatpush1.msra.mxu0 0.0
    %2697 = vmatprep.subr.mxu0 0.0
    %2698 = vmatpush1.msra.mxu0 0.0
    %2699 = vmatprep.subr.mxu0 0.0
    %2700 = vmatpush1.msra.mxu0 0.0
    %2701 = vmatprep.subr.mxu0 0.0
    %2702 = vmatpush1.msra.mxu0 0.0
    %2703 = vmatprep.subr.mxu0 0.0
    %2704 = vmatpush1.msra.mxu0 0.0
    %2705 = vmatprep.subr.mxu0 0.0
    %2706 = vmatpush1.msra.mxu0 0.0
    %2707 = vmatprep.subr.mxu0 0.0
    %2708 = vmatpush1.msra.mxu0 0.0
    %2709 = vmatprep.subr.mxu0 0.0
    %2710 = vmatpush1.msra.mxu0 0.0
    %2711 = vmatprep.subr.mxu0 0.0
    %2712 = vmatpush1.msra.mxu0 0.0
    %2713 = vmatprep.subr.mxu0 0.0
    %2714 = vmatpush1.msra.mxu0 0.0
    %2715 = vmatprep.subr.mxu0 0.0
    %2716 = vmatpush1.msra.mxu0 0.0
    %2717 = vmatprep.subr.mxu0 0.0
    %2718 = vmatpush1.msra.mxu0 0.0
    %2719 = vmatprep.subr.mxu0 0.0
    %2720 = vmatpush1.msra.mxu0 0.0
    %2721 = vmatprep.subr.mxu0 0.0
    %2722 = vmatpush1.msra.mxu0 0.0
    %2723 = vmatprep.subr.mxu0 0.0
    %2724 = vmatpush1.msra.mxu0 0.0
    %2725 = vmatprep.mubr.f32.mxu0 0.0
    %2726 = vmatmul.mubr.f32.gmra.mrb[0].mxu0 %v2659
    %v2727 = vpop.f32.mrb[0].mxu0
    %v2728 = vadd.f32 0.0, %v2727
    %v2729 = vpop.f32.mrb[0].mxu0
    %2730 = vdwg.mxu0
    %v2732 = vsel %vm37, %v2728, 0
    %2734 = vmatprep.subr.mxu0 0.0
    %2735 = vmatpush1.msra.mxu0 %v2508
    %2736 = vmatprep.subr.mxu0 0.0
    %2737 = vmatpush1.msra.mxu0 0.0
    %2738 = vmatprep.subr.mxu0 0.0
    %2739 = vmatpush1.msra.mxu0 0.0
    %2740 = vmatprep.subr.mxu0 0.0
    %2741 = vmatpush1.msra.mxu0 0.0
    %2742 = vmatprep.subr.mxu0 0.0
    %2743 = vmatpush1.msra.mxu0 0.0
    %2744 = vmatprep.subr.mxu0 0.0
    %2745 = vmatpush1.msra.mxu0 0.0
    %2746 = vmatprep.subr.mxu0 0.0
    %2747 = vmatpush1.msra.mxu0 0.0
    %2748 = vmatprep.subr.mxu0 0.0
    %2749 = vmatpush1.msra.mxu0 0.0
    %2750 = vmatprep.subr.mxu0 0.0
    %2751 = vmatpush1.msra.mxu0 0.0
    %2752 = vmatprep.subr.mxu0 0.0
    %2753 = vmatpush1.msra.mxu0 0.0
    %2754 = vmatprep.subr.mxu0 0.0
    %2755 = vmatpush1.msra.mxu0 0.0
    %2756 = vmatprep.subr.mxu0 0.0
    %2757 = vmatpush1.msra.mxu0 0.0
    %2758 = vmatprep.subr.mxu0 0.0
    %2759 = vmatpush1.msra.mxu0 0.0
    %2760 = vmatprep.subr.mxu0 0.0
    %2761 = vmatpush1.msra.mxu0 0.0
    %2762 = vmatprep.subr.mxu0 0.0
    %2763 = vmatpush1.msra.mxu0 0.0
    %2764 = vmatprep.subr.mxu0 0.0
    %2765 = vmatpush1.msra.mxu0 0.0
    %2766 = vmatprep.subr.mxu0 0.0
    %2767 = vmatpush1.msra.mxu0 0.0
    %2768 = vmatprep.subr.mxu0 0.0
    %2769 = vmatpush1.msra.mxu0 0.0
    %2770 = vmatprep.subr.mxu0 0.0
    %2771 = vmatpush1.msra.mxu0 0.0
    %2772 = vmatprep.subr.mxu0 0.0
    %2773 = vmatpush1.msra.mxu0 0.0
    %2774 = vmatprep.subr.mxu0 0.0
    %2775 = vmatpush1.msra.mxu0 0.0
    %2776 = vmatprep.subr.mxu0 0.0
    %2777 = vmatpush1.msra.mxu0 0.0
    %2778 = vmatprep.subr.mxu0 0.0
    %2779 = vmatpush1.msra.mxu0 0.0
    %2780 = vmatprep.subr.mxu0 0.0
    %2781 = vmatpush1.msra.mxu0 0.0
    %2782 = vmatprep.subr.mxu0 0.0
    %2783 = vmatpush1.msra.mxu0 0.0
    %2784 = vmatprep.subr.mxu0 0.0
    %2785 = vmatpush1.msra.mxu0 0.0
    %2786 = vmatprep.subr.mxu0 0.0
    %2787 = vmatpush1.msra.mxu0 0.0
    %2788 = vmatprep.subr.mxu0 0.0
    %2789 = vmatpush1.msra.mxu0 0.0
    %2790 = vmatprep.subr.mxu0 0.0
    %2791 = vmatpush1.msra.mxu0 0.0
    %2792 = vmatprep.subr.mxu0 0.0
    %2793 = vmatpush1.msra.mxu0 0.0
    %2794 = vmatprep.subr.mxu0 0.0
    %2795 = vmatpush1.msra.mxu0 0.0
    %2796 = vmatprep.subr.mxu0 0.0
    %2797 = vmatpush1.msra.mxu0 0.0
    %2798 = vmatprep.mubr.f32.mxu0 0.0
    %2799 = vmatmul.mubr.f32.gmra.mrb[0].mxu0 %v2732
    %v2800 = vpop.f32.mrb[0].mxu0
    %v2801 = vadd.f32 0.0, %v2800
    %v2802 = vpop.f32.mrb[0].mxu0
    %2803 = vdwg.mxu0
    %v2805 = vsel %vm37, %v2801, 0
    %2807 = vmatprep.subr.mxu0 0.0
    %2808 = vmatpush1.msra.mxu0 %v2509
    %2809 = vmatprep.subr.mxu0 0.0
    %2810 = vmatpush1.msra.mxu0 0.0
    %2811 = vmatprep.subr.mxu0 0.0
    %2812 = vmatpush1.msra.mxu0 0.0
    %2813 = vmatprep.subr.mxu0 0.0
    %2814 = vmatpush1.msra.mxu0 0.0
    %2815 = vmatprep.subr.mxu0 0.0
    %2816 = vmatpush1.msra.mxu0 0.0
    %2817 = vmatprep.subr.mxu0 0.0
    %2818 = vmatpush1.msra.mxu0 0.0
    %2819 = vmatprep.subr.mxu0 0.0
    %2820 = vmatpush1.msra.mxu0 0.0
    %2821 = vmatprep.subr.mxu0 0.0
    %2822 = vmatpush1.msra.mxu0 0.0
    %2823 = vmatprep.subr.mxu0 0.0
    %2824 = vmatpush1.msra.mxu0 0.0
    %2825 = vmatprep.subr.mxu0 0.0
    %2826 = vmatpush1.msra.mxu0 0.0
    %2827 = vmatprep.subr.mxu0 0.0
    %2828 = vmatpush1.msra.mxu0 0.0
    %2829 = vmatprep.subr.mxu0 0.0
    %2830 = vmatpush1.msra.mxu0 0.0
    %2831 = vmatprep.subr.mxu0 0.0
    %2832 = vmatpush1.msra.mxu0 0.0
    %2833 = vmatprep.subr.mxu0 0.0
    %2834 = vmatpush1.msra.mxu0 0.0
    %2835 = vmatprep.subr.mxu0 0.0
    %2836 = vmatpush1.msra.mxu0 0.0
    %2837 = vmatprep.subr.mxu0 0.0
    %2838 = vmatpush1.msra.mxu0 0.0
    %2839 = vmatprep.subr.mxu0 0.0
    %2840 = vmatpush1.msra.mxu0 0.0
    %2841 = vmatprep.subr.mxu0 0.0
    %2842 = vmatpush1.msra.mxu0 0.0
    %2843 = vmatprep.subr.mxu0 0.0
    %2844 = vmatpush1.msra.mxu0 0.0
    %2845 = vmatprep.subr.mxu0 0.0
    %2846 = vmatpush1.msra.mxu0 0.0
    %2847 = vmatprep.subr.mxu0 0.0
    %2848 = vmatpush1.msra.mxu0 0.0
    %2849 = vmatprep.subr.mxu0 0.0
    %2850 = vmatpush1.msra.mxu0 0.0
    %2851 = vmatprep.subr.mxu0 0.0
    %2852 = vmatpush1.msra.mxu0 0.0
    %2853 = vmatprep.subr.mxu0 0.0
    %2854 = vmatpush1.msra.mxu0 0.0
    %2855 = vmatprep.subr.mxu0 0.0
    %2856 = vmatpush1.msra.mxu0 0.0
    %2857 = vmatprep.subr.mxu0 0.0
    %2858 = vmatpush1.msra.mxu0 0.0
    %2859 = vmatprep.subr.mxu0 0.0
    %2860 = vmatpush1.msra.mxu0 0.0
    %2861 = vmatprep.subr.mxu0 0.0
    %2862 = vmatpush1.msra.mxu0 0.0
    %2863 = vmatprep.subr.mxu0 0.0
    %2864 = vmatpush1.msra.mxu0 0.0
    %2865 = vmatprep.subr.mxu0 0.0
    %2866 = vmatpush1.msra.mxu0 0.0
    %2867 = vmatprep.subr.mxu0 0.0
    %2868 = vmatpush1.msra.mxu0 0.0
    %2869 = vmatprep.subr.mxu0 0.0
    %2870 = vmatpush1.msra.mxu0 0.0
    %2871 = vmatprep.mubr.f32.mxu0 0.0
    %2872 = vmatmul.mubr.f32.gmra.mrb[0].mxu0 %v2805
    %v2873 = vpop.f32.mrb[0].mxu0
    %v2874 = vadd.f32 0.0, %v2873
    %v2875 = vpop.f32.mrb[0].mxu0
    %2876 = vdwg.mxu0
    %v2878 = vsel %vm37, %v2874, 0
    %2880 = vmatprep.subr.mxu0 0.0
    %2881 = vmatpush1.msra.mxu0 %v2510
    %2882 = vmatprep.subr.mxu0 0.0
    %2883 = vmatpush1.msra.mxu0 0.0
    %2884 = vmatprep.subr.mxu0 0.0
    %2885 = vmatpush1.msra.mxu0 0.0
    %2886 = vmatprep.subr.mxu0 0.0
    %2887 = vmatpush1.msra.mxu0 0.0
    %2888 = vmatprep.subr.mxu0 0.0
    %2889 = vmatpush1.msra.mxu0 0.0
    %2890 = vmatprep.subr.mxu0 0.0
    %2891 = vmatpush1.msra.mxu0 0.0
    %2892 = vmatprep.subr.mxu0 0.0
    %2893 = vmatpush1.msra.mxu0 0.0
    %2894 = vmatprep.subr.mxu0 0.0
    %2895 = vmatpush1.msra.mxu0 0.0
    %2896 = vmatprep.subr.mxu0 0.0
    %2897 = vmatpush1.msra.mxu0 0.0
    %2898 = vmatprep.subr.mxu0 0.0
    %2899 = vmatpush1.msra.mxu0 0.0
    %2900 = vmatprep.subr.mxu0 0.0
    %2901 = vmatpush1.msra.mxu0 0.0
    %2902 = vmatprep.subr.mxu0 0.0
    %2903 = vmatpush1.msra.mxu0 0.0
    %2904 = vmatprep.subr.mxu0 0.0
    %2905 = vmatpush1.msra.mxu0 0.0
    %2906 = vmatprep.subr.mxu0 0.0
    %2907 = vmatpush1.msra.mxu0 0.0
    %2908 = vmatprep.subr.mxu0 0.0
    %2909 = vmatpush1.msra.mxu0 0.0
    %2910 = vmatprep.subr.mxu0 0.0
    %2911 = vmatpush1.msra.mxu0 0.0
    %2912 = vmatprep.subr.mxu0 0.0
    %2913 = vmatpush1.msra.mxu0 0.0
    %2914 = vmatprep.subr.mxu0 0.0
    %2915 = vmatpush1.msra.mxu0 0.0
    %2916 = vmatprep.subr.mxu0 0.0
    %2917 = vmatpush1.msra.mxu0 0.0
    %2918 = vmatprep.subr.mxu0 0.0
    %2919 = vmatpush1.msra.mxu0 0.0
    %2920 = vmatprep.subr.mxu0 0.0
    %2921 = vmatpush1.msra.mxu0 0.0
    %2922 = vmatprep.subr.mxu0 0.0
    %2923 = vmatpush1.msra.mxu0 0.0
    %2924 = vmatprep.subr.mxu0 0.0
    %2925 = vmatpush1.msra.mxu0 0.0
    %2926 = vmatprep.subr.mxu0 0.0
    %2927 = vmatpush1.msra.mxu0 0.0
    %2928 = vmatprep.subr.mxu0 0.0
    %2929 = vmatpush1.msra.mxu0 0.0
    %2930 = vmatprep.subr.mxu0 0.0
    %2931 = vmatpush1.msra.mxu0 0.0
    %2932 = vmatprep.subr.mxu0 0.0
    %2933 = vmatpush1.msra.mxu0 0.0
    %2934 = vmatprep.subr.mxu0 0.0
    %2935 = vmatpush1.msra.mxu0 0.0
    %2936 = vmatprep.subr.mxu0 0.0
    %2937 = vmatpush1.msra.mxu0 0.0
    %2938 = vmatprep.subr.mxu0 0.0
    %2939 = vmatpush1.msra.mxu0 0.0
    %2940 = vmatprep.subr.mxu0 0.0
    %2941 = vmatpush1.msra.mxu0 0.0
    %2942 = vmatprep.subr.mxu0 0.0
    %2943 = vmatpush1.msra.mxu0 0.0
    %2944 = vmatprep.mubr.f32.mxu0 0.0
    %2945 = vmatmul.mubr.f32.gmra.mrb[0].mxu0 %v2878
    %v2946 = vpop.f32.mrb[0].mxu0
    %v2947 = vadd.f32 0.0, %v2946
    %v2948 = vpop.f32.mrb[0].mxu0
    %2949 = vdwg.mxu0
    %v2951 = vsel %vm37, %v2947, 0
    %2953 = vmatprep.subr.mxu0 0.0
    %2954 = vmatpush1.msra.mxu0 %v2511
    %2955 = vmatprep.subr.mxu0 0.0
    %2956 = vmatpush1.msra.mxu0 0.0
    %2957 = vmatprep.subr.mxu0 0.0
    %2958 = vmatpush1.msra.mxu0 0.0
    %2959 = vmatprep.subr.mxu0 0.0
    %2960 = vmatpush1.msra.mxu0 0.0
    %2961 = vmatprep.subr.mxu0 0.0
    %2962 = vmatpush1.msra.mxu0 0.0
    %2963 = vmatprep.subr.mxu0 0.0
    %2964 = vmatpush1.msra.mxu0 0.0
    %2965 = vmatprep.subr.mxu0 0.0
    %2966 = vmatpush1.msra.mxu0 0.0
    %2967 = vmatprep.subr.mxu0 0.0
    %2968 = vmatpush1.msra.mxu0 0.0
    %2969 = vmatprep.subr.mxu0 0.0
    %2970 = vmatpush1.msra.mxu0 0.0
    %2971 = vmatprep.subr.mxu0 0.0
    %2972 = vmatpush1.msra.mxu0 0.0
    %2973 = vmatprep.subr.mxu0 0.0
    %2974 = vmatpush1.msra.mxu0 0.0
    %2975 = vmatprep.subr.mxu0 0.0
    %2976 = vmatpush1.msra.mxu0 0.0
    %2977 = vmatprep.subr.mxu0 0.0
    %2978 = vmatpush1.msra.mxu0 0.0
    %2979 = vmatprep.subr.mxu0 0.0
    %2980 = vmatpush1.msra.mxu0 0.0
    %2981 = vmatprep.subr.mxu0 0.0
    %2982 = vmatpush1.msra.mxu0 0.0
    %2983 = vmatprep.subr.mxu0 0.0
    %2984 = vmatpush1.msra.mxu0 0.0
    %2985 = vmatprep.subr.mxu0 0.0
    %2986 = vmatpush1.msra.mxu0 0.0
    %2987 = vmatprep.subr.mxu0 0.0
    %2988 = vmatpush1.msra.mxu0 0.0
    %2989 = vmatprep.subr.mxu0 0.0
    %2990 = vmatpush1.msra.mxu0 0.0
    %2991 = vmatprep.subr.mxu0 0.0
    %2992 = vmatpush1.msra.mxu0 0.0
    %2993 = vmatprep.subr.mxu0 0.0
    %2994 = vmatpush1.msra.mxu0 0.0
    %2995 = vmatprep.subr.mxu0 0.0
    %2996 = vmatpush1.msra.mxu0 0.0
    %2997 = vmatprep.subr.mxu0 0.0
    %2998 = vmatpush1.msra.mxu0 0.0
    %2999 = vmatprep.subr.mxu0 0.0
    %3000 = vmatpush1.msra.mxu0 0.0
    %3001 = vmatprep.subr.mxu0 0.0
    %3002 = vmatpush1.msra.mxu0 0.0
    %3003 = vmatprep.subr.mxu0 0.0
    %3004 = vmatpush1.msra.mxu0 0.0
    %3005 = vmatprep.subr.mxu0 0.0
    %3006 = vmatpush1.msra.mxu0 0.0
    %3007 = vmatprep.subr.mxu0 0.0
    %3008 = vmatpush1.msra.mxu0 0.0
    %3009 = vmatprep.subr.mxu0 0.0
    %3010 = vmatpush1.msra.mxu0 0.0
    %3011 = vmatprep.subr.mxu0 0.0
    %3012 = vmatpush1.msra.mxu0 0.0
    %3013 = vmatprep.subr.mxu0 0.0
    %3014 = vmatpush1.msra.mxu0 0.0
    %3015 = vmatprep.subr.mxu0 0.0
    %3016 = vmatpush1.msra.mxu0 0.0
    %3017 = vmatprep.mubr.f32.mxu0 0.0
    %3018 = vmatmul.mubr.f32.gmra.mrb[0].mxu0 %v2951
    %v3019 = vpop.f32.mrb[0].mxu0
    %v3020 = vadd.f32 0.0, %v3019
    %v3021 = vpop.f32.mrb[0].mxu0
    %3022 = vdwg.mxu0
    %v3024 = vsel %vm37, %v3020, 0
    %3026 = vmatprep.subr.mxu0 0.0
    %3027 = vmatpush1.msra.mxu0 %v2512
    %3028 = vmatprep.subr.mxu0 0.0
    %3029 = vmatpush1.msra.mxu0 0.0
    %3030 = vmatprep.subr.mxu0 0.0
    %3031 = vmatpush1.msra.mxu0 0.0
    %3032 = vmatprep.subr.mxu0 0.0
    %3033 = vmatpush1.msra.mxu0 0.0
    %3034 = vmatprep.subr.mxu0 0.0
    %3035 = vmatpush1.msra.mxu0 0.0
    %3036 = vmatprep.subr.mxu0 0.0
    %3037 = vmatpush1.msra.mxu0 0.0
    %3038 = vmatprep.subr.mxu0 0.0
    %3039 = vmatpush1.msra.mxu0 0.0
    %3040 = vmatprep.subr.mxu0 0.0
    %3041 = vmatpush1.msra.mxu0 0.0
    %3042 = vmatprep.subr.mxu0 0.0
    %3043 = vmatpush1.msra.mxu0 0.0
    %3044 = vmatprep.subr.mxu0 0.0
    %3045 = vmatpush1.msra.mxu0 0.0
    %3046 = vmatprep.subr.mxu0 0.0
    %3047 = vmatpush1.msra.mxu0 0.0
    %3048 = vmatprep.subr.mxu0 0.0
    %3049 = vmatpush1.msra.mxu0 0.0
    %3050 = vmatprep.subr.mxu0 0.0
    %3051 = vmatpush1.msra.mxu0 0.0
    %3052 = vmatprep.subr.mxu0 0.0
    %3053 = vmatpush1.msra.mxu0 0.0
    %3054 = vmatprep.subr.mxu0 0.0
    %3055 = vmatpush1.msra.mxu0 0.0
    %3056 = vmatprep.subr.mxu0 0.0
    %3057 = vmatpush1.msra.mxu0 0.0
    %3058 = vmatprep.subr.mxu0 0.0
    %3059 = vmatpush1.msra.mxu0 0.0
    %3060 = vmatprep.subr.mxu0 0.0
    %3061 = vmatpush1.msra.mxu0 0.0
    %3062 = vmatprep.subr.mxu0 0.0
    %3063 = vmatpush1.msra.mxu0 0.0
    %3064 = vmatprep.subr.mxu0 0.0
    %3065 = vmatpush1.msra.mxu0 0.0
    %3066 = vmatprep.subr.mxu0 0.0
    %3067 = vmatpush1.msra.mxu0 0.0
    %3068 = vmatprep.subr.mxu0 0.0
    %3069 = vmatpush1.msra.mxu0 0.0
    %3070 = vmatprep.subr.mxu0 0.0
    %3071 = vmatpush1.msra.mxu0 0.0
    %3072 = vmatprep.subr.mxu0 0.0
    %3073 = vmatpush1.msra.mxu0 0.0
    %3074 = vmatprep.subr.mxu0 0.0
    %3075 = vmatpush1.msra.mxu0 0.0
    %3076 = vmatprep.subr.mxu0 0.0
    %3077 = vmatpush1.msra.mxu0 0.0
    %3078 = vmatprep.subr.mxu0 0.0
    %3079 = vmatpush1.msra.mxu0 0.0
    %3080 = vmatprep.subr.mxu0 0.0
    %3081 = vmatpush1.msra.mxu0 0.0
    %3082 = vmatprep.subr.mxu0 0.0
    %3083 = vmatpush1.msra.mxu0 0.0
    %3084 = vmatprep.subr.mxu0 0.0
    %3085 = vmatpush1.msra.mxu0 0.0
    %3086 = vmatprep.subr.mxu0 0.0
    %3087 = vmatpush1.msra.mxu0 0.0
    %3088 = vmatprep.subr.mxu0 0.0
    %3089 = vmatpush1.msra.mxu0 0.0
    %3090 = vmatprep.mubr.f32.mxu0 0.0
    %3091 = vmatmul.mubr.f32.gmra.mrb[0].mxu0 %v3024
    %v3092 = vpop.f32.mrb[0].mxu0
    %v3093 = vadd.f32 0.0, %v3092
    %v3094 = vpop.f32.mrb[0].mxu0
    %3095 = vdwg.mxu0
    %v3096 = vrot.slane %v2655, 7
    %v3098 = vrot.slane %v2728, 6
    %v3100 = vrot.slane %v2801, 5
    %v3102 = vrot.slane %v2874, 4
    %v3104 = vrot.slane %v2947, 3
    %v3106 = vrot.slane %v3020, 2
    %v3109 = vrot.slane %v3093, 1
    %v3111 = vsel %vm637, %v2582, %v3096
    %v3112 = vsel %vm639, %v3111, %v3098
    %v3113 = vsel %vm641, %v3112, %v3100
    %v3114 = vsel %vm643, %v3113, %v3102
    %v3115 = vsel %vm645, %v3114, %v3104
    %v3116 = vsel %vm647, %v3115, %v3106
    %v3117 = vsel %vm649, %v3116, %v3109
    %s3118 = scalar_lea.vmem [#allocation5], 32
    %3119 = vst [vmem:[%s3118] sm:$0xff] %v3117
    %s3120 = smul.u32 40, 8
    %s3121 = scalar_lea.vmem [#allocation2], %s3120
    %v3122 = vld [vmem:[%s3121] sm:$0xff]
    %v3123 = vld [vmem:[%s3121 + $0x8] sm:$0xff]
    %v3124 = vld [vmem:[%s3121 + $0x10] sm:$0xff]
    %v3125 = vld [vmem:[%s3121 + $0x18] sm:$0xff]
    %v3126 = vld [vmem:[%s3121 + $0x20] sm:$0xff]
    %v3127 = vld [vmem:[%s3121 + $0x28] sm:$0xff]
    %v3128 = vld [vmem:[%s3121 + $0x30] sm:$0xff]
    %v3129 = vld [vmem:[%s3121 + $0x38] sm:$0xff]
    %v3130 = vsel %vm37, %v3093, 0
    %3132 = vmatprep.subr.mxu0 0.0
    %3133 = vmatpush1.msra.mxu0 %v3122
    %3134 = vmatprep.subr.mxu0 0.0
    %3135 = vmatpush1.msra.mxu0 0.0
    %3136 = vmatprep.subr.mxu0 0.0
    %3137 = vmatpush1.msra.mxu0 0.0
    %3138 = vmatprep.subr.mxu0 0.0
    %3139 = vmatpush1.msra.mxu0 0.0
    %3140 = vmatprep.subr.mxu0 0.0
    %3141 = vmatpush1.msra.mxu0 0.0
    %3142 = vmatprep.subr.mxu0 0.0
    %3143 = vmatpush1.msra.mxu0 0.0
    %3144 = vmatprep.subr.mxu0 0.0
    %3145 = vmatpush1.msra.mxu0 0.0
    %3146 = vmatprep.subr.mxu0 0.0
    %3147 = vmatpush1.msra.mxu0 0.0
    %3148 = vmatprep.subr.mxu0 0.0
    %3149 = vmatpush1.msra.mxu0 0.0
    %3150 = vmatprep.subr.mxu0 0.0
    %3151 = vmatpush1.msra.mxu0 0.0
    %3152 = vmatprep.subr.mxu0 0.0
    %3153 = vmatpush1.msra.mxu0 0.0
    %3154 = vmatprep.subr.mxu0 0.0
    %3155 = vmatpush1.msra.mxu0 0.0
    %3156 = vmatprep.subr.mxu0 0.0
    %3157 = vmatpush1.msra.mxu0 0.0
    %3158 = vmatprep.subr.mxu0 0.0
    %3159 = vmatpush1.msra.mxu0 0.0
    %3160 = vmatprep.subr.mxu0 0.0
    %3161 = vmatpush1.msra.mxu0 0.0
    %3162 = vmatprep.subr.mxu0 0.0
    %3163 = vmatpush1.msra.mxu0 0.0
    %3164 = vmatprep.subr.mxu0 0.0
    %3165 = vmatpush1.msra.mxu0 0.0
    %3166 = vmatprep.subr.mxu0 0.0
    %3167 = vmatpush1.msra.mxu0 0.0
    %3168 = vmatprep.subr.mxu0 0.0
    %3169 = vmatpush1.msra.mxu0 0.0
    %3170 = vmatprep.subr.mxu0 0.0
    %3171 = vmatpush1.msra.mxu0 0.0
    %3172 = vmatprep.subr.mxu0 0.0
    %3173 = vmatpush1.msra.mxu0 0.0
    %3174 = vmatprep.subr.mxu0 0.0
    %3175 = vmatpush1.msra.mxu0 0.0
    %3176 = vmatprep.subr.mxu0 0.0
    %3177 = vmatpush1.msra.mxu0 0.0
    %3178 = vmatprep.subr.mxu0 0.0
    %3179 = vmatpush1.msra.mxu0 0.0
    %3180 = vmatprep.subr.mxu0 0.0
    %3181 = vmatpush1.msra.mxu0 0.0
    %3182 = vmatprep.subr.mxu0 0.0
    %3183 = vmatpush1.msra.mxu0 0.0
    %3184 = vmatprep.subr.mxu0 0.0
    %3185 = vmatpush1.msra.mxu0 0.0
    %3186 = vmatprep.subr.mxu0 0.0
    %3187 = vmatpush1.msra.mxu0 0.0
    %3188 = vmatprep.subr.mxu0 0.0
    %3189 = vmatpush1.msra.mxu0 0.0
    %3190 = vmatprep.subr.mxu0 0.0
    %3191 = vmatpush1.msra.mxu0 0.0
    %3192 = vmatprep.subr.mxu0 0.0
    %3193 = vmatpush1.msra.mxu0 0.0
    %3194 = vmatprep.subr.mxu0 0.0
    %3195 = vmatpush1.msra.mxu0 0.0
    %3196 = vmatprep.mubr.f32.mxu0 0.0
    %3197 = vmatmul.mubr.f32.gmra.mrb[0].mxu0 %v3130
    %v3198 = vpop.f32.mrb[0].mxu0
    %v3199 = vadd.f32 0.0, %v3198
    %v3200 = vpop.f32.mrb[0].mxu0
    %3201 = vdwg.mxu0
    %v3203 = vsel %vm37, %v3199, 0
    %3205 = vmatprep.subr.mxu0 0.0
    %3206 = vmatpush1.msra.mxu0 %v3123
    %3207 = vmatprep.subr.mxu0 0.0
    %3208 = vmatpush1.msra.mxu0 0.0
    %3209 = vmatprep.subr.mxu0 0.0
    %3210 = vmatpush1.msra.mxu0 0.0
    %3211 = vmatprep.subr.mxu0 0.0
    %3212 = vmatpush1.msra.mxu0 0.0
    %3213 = vmatprep.subr.mxu0 0.0
    %3214 = vmatpush1.msra.mxu0 0.0
    %3215 = vmatprep.subr.mxu0 0.0
    %3216 = vmatpush1.msra.mxu0 0.0
    %3217 = vmatprep.subr.mxu0 0.0
    %3218 = vmatpush1.msra.mxu0 0.0
    %3219 = vmatprep.subr.mxu0 0.0
    %3220 = vmatpush1.msra.mxu0 0.0
    %3221 = vmatprep.subr.mxu0 0.0
    %3222 = vmatpush1.msra.mxu0 0.0
    %3223 = vmatprep.subr.mxu0 0.0
    %3224 = vmatpush1.msra.mxu0 0.0
    %3225 = vmatprep.subr.mxu0 0.0
    %3226 = vmatpush1.msra.mxu0 0.0
    %3227 = vmatprep.subr.mxu0 0.0
    %3228 = vmatpush1.msra.mxu0 0.0
    %3229 = vmatprep.subr.mxu0 0.0
    %3230 = vmatpush1.msra.mxu0 0.0
    %3231 = vmatprep.subr.mxu0 0.0
    %3232 = vmatpush1.msra.mxu0 0.0
    %3233 = vmatprep.subr.mxu0 0.0
    %3234 = vmatpush1.msra.mxu0 0.0
    %3235 = vmatprep.subr.mxu0 0.0
    %3236 = vmatpush1.msra.mxu0 0.0
    %3237 = vmatprep.subr.mxu0 0.0
    %3238 = vmatpush1.msra.mxu0 0.0
    %3239 = vmatprep.subr.mxu0 0.0
    %3240 = vmatpush1.msra.mxu0 0.0
    %3241 = vmatprep.subr.mxu0 0.0
    %3242 = vmatpush1.msra.mxu0 0.0
    %3243 = vmatprep.subr.mxu0 0.0
    %3244 = vmatpush1.msra.mxu0 0.0
    %3245 = vmatprep.subr.mxu0 0.0
    %3246 = vmatpush1.msra.mxu0 0.0
    %3247 = vmatprep.subr.mxu0 0.0
    %3248 = vmatpush1.msra.mxu0 0.0
    %3249 = vmatprep.subr.mxu0 0.0
    %3250 = vmatpush1.msra.mxu0 0.0
    %3251 = vmatprep.subr.mxu0 0.0
    %3252 = vmatpush1.msra.mxu0 0.0
    %3253 = vmatprep.subr.mxu0 0.0
    %3254 = vmatpush1.msra.mxu0 0.0
    %3255 = vmatprep.subr.mxu0 0.0
    %3256 = vmatpush1.msra.mxu0 0.0
    %3257 = vmatprep.subr.mxu0 0.0
    %3258 = vmatpush1.msra.mxu0 0.0
    %3259 = vmatprep.subr.mxu0 0.0
    %3260 = vmatpush1.msra.mxu0 0.0
    %3261 = vmatprep.subr.mxu0 0.0
    %3262 = vmatpush1.msra.mxu0 0.0
    %3263 = vmatprep.subr.mxu0 0.0
    %3264 = vmatpush1.msra.mxu0 0.0
    %3265 = vmatprep.subr.mxu0 0.0
    %3266 = vmatpush1.msra.mxu0 0.0
    %3267 = vmatprep.subr.mxu0 0.0
    %3268 = vmatpush1.msra.mxu0 0.0
    %3269 = vmatprep.mubr.f32.mxu0 0.0
    %3270 = vmatmul.mubr.f32.gmra.mrb[0].mxu0 %v3203
    %v3271 = vpop.f32.mrb[0].mxu0
    %v3272 = vadd.f32 0.0, %v3271
    %v3273 = vpop.f32.mrb[0].mxu0
    %3274 = vdwg.mxu0
    %v3276 = vsel %vm37, %v3272, 0
    %3278 = vmatprep.subr.mxu0 0.0
    %3279 = vmatpush1.msra.mxu0 %v3124
    %3280 = vmatprep.subr.mxu0 0.0
    %3281 = vmatpush1.msra.mxu0 0.0
    %3282 = vmatprep.subr.mxu0 0.0
    %3283 = vmatpush1.msra.mxu0 0.0
    %3284 = vmatprep.subr.mxu0 0.0
    %3285 = vmatpush1.msra.mxu0 0.0
    %3286 = vmatprep.subr.mxu0 0.0
    %3287 = vmatpush1.msra.mxu0 0.0
    %3288 = vmatprep.subr.mxu0 0.0
    %3289 = vmatpush1.msra.mxu0 0.0
    %3290 = vmatprep.subr.mxu0 0.0
    %3291 = vmatpush1.msra.mxu0 0.0
    %3292 = vmatprep.subr.mxu0 0.0
    %3293 = vmatpush1.msra.mxu0 0.0
    %3294 = vmatprep.subr.mxu0 0.0
    %3295 = vmatpush1.msra.mxu0 0.0
    %3296 = vmatprep.subr.mxu0 0.0
    %3297 = vmatpush1.msra.mxu0 0.0
    %3298 = vmatprep.subr.mxu0 0.0
    %3299 = vmatpush1.msra.mxu0 0.0
    %3300 = vmatprep.subr.mxu0 0.0
    %3301 = vmatpush1.msra.mxu0 0.0
    %3302 = vmatprep.subr.mxu0 0.0
    %3303 = vmatpush1.msra.mxu0 0.0
    %3304 = vmatprep.subr.mxu0 0.0
    %3305 = vmatpush1.msra.mxu0 0.0
    %3306 = vmatprep.subr.mxu0 0.0
    %3307 = vmatpush1.msra.mxu0 0.0
    %3308 = vmatprep.subr.mxu0 0.0
    %3309 = vmatpush1.msra.mxu0 0.0
    %3310 = vmatprep.subr.mxu0 0.0
    %3311 = vmatpush1.msra.mxu0 0.0
    %3312 = vmatprep.subr.mxu0 0.0
    %3313 = vmatpush1.msra.mxu0 0.0
    %3314 = vmatprep.subr.mxu0 0.0
    %3315 = vmatpush1.msra.mxu0 0.0
    %3316 = vmatprep.subr.mxu0 0.0
    %3317 = vmatpush1.msra.mxu0 0.0
    %3318 = vmatprep.subr.mxu0 0.0
    %3319 = vmatpush1.msra.mxu0 0.0
    %3320 = vmatprep.subr.mxu0 0.0
    %3321 = vmatpush1.msra.mxu0 0.0
    %3322 = vmatprep.subr.mxu0 0.0
    %3323 = vmatpush1.msra.mxu0 0.0
    %3324 = vmatprep.subr.mxu0 0.0
    %3325 = vmatpush1.msra.mxu0 0.0
    %3326 = vmatprep.subr.mxu0 0.0
    %3327 = vmatpush1.msra.mxu0 0.0
    %3328 = vmatprep.subr.mxu0 0.0
    %3329 = vmatpush1.msra.mxu0 0.0
    %3330 = vmatprep.subr.mxu0 0.0
    %3331 = vmatpush1.msra.mxu0 0.0
    %3332 = vmatprep.subr.mxu0 0.0
    %3333 = vmatpush1.msra.mxu0 0.0
    %3334 = vmatprep.subr.mxu0 0.0
    %3335 = vmatpush1.msra.mxu0 0.0
    %3336 = vmatprep.subr.mxu0 0.0
    %3337 = vmatpush1.msra.mxu0 0.0
    %3338 = vmatprep.subr.mxu0 0.0
    %3339 = vmatpush1.msra.mxu0 0.0
    %3340 = vmatprep.subr.mxu0 0.0
    %3341 = vmatpush1.msra.mxu0 0.0
    %3342 = vmatprep.mubr.f32.mxu0 0.0
    %3343 = vmatmul.mubr.f32.gmra.mrb[0].mxu0 %v3276
    %v3344 = vpop.f32.mrb[0].mxu0
    %v3345 = vadd.f32 0.0, %v3344
    %v3346 = vpop.f32.mrb[0].mxu0
    %3347 = vdwg.mxu0
    %v3349 = vsel %vm37, %v3345, 0
    %3351 = vmatprep.subr.mxu0 0.0
    %3352 = vmatpush1.msra.mxu0 %v3125
    %3353 = vmatprep.subr.mxu0 0.0
    %3354 = vmatpush1.msra.mxu0 0.0
    %3355 = vmatprep.subr.mxu0 0.0
    %3356 = vmatpush1.msra.mxu0 0.0
    %3357 = vmatprep.subr.mxu0 0.0
    %3358 = vmatpush1.msra.mxu0 0.0
    %3359 = vmatprep.subr.mxu0 0.0
    %3360 = vmatpush1.msra.mxu0 0.0
    %3361 = vmatprep.subr.mxu0 0.0
    %3362 = vmatpush1.msra.mxu0 0.0
    %3363 = vmatprep.subr.mxu0 0.0
    %3364 = vmatpush1.msra.mxu0 0.0
    %3365 = vmatprep.subr.mxu0 0.0
    %3366 = vmatpush1.msra.mxu0 0.0
    %3367 = vmatprep.subr.mxu0 0.0
    %3368 = vmatpush1.msra.mxu0 0.0
    %3369 = vmatprep.subr.mxu0 0.0
    %3370 = vmatpush1.msra.mxu0 0.0
    %3371 = vmatprep.subr.mxu0 0.0
    %3372 = vmatpush1.msra.mxu0 0.0
    %3373 = vmatprep.subr.mxu0 0.0
    %3374 = vmatpush1.msra.mxu0 0.0
    %3375 = vmatprep.subr.mxu0 0.0
    %3376 = vmatpush1.msra.mxu0 0.0
    %3377 = vmatprep.subr.mxu0 0.0
    %3378 = vmatpush1.msra.mxu0 0.0
    %3379 = vmatprep.subr.mxu0 0.0
    %3380 = vmatpush1.msra.mxu0 0.0
    %3381 = vmatprep.subr.mxu0 0.0
    %3382 = vmatpush1.msra.mxu0 0.0
    %3383 = vmatprep.subr.mxu0 0.0
    %3384 = vmatpush1.msra.mxu0 0.0
    %3385 = vmatprep.subr.mxu0 0.0
    %3386 = vmatpush1.msra.mxu0 0.0
    %3387 = vmatprep.subr.mxu0 0.0
    %3388 = vmatpush1.msra.mxu0 0.0
    %3389 = vmatprep.subr.mxu0 0.0
    %3390 = vmatpush1.msra.mxu0 0.0
    %3391 = vmatprep.subr.mxu0 0.0
    %3392 = vmatpush1.msra.mxu0 0.0
    %3393 = vmatprep.subr.mxu0 0.0
    %3394 = vmatpush1.msra.mxu0 0.0
    %3395 = vmatprep.subr.mxu0 0.0
    %3396 = vmatpush1.msra.mxu0 0.0
    %3397 = vmatprep.subr.mxu0 0.0
    %3398 = vmatpush1.msra.mxu0 0.0
    %3399 = vmatprep.subr.mxu0 0.0
    %3400 = vmatpush1.msra.mxu0 0.0
    %3401 = vmatprep.subr.mxu0 0.0
    %3402 = vmatpush1.msra.mxu0 0.0
    %3403 = vmatprep.subr.mxu0 0.0
    %3404 = vmatpush1.msra.mxu0 0.0
    %3405 = vmatprep.subr.mxu0 0.0
    %3406 = vmatpush1.msra.mxu0 0.0
    %3407 = vmatprep.subr.mxu0 0.0
    %3408 = vmatpush1.msra.mxu0 0.0
    %3409 = vmatprep.subr.mxu0 0.0
    %3410 = vmatpush1.msra.mxu0 0.0
    %3411 = vmatprep.subr.mxu0 0.0
    %3412 = vmatpush1.msra.mxu0 0.0
    %3413 = vmatprep.subr.mxu0 0.0
    %3414 = vmatpush1.msra.mxu0 0.0
    %3415 = vmatprep.mubr.f32.mxu0 0.0
    %3416 = vmatmul.mubr.f32.gmra.mrb[0].mxu0 %v3349
    %v3417 = vpop.f32.mrb[0].mxu0
    %v3418 = vadd.f32 0.0, %v3417
    %v3419 = vpop.f32.mrb[0].mxu0
    %3420 = vdwg.mxu0
    %v3422 = vsel %vm37, %v3418, 0
    %3424 = vmatprep.subr.mxu0 0.0
    %3425 = vmatpush1.msra.mxu0 %v3126
    %3426 = vmatprep.subr.mxu0 0.0
    %3427 = vmatpush1.msra.mxu0 0.0
    %3428 = vmatprep.subr.mxu0 0.0
    %3429 = vmatpush1.msra.mxu0 0.0
    %3430 = vmatprep.subr.mxu0 0.0
    %3431 = vmatpush1.msra.mxu0 0.0
    %3432 = vmatprep.subr.mxu0 0.0
    %3433 = vmatpush1.msra.mxu0 0.0
    %3434 = vmatprep.subr.mxu0 0.0
    %3435 = vmatpush1.msra.mxu0 0.0
    %3436 = vmatprep.subr.mxu0 0.0
    %3437 = vmatpush1.msra.mxu0 0.0
    %3438 = vmatprep.subr.mxu0 0.0
    %3439 = vmatpush1.msra.mxu0 0.0
    %3440 = vmatprep.subr.mxu0 0.0
    %3441 = vmatpush1.msra.mxu0 0.0
    %3442 = vmatprep.subr.mxu0 0.0
    %3443 = vmatpush1.msra.mxu0 0.0
    %3444 = vmatprep.subr.mxu0 0.0
    %3445 = vmatpush1.msra.mxu0 0.0
    %3446 = vmatprep.subr.mxu0 0.0
    %3447 = vmatpush1.msra.mxu0 0.0
    %3448 = vmatprep.subr.mxu0 0.0
    %3449 = vmatpush1.msra.mxu0 0.0
    %3450 = vmatprep.subr.mxu0 0.0
    %3451 = vmatpush1.msra.mxu0 0.0
    %3452 = vmatprep.subr.mxu0 0.0
    %3453 = vmatpush1.msra.mxu0 0.0
    %3454 = vmatprep.subr.mxu0 0.0
    %3455 = vmatpush1.msra.mxu0 0.0
    %3456 = vmatprep.subr.mxu0 0.0
    %3457 = vmatpush1.msra.mxu0 0.0
    %3458 = vmatprep.subr.mxu0 0.0
    %3459 = vmatpush1.msra.mxu0 0.0
    %3460 = vmatprep.subr.mxu0 0.0
    %3461 = vmatpush1.msra.mxu0 0.0
    %3462 = vmatprep.subr.mxu0 0.0
    %3463 = vmatpush1.msra.mxu0 0.0
    %3464 = vmatprep.subr.mxu0 0.0
    %3465 = vmatpush1.msra.mxu0 0.0
    %3466 = vmatprep.subr.mxu0 0.0
    %3467 = vmatpush1.msra.mxu0 0.0
    %3468 = vmatprep.subr.mxu0 0.0
    %3469 = vmatpush1.msra.mxu0 0.0
    %3470 = vmatprep.subr.mxu0 0.0
    %3471 = vmatpush1.msra.mxu0 0.0
    %3472 = vmatprep.subr.mxu0 0.0
    %3473 = vmatpush1.msra.mxu0 0.0
    %3474 = vmatprep.subr.mxu0 0.0
    %3475 = vmatpush1.msra.mxu0 0.0
    %3476 = vmatprep.subr.mxu0 0.0
    %3477 = vmatpush1.msra.mxu0 0.0
    %3478 = vmatprep.subr.mxu0 0.0
    %3479 = vmatpush1.msra.mxu0 0.0
    %3480 = vmatprep.subr.mxu0 0.0
    %3481 = vmatpush1.msra.mxu0 0.0
    %3482 = vmatprep.subr.mxu0 0.0
    %3483 = vmatpush1.msra.mxu0 0.0
    %3484 = vmatprep.subr.mxu0 0.0
    %3485 = vmatpush1.msra.mxu0 0.0
    %3486 = vmatprep.subr.mxu0 0.0
    %3487 = vmatpush1.msra.mxu0 0.0
    %3488 = vmatprep.mubr.f32.mxu0 0.0
    %3489 = vmatmul.mubr.f32.gmra.mrb[0].mxu0 %v3422
    %v3490 = vpop.f32.mrb[0].mxu0
    %v3491 = vadd.f32 0.0, %v3490
    %v3492 = vpop.f32.mrb[0].mxu0
    %3493 = vdwg.mxu0
    %v3495 = vsel %vm37, %v3491, 0
    %3497 = vmatprep.subr.mxu0 0.0
    %3498 = vmatpush1.msra.mxu0 %v3127
    %3499 = vmatprep.subr.mxu0 0.0
    %3500 = vmatpush1.msra.mxu0 0.0
    %3501 = vmatprep.subr.mxu0 0.0
    %3502 = vmatpush1.msra.mxu0 0.0
    %3503 = vmatprep.subr.mxu0 0.0
    %3504 = vmatpush1.msra.mxu0 0.0
    %3505 = vmatprep.subr.mxu0 0.0
    %3506 = vmatpush1.msra.mxu0 0.0
    %3507 = vmatprep.subr.mxu0 0.0
    %3508 = vmatpush1.msra.mxu0 0.0
    %3509 = vmatprep.subr.mxu0 0.0
    %3510 = vmatpush1.msra.mxu0 0.0
    %3511 = vmatprep.subr.mxu0 0.0
    %3512 = vmatpush1.msra.mxu0 0.0
    %3513 = vmatprep.subr.mxu0 0.0
    %3514 = vmatpush1.msra.mxu0 0.0
    %3515 = vmatprep.subr.mxu0 0.0
    %3516 = vmatpush1.msra.mxu0 0.0
    %3517 = vmatprep.subr.mxu0 0.0
    %3518 = vmatpush1.msra.mxu0 0.0
    %3519 = vmatprep.subr.mxu0 0.0
    %3520 = vmatpush1.msra.mxu0 0.0
    %3521 = vmatprep.subr.mxu0 0.0
    %3522 = vmatpush1.msra.mxu0 0.0
    %3523 = vmatprep.subr.mxu0 0.0
    %3524 = vmatpush1.msra.mxu0 0.0
    %3525 = vmatprep.subr.mxu0 0.0
    %3526 = vmatpush1.msra.mxu0 0.0
    %3527 = vmatprep.subr.mxu0 0.0
    %3528 = vmatpush1.msra.mxu0 0.0
    %3529 = vmatprep.subr.mxu0 0.0
    %3530 = vmatpush1.msra.mxu0 0.0
    %3531 = vmatprep.subr.mxu0 0.0
    %3532 = vmatpush1.msra.mxu0 0.0
    %3533 = vmatprep.subr.mxu0 0.0
    %3534 = vmatpush1.msra.mxu0 0.0
    %3535 = vmatprep.subr.mxu0 0.0
    %3536 = vmatpush1.msra.mxu0 0.0
    %3537 = vmatprep.subr.mxu0 0.0
    %3538 = vmatpush1.msra.mxu0 0.0
    %3539 = vmatprep.subr.mxu0 0.0
    %3540 = vmatpush1.msra.mxu0 0.0
    %3541 = vmatprep.subr.mxu0 0.0
    %3542 = vmatpush1.msra.mxu0 0.0
    %3543 = vmatprep.subr.mxu0 0.0
    %3544 = vmatpush1.msra.mxu0 0.0
    %3545 = vmatprep.subr.mxu0 0.0
    %3546 = vmatpush1.msra.mxu0 0.0
    %3547 = vmatprep.subr.mxu0 0.0
    %3548 = vmatpush1.msra.mxu0 0.0
    %3549 = vmatprep.subr.mxu0 0.0
    %3550 = vmatpush1.msra.mxu0 0.0
    %3551 = vmatprep.subr.mxu0 0.0
    %3552 = vmatpush1.msra.mxu0 0.0
    %3553 = vmatprep.subr.mxu0 0.0
    %3554 = vmatpush1.msra.mxu0 0.0
    %3555 = vmatprep.subr.mxu0 0.0
    %3556 = vmatpush1.msra.mxu0 0.0
    %3557 = vmatprep.subr.mxu0 0.0
    %3558 = vmatpush1.msra.mxu0 0.0
    %3559 = vmatprep.subr.mxu0 0.0
    %3560 = vmatpush1.msra.mxu0 0.0
    %3561 = vmatprep.mubr.f32.mxu0 0.0
    %3562 = vmatmul.mubr.f32.gmra.mrb[0].mxu0 %v3495
    %v3563 = vpop.f32.mrb[0].mxu0
    %v3564 = vadd.f32 0.0, %v3563
    %v3565 = vpop.f32.mrb[0].mxu0
    %3566 = vdwg.mxu0
    %v3568 = vsel %vm37, %v3564, 0
    %3570 = vmatprep.subr.mxu0 0.0
    %3571 = vmatpush1.msra.mxu0 %v3128
    %3572 = vmatprep.subr.mxu0 0.0
    %3573 = vmatpush1.msra.mxu0 0.0
    %3574 = vmatprep.subr.mxu0 0.0
    %3575 = vmatpush1.msra.mxu0 0.0
    %3576 = vmatprep.subr.mxu0 0.0
    %3577 = vmatpush1.msra.mxu0 0.0
    %3578 = vmatprep.subr.mxu0 0.0
    %3579 = vmatpush1.msra.mxu0 0.0
    %3580 = vmatprep.subr.mxu0 0.0
    %3581 = vmatpush1.msra.mxu0 0.0
    %3582 = vmatprep.subr.mxu0 0.0
    %3583 = vmatpush1.msra.mxu0 0.0
    %3584 = vmatprep.subr.mxu0 0.0
    %3585 = vmatpush1.msra.mxu0 0.0
    %3586 = vmatprep.subr.mxu0 0.0
    %3587 = vmatpush1.msra.mxu0 0.0
    %3588 = vmatprep.subr.mxu0 0.0
    %3589 = vmatpush1.msra.mxu0 0.0
    %3590 = vmatprep.subr.mxu0 0.0
    %3591 = vmatpush1.msra.mxu0 0.0
    %3592 = vmatprep.subr.mxu0 0.0
    %3593 = vmatpush1.msra.mxu0 0.0
    %3594 = vmatprep.subr.mxu0 0.0
    %3595 = vmatpush1.msra.mxu0 0.0
    %3596 = vmatprep.subr.mxu0 0.0
    %3597 = vmatpush1.msra.mxu0 0.0
    %3598 = vmatprep.subr.mxu0 0.0
    %3599 = vmatpush1.msra.mxu0 0.0
    %3600 = vmatprep.subr.mxu0 0.0
    %3601 = vmatpush1.msra.mxu0 0.0
    %3602 = vmatprep.subr.mxu0 0.0
    %3603 = vmatpush1.msra.mxu0 0.0
    %3604 = vmatprep.subr.mxu0 0.0
    %3605 = vmatpush1.msra.mxu0 0.0
    %3606 = vmatprep.subr.mxu0 0.0
    %3607 = vmatpush1.msra.mxu0 0.0
    %3608 = vmatprep.subr.mxu0 0.0
    %3609 = vmatpush1.msra.mxu0 0.0
    %3610 = vmatprep.subr.mxu0 0.0
    %3611 = vmatpush1.msra.mxu0 0.0
    %3612 = vmatprep.subr.mxu0 0.0
    %3613 = vmatpush1.msra.mxu0 0.0
    %3614 = vmatprep.subr.mxu0 0.0
    %3615 = vmatpush1.msra.mxu0 0.0
    %3616 = vmatprep.subr.mxu0 0.0
    %3617 = vmatpush1.msra.mxu0 0.0
    %3618 = vmatprep.subr.mxu0 0.0
    %3619 = vmatpush1.msra.mxu0 0.0
    %3620 = vmatprep.subr.mxu0 0.0
    %3621 = vmatpush1.msra.mxu0 0.0
    %3622 = vmatprep.subr.mxu0 0.0
    %3623 = vmatpush1.msra.mxu0 0.0
    %3624 = vmatprep.subr.mxu0 0.0
    %3625 = vmatpush1.msra.mxu0 0.0
    %3626 = vmatprep.subr.mxu0 0.0
    %3627 = vmatpush1.msra.mxu0 0.0
    %3628 = vmatprep.subr.mxu0 0.0
    %3629 = vmatpush1.msra.mxu0 0.0
    %3630 = vmatprep.subr.mxu0 0.0
    %3631 = vmatpush1.msra.mxu0 0.0
    %3632 = vmatprep.subr.mxu0 0.0
    %3633 = vmatpush1.msra.mxu0 0.0
    %3634 = vmatprep.mubr.f32.mxu0 0.0
    %3635 = vmatmul.mubr.f32.gmra.mrb[0].mxu0 %v3568
    %v3636 = vpop.f32.mrb[0].mxu0
    %v3637 = vadd.f32 0.0, %v3636
    %v3638 = vpop.f32.mrb[0].mxu0
    %3639 = vdwg.mxu0
    %v3641 = vsel %vm37, %v3637, 0
    %3643 = vmatprep.subr.mxu0 0.0
    %3644 = vmatpush1.msra.mxu0 %v3129
    %3645 = vmatprep.subr.mxu0 0.0
    %3646 = vmatpush1.msra.mxu0 0.0
    %3647 = vmatprep.subr.mxu0 0.0
    %3648 = vmatpush1.msra.mxu0 0.0
    %3649 = vmatprep.subr.mxu0 0.0
    %3650 = vmatpush1.msra.mxu0 0.0
    %3651 = vmatprep.subr.mxu0 0.0
    %3652 = vmatpush1.msra.mxu0 0.0
    %3653 = vmatprep.subr.mxu0 0.0
    %3654 = vmatpush1.msra.mxu0 0.0
    %3655 = vmatprep.subr.mxu0 0.0
    %3656 = vmatpush1.msra.mxu0 0.0
    %3657 = vmatprep.subr.mxu0 0.0
    %3658 = vmatpush1.msra.mxu0 0.0
    %3659 = vmatprep.subr.mxu0 0.0
    %3660 = vmatpush1.msra.mxu0 0.0
    %3661 = vmatprep.subr.mxu0 0.0
    %3662 = vmatpush1.msra.mxu0 0.0
    %3663 = vmatprep.subr.mxu0 0.0
    %3664 = vmatpush1.msra.mxu0 0.0
    %3665 = vmatprep.subr.mxu0 0.0
    %3666 = vmatpush1.msra.mxu0 0.0
    %3667 = vmatprep.subr.mxu0 0.0
    %3668 = vmatpush1.msra.mxu0 0.0
    %3669 = vmatprep.subr.mxu0 0.0
    %3670 = vmatpush1.msra.mxu0 0.0
    %3671 = vmatprep.subr.mxu0 0.0
    %3672 = vmatpush1.msra.mxu0 0.0
    %3673 = vmatprep.subr.mxu0 0.0
    %3674 = vmatpush1.msra.mxu0 0.0
    %3675 = vmatprep.subr.mxu0 0.0
    %3676 = vmatpush1.msra.mxu0 0.0
    %3677 = vmatprep.subr.mxu0 0.0
    %3678 = vmatpush1.msra.mxu0 0.0
    %3679 = vmatprep.subr.mxu0 0.0
    %3680 = vmatpush1.msra.mxu0 0.0
    %3681 = vmatprep.subr.mxu0 0.0
    %3682 = vmatpush1.msra.mxu0 0.0
    %3683 = vmatprep.subr.mxu0 0.0
    %3684 = vmatpush1.msra.mxu0 0.0
    %3685 = vmatprep.subr.mxu0 0.0
    %3686 = vmatpush1.msra.mxu0 0.0
    %3687 = vmatprep.subr.mxu0 0.0
    %3688 = vmatpush1.msra.mxu0 0.0
    %3689 = vmatprep.subr.mxu0 0.0
    %3690 = vmatpush1.msra.mxu0 0.0
    %3691 = vmatprep.subr.mxu0 0.0
    %3692 = vmatpush1.msra.mxu0 0.0
    %3693 = vmatprep.subr.mxu0 0.0
    %3694 = vmatpush1.msra.mxu0 0.0
    %3695 = vmatprep.subr.mxu0 0.0
    %3696 = vmatpush1.msra.mxu0 0.0
    %3697 = vmatprep.subr.mxu0 0.0
    %3698 = vmatpush1.msra.mxu0 0.0
    %3699 = vmatprep.subr.mxu0 0.0
    %3700 = vmatpush1.msra.mxu0 0.0
    %3701 = vmatprep.subr.mxu0 0.0
    %3702 = vmatpush1.msra.mxu0 0.0
    %3703 = vmatprep.subr.mxu0 0.0
    %3704 = vmatpush1.msra.mxu0 0.0
    %3705 = vmatprep.subr.mxu0 0.0
    %3706 = vmatpush1.msra.mxu0 0.0
    %3707 = vmatprep.mubr.f32.mxu0 0.0
    %3708 = vmatmul.mubr.f32.gmra.mrb[0].mxu0 %v3641
    %v3709 = vpop.f32.mrb[0].mxu0
    %v3710 = vadd.f32 0.0, %v3709
    %v3711 = vpop.f32.mrb[0].mxu0
    %3712 = vdwg.mxu0
    %v3713 = vrot.slane %v3272, 7
    %v3715 = vrot.slane %v3345, 6
    %v3717 = vrot.slane %v3418, 5
    %v3719 = vrot.slane %v3491, 4
    %v3721 = vrot.slane %v3564, 3
    %v3723 = vrot.slane %v3637, 2
    %v3726 = vrot.slane %v3710, 1
    %v3728 = vsel %vm637, %v3199, %v3713
    %v3729 = vsel %vm639, %v3728, %v3715
    %v3730 = vsel %vm641, %v3729, %v3717
    %v3731 = vsel %vm643, %v3730, %v3719
    %v3732 = vsel %vm645, %v3731, %v3721
    %v3733 = vsel %vm647, %v3732, %v3723
    %v3734 = vsel %vm649, %v3733, %v3726
    %s3735 = scalar_lea.vmem [#allocation5], 40
    %3736 = vst [vmem:[%s3735] sm:$0xff] %v3734
    %s3737 = smul.u32 48, 8
    %s3738 = scalar_lea.vmem [#allocation2], %s3737
    %v3739 = vld [vmem:[%s3738] sm:$0xff]
    %v3740 = vld [vmem:[%s3738 + $0x8] sm:$0xff]
    %v3741 = vld [vmem:[%s3738 + $0x10] sm:$0xff]
    %v3742 = vld [vmem:[%s3738 + $0x18] sm:$0xff]
    %v3743 = vld [vmem:[%s3738 + $0x20] sm:$0xff]
    %v3744 = vld [vmem:[%s3738 + $0x28] sm:$0xff]
    %v3745 = vld [vmem:[%s3738 + $0x30] sm:$0xff]
    %v3746 = vld [vmem:[%s3738 + $0x38] sm:$0xff]
    %v3747 = vsel %vm37, %v3710, 0
    %3749 = vmatprep.subr.mxu0 0.0
    %3750 = vmatpush1.msra.mxu0 %v3739
    %3751 = vmatprep.subr.mxu0 0.0
    %3752 = vmatpush1.msra.mxu0 0.0
    %3753 = vmatprep.subr.mxu0 0.0
    %3754 = vmatpush1.msra.mxu0 0.0
    %3755 = vmatprep.subr.mxu0 0.0
    %3756 = vmatpush1.msra.mxu0 0.0
    %3757 = vmatprep.subr.mxu0 0.0
    %3758 = vmatpush1.msra.mxu0 0.0
    %3759 = vmatprep.subr.mxu0 0.0
    %3760 = vmatpush1.msra.mxu0 0.0
    %3761 = vmatprep.subr.mxu0 0.0
    %3762 = vmatpush1.msra.mxu0 0.0
    %3763 = vmatprep.subr.mxu0 0.0
    %3764 = vmatpush1.msra.mxu0 0.0
    %3765 = vmatprep.subr.mxu0 0.0
    %3766 = vmatpush1.msra.mxu0 0.0
    %3767 = vmatprep.subr.mxu0 0.0
    %3768 = vmatpush1.msra.mxu0 0.0
    %3769 = vmatprep.subr.mxu0 0.0
    %3770 = vmatpush1.msra.mxu0 0.0
    %3771 = vmatprep.subr.mxu0 0.0
    %3772 = vmatpush1.msra.mxu0 0.0
    %3773 = vmatprep.subr.mxu0 0.0
    %3774 = vmatpush1.msra.mxu0 0.0
    %3775 = vmatprep.subr.mxu0 0.0
    %3776 = vmatpush1.msra.mxu0 0.0
    %3777 = vmatprep.subr.mxu0 0.0
    %3778 = vmatpush1.msra.mxu0 0.0
    %3779 = vmatprep.subr.mxu0 0.0
    %3780 = vmatpush1.msra.mxu0 0.0
    %3781 = vmatprep.subr.mxu0 0.0
    %3782 = vmatpush1.msra.mxu0 0.0
    %3783 = vmatprep.subr.mxu0 0.0
    %3784 = vmatpush1.msra.mxu0 0.0
    %3785 = vmatprep.subr.mxu0 0.0
    %3786 = vmatpush1.msra.mxu0 0.0
    %3787 = vmatprep.subr.mxu0 0.0
    %3788 = vmatpush1.msra.mxu0 0.0
    %3789 = vmatprep.subr.mxu0 0.0
    %3790 = vmatpush1.msra.mxu0 0.0
    %3791 = vmatprep.subr.mxu0 0.0
    %3792 = vmatpush1.msra.mxu0 0.0
    %3793 = vmatprep.subr.mxu0 0.0
    %3794 = vmatpush1.msra.mxu0 0.0
    %3795 = vmatprep.subr.mxu0 0.0
    %3796 = vmatpush1.msra.mxu0 0.0
    %3797 = vmatprep.subr.mxu0 0.0
    %3798 = vmatpush1.msra.mxu0 0.0
    %3799 = vmatprep.subr.mxu0 0.0
    %3800 = vmatpush1.msra.mxu0 0.0
    %3801 = vmatprep.subr.mxu0 0.0
    %3802 = vmatpush1.msra.mxu0 0.0
    %3803 = vmatprep.subr.mxu0 0.0
    %3804 = vmatpush1.msra.mxu0 0.0
    %3805 = vmatprep.subr.mxu0 0.0
    %3806 = vmatpush1.msra.mxu0 0.0
    %3807 = vmatprep.subr.mxu0 0.0
    %3808 = vmatpush1.msra.mxu0 0.0
    %3809 = vmatprep.subr.mxu0 0.0
    %3810 = vmatpush1.msra.mxu0 0.0
    %3811 = vmatprep.subr.mxu0 0.0
    %3812 = vmatpush1.msra.mxu0 0.0
    %3813 = vmatprep.mubr.f32.mxu0 0.0
    %3814 = vmatmul.mubr.f32.gmra.mrb[0].mxu0 %v3747
    %v3815 = vpop.f32.mrb[0].mxu0
    %v3816 = vadd.f32 0.0, %v3815
    %v3817 = vpop.f32.mrb[0].mxu0
    %3818 = vdwg.mxu0
    %v3820 = vsel %vm37, %v3816, 0
    %3822 = vmatprep.subr.mxu0 0.0
    %3823 = vmatpush1.msra.mxu0 %v3740
    %3824 = vmatprep.subr.mxu0 0.0
    %3825 = vmatpush1.msra.mxu0 0.0
    %3826 = vmatprep.subr.mxu0 0.0
    %3827 = vmatpush1.msra.mxu0 0.0
    %3828 = vmatprep.subr.mxu0 0.0
    %3829 = vmatpush1.msra.mxu0 0.0
    %3830 = vmatprep.subr.mxu0 0.0
    %3831 = vmatpush1.msra.mxu0 0.0
    %3832 = vmatprep.subr.mxu0 0.0
    %3833 = vmatpush1.msra.mxu0 0.0
    %3834 = vmatprep.subr.mxu0 0.0
    %3835 = vmatpush1.msra.mxu0 0.0
    %3836 = vmatprep.subr.mxu0 0.0
    %3837 = vmatpush1.msra.mxu0 0.0
    %3838 = vmatprep.subr.mxu0 0.0
    %3839 = vmatpush1.msra.mxu0 0.0
    %3840 = vmatprep.subr.mxu0 0.0
    %3841 = vmatpush1.msra.mxu0 0.0
    %3842 = vmatprep.subr.mxu0 0.0
    %3843 = vmatpush1.msra.mxu0 0.0
    %3844 = vmatprep.subr.mxu0 0.0
    %3845 = vmatpush1.msra.mxu0 0.0
    %3846 = vmatprep.subr.mxu0 0.0
    %3847 = vmatpush1.msra.mxu0 0.0
    %3848 = vmatprep.subr.mxu0 0.0
    %3849 = vmatpush1.msra.mxu0 0.0
    %3850 = vmatprep.subr.mxu0 0.0
    %3851 = vmatpush1.msra.mxu0 0.0
    %3852 = vmatprep.subr.mxu0 0.0
    %3853 = vmatpush1.msra.mxu0 0.0
    %3854 = vmatprep.subr.mxu0 0.0
    %3855 = vmatpush1.msra.mxu0 0.0
    %3856 = vmatprep.subr.mxu0 0.0
    %3857 = vmatpush1.msra.mxu0 0.0
    %3858 = vmatprep.subr.mxu0 0.0
    %3859 = vmatpush1.msra.mxu0 0.0
    %3860 = vmatprep.subr.mxu0 0.0
    %3861 = vmatpush1.msra.mxu0 0.0
    %3862 = vmatprep.subr.mxu0 0.0
    %3863 = vmatpush1.msra.mxu0 0.0
    %3864 = vmatprep.subr.mxu0 0.0
    %3865 = vmatpush1.msra.mxu0 0.0
    %3866 = vmatprep.subr.mxu0 0.0
    %3867 = vmatpush1.msra.mxu0 0.0
    %3868 = vmatprep.subr.mxu0 0.0
    %3869 = vmatpush1.msra.mxu0 0.0
    %3870 = vmatprep.subr.mxu0 0.0
    %3871 = vmatpush1.msra.mxu0 0.0
    %3872 = vmatprep.subr.mxu0 0.0
    %3873 = vmatpush1.msra.mxu0 0.0
    %3874 = vmatprep.subr.mxu0 0.0
    %3875 = vmatpush1.msra.mxu0 0.0
    %3876 = vmatprep.subr.mxu0 0.0
    %3877 = vmatpush1.msra.mxu0 0.0
    %3878 = vmatprep.subr.mxu0 0.0
    %3879 = vmatpush1.msra.mxu0 0.0
    %3880 = vmatprep.subr.mxu0 0.0
    %3881 = vmatpush1.msra.mxu0 0.0
    %3882 = vmatprep.subr.mxu0 0.0
    %3883 = vmatpush1.msra.mxu0 0.0
    %3884 = vmatprep.subr.mxu0 0.0
    %3885 = vmatpush1.msra.mxu0 0.0
    %3886 = vmatprep.mubr.f32.mxu0 0.0
    %3887 = vmatmul.mubr.f32.gmra.mrb[0].mxu0 %v3820
    %v3888 = vpop.f32.mrb[0].mxu0
    %v3889 = vadd.f32 0.0, %v3888
    %v3890 = vpop.f32.mrb[0].mxu0
    %3891 = vdwg.mxu0
    %v3893 = vsel %vm37, %v3889, 0
    %3895 = vmatprep.subr.mxu0 0.0
    %3896 = vmatpush1.msra.mxu0 %v3741
    %3897 = vmatprep.subr.mxu0 0.0
    %3898 = vmatpush1.msra.mxu0 0.0
    %3899 = vmatprep.subr.mxu0 0.0
    %3900 = vmatpush1.msra.mxu0 0.0
    %3901 = vmatprep.subr.mxu0 0.0
    %3902 = vmatpush1.msra.mxu0 0.0
    %3903 = vmatprep.subr.mxu0 0.0
    %3904 = vmatpush1.msra.mxu0 0.0
    %3905 = vmatprep.subr.mxu0 0.0
    %3906 = vmatpush1.msra.mxu0 0.0
    %3907 = vmatprep.subr.mxu0 0.0
    %3908 = vmatpush1.msra.mxu0 0.0
    %3909 = vmatprep.subr.mxu0 0.0
    %3910 = vmatpush1.msra.mxu0 0.0
    %3911 = vmatprep.subr.mxu0 0.0
    %3912 = vmatpush1.msra.mxu0 0.0
    %3913 = vmatprep.subr.mxu0 0.0
    %3914 = vmatpush1.msra.mxu0 0.0
    %3915 = vmatprep.subr.mxu0 0.0
    %3916 = vmatpush1.msra.mxu0 0.0
    %3917 = vmatprep.subr.mxu0 0.0
    %3918 = vmatpush1.msra.mxu0 0.0
    %3919 = vmatprep.subr.mxu0 0.0
    %3920 = vmatpush1.msra.mxu0 0.0
    %3921 = vmatprep.subr.mxu0 0.0
    %3922 = vmatpush1.msra.mxu0 0.0
    %3923 = vmatprep.subr.mxu0 0.0
    %3924 = vmatpush1.msra.mxu0 0.0
    %3925 = vmatprep.subr.mxu0 0.0
    %3926 = vmatpush1.msra.mxu0 0.0
    %3927 = vmatprep.subr.mxu0 0.0
    %3928 = vmatpush1.msra.mxu0 0.0
    %3929 = vmatprep.subr.mxu0 0.0
    %3930 = vmatpush1.msra.mxu0 0.0
    %3931 = vmatprep.subr.mxu0 0.0
    %3932 = vmatpush1.msra.mxu0 0.0
    %3933 = vmatprep.subr.mxu0 0.0
    %3934 = vmatpush1.msra.mxu0 0.0
    %3935 = vmatprep.subr.mxu0 0.0
    %3936 = vmatpush1.msra.mxu0 0.0
    %3937 = vmatprep.subr.mxu0 0.0
    %3938 = vmatpush1.msra.mxu0 0.0
    %3939 = vmatprep.subr.mxu0 0.0
    %3940 = vmatpush1.msra.mxu0 0.0
    %3941 = vmatprep.subr.mxu0 0.0
    %3942 = vmatpush1.msra.mxu0 0.0
    %3943 = vmatprep.subr.mxu0 0.0
    %3944 = vmatpush1.msra.mxu0 0.0
    %3945 = vmatprep.subr.mxu0 0.0
    %3946 = vmatpush1.msra.mxu0 0.0
    %3947 = vmatprep.subr.mxu0 0.0
    %3948 = vmatpush1.msra.mxu0 0.0
    %3949 = vmatprep.subr.mxu0 0.0
    %3950 = vmatpush1.msra.mxu0 0.0
    %3951 = vmatprep.subr.mxu0 0.0
    %3952 = vmatpush1.msra.mxu0 0.0
    %3953 = vmatprep.subr.mxu0 0.0
    %3954 = vmatpush1.msra.mxu0 0.0
    %3955 = vmatprep.subr.mxu0 0.0
    %3956 = vmatpush1.msra.mxu0 0.0
    %3957 = vmatprep.subr.mxu0 0.0
    %3958 = vmatpush1.msra.mxu0 0.0
    %3959 = vmatprep.mubr.f32.mxu0 0.0
    %3960 = vmatmul.mubr.f32.gmra.mrb[0].mxu0 %v3893
    %v3961 = vpop.f32.mrb[0].mxu0
    %v3962 = vadd.f32 0.0, %v3961
    %v3963 = vpop.f32.mrb[0].mxu0
    %3964 = vdwg.mxu0
    %v3966 = vsel %vm37, %v3962, 0
    %3968 = vmatprep.subr.mxu0 0.0
    %3969 = vmatpush1.msra.mxu0 %v3742
    %3970 = vmatprep.subr.mxu0 0.0
    %3971 = vmatpush1.msra.mxu0 0.0
    %3972 = vmatprep.subr.mxu0 0.0
    %3973 = vmatpush1.msra.mxu0 0.0
    %3974 = vmatprep.subr.mxu0 0.0
    %3975 = vmatpush1.msra.mxu0 0.0
    %3976 = vmatprep.subr.mxu0 0.0
    %3977 = vmatpush1.msra.mxu0 0.0
    %3978 = vmatprep.subr.mxu0 0.0
    %3979 = vmatpush1.msra.mxu0 0.0
    %3980 = vmatprep.subr.mxu0 0.0
    %3981 = vmatpush1.msra.mxu0 0.0
    %3982 = vmatprep.subr.mxu0 0.0
    %3983 = vmatpush1.msra.mxu0 0.0
    %3984 = vmatprep.subr.mxu0 0.0
    %3985 = vmatpush1.msra.mxu0 0.0
    %3986 = vmatprep.subr.mxu0 0.0
    %3987 = vmatpush1.msra.mxu0 0.0
    %3988 = vmatprep.subr.mxu0 0.0
    %3989 = vmatpush1.msra.mxu0 0.0
    %3990 = vmatprep.subr.mxu0 0.0
    %3991 = vmatpush1.msra.mxu0 0.0
    %3992 = vmatprep.subr.mxu0 0.0
    %3993 = vmatpush1.msra.mxu0 0.0
    %3994 = vmatprep.subr.mxu0 0.0
    %3995 = vmatpush1.msra.mxu0 0.0
    %3996 = vmatprep.subr.mxu0 0.0
    %3997 = vmatpush1.msra.mxu0 0.0
    %3998 = vmatprep.subr.mxu0 0.0
    %3999 = vmatpush1.msra.mxu0 0.0
    %4000 = vmatprep.subr.mxu0 0.0
    %4001 = vmatpush1.msra.mxu0 0.0
    %4002 = vmatprep.subr.mxu0 0.0
    %4003 = vmatpush1.msra.mxu0 0.0
    %4004 = vmatprep.subr.mxu0 0.0
    %4005 = vmatpush1.msra.mxu0 0.0
    %4006 = vmatprep.subr.mxu0 0.0
    %4007 = vmatpush1.msra.mxu0 0.0
    %4008 = vmatprep.subr.mxu0 0.0
    %4009 = vmatpush1.msra.mxu0 0.0
    %4010 = vmatprep.subr.mxu0 0.0
    %4011 = vmatpush1.msra.mxu0 0.0
    %4012 = vmatprep.subr.mxu0 0.0
    %4013 = vmatpush1.msra.mxu0 0.0
    %4014 = vmatprep.subr.mxu0 0.0
    %4015 = vmatpush1.msra.mxu0 0.0
    %4016 = vmatprep.subr.mxu0 0.0
    %4017 = vmatpush1.msra.mxu0 0.0
    %4018 = vmatprep.subr.mxu0 0.0
    %4019 = vmatpush1.msra.mxu0 0.0
    %4020 = vmatprep.subr.mxu0 0.0
    %4021 = vmatpush1.msra.mxu0 0.0
    %4022 = vmatprep.subr.mxu0 0.0
    %4023 = vmatpush1.msra.mxu0 0.0
    %4024 = vmatprep.subr.mxu0 0.0
    %4025 = vmatpush1.msra.mxu0 0.0
    %4026 = vmatprep.subr.mxu0 0.0
    %4027 = vmatpush1.msra.mxu0 0.0
    %4028 = vmatprep.subr.mxu0 0.0
    %4029 = vmatpush1.msra.mxu0 0.0
    %4030 = vmatprep.subr.mxu0 0.0
    %4031 = vmatpush1.msra.mxu0 0.0
    %4032 = vmatprep.mubr.f32.mxu0 0.0
    %4033 = vmatmul.mubr.f32.gmra.mrb[0].mxu0 %v3966
    %v4034 = vpop.f32.mrb[0].mxu0
    %v4035 = vadd.f32 0.0, %v4034
    %v4036 = vpop.f32.mrb[0].mxu0
    %4037 = vdwg.mxu0
    %v4039 = vsel %vm37, %v4035, 0
    %4041 = vmatprep.subr.mxu0 0.0
    %4042 = vmatpush1.msra.mxu0 %v3743
    %4043 = vmatprep.subr.mxu0 0.0
    %4044 = vmatpush1.msra.mxu0 0.0
    %4045 = vmatprep.subr.mxu0 0.0
    %4046 = vmatpush1.msra.mxu0 0.0
    %4047 = vmatprep.subr.mxu0 0.0
    %4048 = vmatpush1.msra.mxu0 0.0
    %4049 = vmatprep.subr.mxu0 0.0
    %4050 = vmatpush1.msra.mxu0 0.0
    %4051 = vmatprep.subr.mxu0 0.0
    %4052 = vmatpush1.msra.mxu0 0.0
    %4053 = vmatprep.subr.mxu0 0.0
    %4054 = vmatpush1.msra.mxu0 0.0
    %4055 = vmatprep.subr.mxu0 0.0
    %4056 = vmatpush1.msra.mxu0 0.0
    %4057 = vmatprep.subr.mxu0 0.0
    %4058 = vmatpush1.msra.mxu0 0.0
    %4059 = vmatprep.subr.mxu0 0.0
    %4060 = vmatpush1.msra.mxu0 0.0
    %4061 = vmatprep.subr.mxu0 0.0
    %4062 = vmatpush1.msra.mxu0 0.0
    %4063 = vmatprep.subr.mxu0 0.0
    %4064 = vmatpush1.msra.mxu0 0.0
    %4065 = vmatprep.subr.mxu0 0.0
    %4066 = vmatpush1.msra.mxu0 0.0
    %4067 = vmatprep.subr.mxu0 0.0
    %4068 = vmatpush1.msra.mxu0 0.0
    %4069 = vmatprep.subr.mxu0 0.0
    %4070 = vmatpush1.msra.mxu0 0.0
    %4071 = vmatprep.subr.mxu0 0.0
    %4072 = vmatpush1.msra.mxu0 0.0
    %4073 = vmatprep.subr.mxu0 0.0
    %4074 = vmatpush1.msra.mxu0 0.0
    %4075 = vmatprep.subr.mxu0 0.0
    %4076 = vmatpush1.msra.mxu0 0.0
    %4077 = vmatprep.subr.mxu0 0.0
    %4078 = vmatpush1.msra.mxu0 0.0
    %4079 = vmatprep.subr.mxu0 0.0
    %4080 = vmatpush1.msra.mxu0 0.0
    %4081 = vmatprep.subr.mxu0 0.0
    %4082 = vmatpush1.msra.mxu0 0.0
    %4083 = vmatprep.subr.mxu0 0.0
    %4084 = vmatpush1.msra.mxu0 0.0
    %4085 = vmatprep.subr.mxu0 0.0
    %4086 = vmatpush1.msra.mxu0 0.0
    %4087 = vmatprep.subr.mxu0 0.0
    %4088 = vmatpush1.msra.mxu0 0.0
    %4089 = vmatprep.subr.mxu0 0.0
    %4090 = vmatpush1.msra.mxu0 0.0
    %4091 = vmatprep.subr.mxu0 0.0
    %4092 = vmatpush1.msra.mxu0 0.0
    %4093 = vmatprep.subr.mxu0 0.0
    %4094 = vmatpush1.msra.mxu0 0.0
    %4095 = vmatprep.subr.mxu0 0.0
    %4096 = vmatpush1.msra.mxu0 0.0
    %4097 = vmatprep.subr.mxu0 0.0
    %4098 = vmatpush1.msra.mxu0 0.0
    %4099 = vmatprep.subr.mxu0 0.0
    %4100 = vmatpush1.msra.mxu0 0.0
    %4101 = vmatprep.subr.mxu0 0.0
    %4102 = vmatpush1.msra.mxu0 0.0
    %4103 = vmatprep.subr.mxu0 0.0
    %4104 = vmatpush1.msra.mxu0 0.0
    %4105 = vmatprep.mubr.f32.mxu0 0.0
    %4106 = vmatmul.mubr.f32.gmra.mrb[0].mxu0 %v4039
    %v4107 = vpop.f32.mrb[0].mxu0
    %v4108 = vadd.f32 0.0, %v4107
    %v4109 = vpop.f32.mrb[0].mxu0
    %4110 = vdwg.mxu0
    %v4112 = vsel %vm37, %v4108, 0
    %4114 = vmatprep.subr.mxu0 0.0
    %4115 = vmatpush1.msra.mxu0 %v3744
    %4116 = vmatprep.subr.mxu0 0.0
    %4117 = vmatpush1.msra.mxu0 0.0
    %4118 = vmatprep.subr.mxu0 0.0
    %4119 = vmatpush1.msra.mxu0 0.0
    %4120 = vmatprep.subr.mxu0 0.0
    %4121 = vmatpush1.msra.mxu0 0.0
    %4122 = vmatprep.subr.mxu0 0.0
    %4123 = vmatpush1.msra.mxu0 0.0
    %4124 = vmatprep.subr.mxu0 0.0
    %4125 = vmatpush1.msra.mxu0 0.0
    %4126 = vmatprep.subr.mxu0 0.0
    %4127 = vmatpush1.msra.mxu0 0.0
    %4128 = vmatprep.subr.mxu0 0.0
    %4129 = vmatpush1.msra.mxu0 0.0
    %4130 = vmatprep.subr.mxu0 0.0
    %4131 = vmatpush1.msra.mxu0 0.0
    %4132 = vmatprep.subr.mxu0 0.0
    %4133 = vmatpush1.msra.mxu0 0.0
    %4134 = vmatprep.subr.mxu0 0.0
    %4135 = vmatpush1.msra.mxu0 0.0
    %4136 = vmatprep.subr.mxu0 0.0
    %4137 = vmatpush1.msra.mxu0 0.0
    %4138 = vmatprep.subr.mxu0 0.0
    %4139 = vmatpush1.msra.mxu0 0.0
    %4140 = vmatprep.subr.mxu0 0.0
    %4141 = vmatpush1.msra.mxu0 0.0
    %4142 = vmatprep.subr.mxu0 0.0
    %4143 = vmatpush1.msra.mxu0 0.0
    %4144 = vmatprep.subr.mxu0 0.0
    %4145 = vmatpush1.msra.mxu0 0.0
    %4146 = vmatprep.subr.mxu0 0.0
    %4147 = vmatpush1.msra.mxu0 0.0
    %4148 = vmatprep.subr.mxu0 0.0
    %4149 = vmatpush1.msra.mxu0 0.0
    %4150 = vmatprep.subr.mxu0 0.0
    %4151 = vmatpush1.msra.mxu0 0.0
    %4152 = vmatprep.subr.mxu0 0.0
    %4153 = vmatpush1.msra.mxu0 0.0
    %4154 = vmatprep.subr.mxu0 0.0
    %4155 = vmatpush1.msra.mxu0 0.0
    %4156 = vmatprep.subr.mxu0 0.0
    %4157 = vmatpush1.msra.mxu0 0.0
    %4158 = vmatprep.subr.mxu0 0.0
    %4159 = vmatpush1.msra.mxu0 0.0
    %4160 = vmatprep.subr.mxu0 0.0
    %4161 = vmatpush1.msra.mxu0 0.0
    %4162 = vmatprep.subr.mxu0 0.0
    %4163 = vmatpush1.msra.mxu0 0.0
    %4164 = vmatprep.subr.mxu0 0.0
    %4165 = vmatpush1.msra.mxu0 0.0
    %4166 = vmatprep.subr.mxu0 0.0
    %4167 = vmatpush1.msra.mxu0 0.0
    %4168 = vmatprep.subr.mxu0 0.0
    %4169 = vmatpush1.msra.mxu0 0.0
    %4170 = vmatprep.subr.mxu0 0.0
    %4171 = vmatpush1.msra.mxu0 0.0
    %4172 = vmatprep.subr.mxu0 0.0
    %4173 = vmatpush1.msra.mxu0 0.0
    %4174 = vmatprep.subr.mxu0 0.0
    %4175 = vmatpush1.msra.mxu0 0.0
    %4176 = vmatprep.subr.mxu0 0.0
    %4177 = vmatpush1.msra.mxu0 0.0
    %4178 = vmatprep.mubr.f32.mxu0 0.0
    %4179 = vmatmul.mubr.f32.gmra.mrb[0].mxu0 %v4112
    %v4180 = vpop.f32.mrb[0].mxu0
    %v4181 = vadd.f32 0.0, %v4180
    %v4182 = vpop.f32.mrb[0].mxu0
    %4183 = vdwg.mxu0
    %v4185 = vsel %vm37, %v4181, 0
    %4187 = vmatprep.subr.mxu0 0.0
    %4188 = vmatpush1.msra.mxu0 %v3745
    %4189 = vmatprep.subr.mxu0 0.0
    %4190 = vmatpush1.msra.mxu0 0.0
    %4191 = vmatprep.subr.mxu0 0.0
    %4192 = vmatpush1.msra.mxu0 0.0
    %4193 = vmatprep.subr.mxu0 0.0
    %4194 = vmatpush1.msra.mxu0 0.0
    %4195 = vmatprep.subr.mxu0 0.0
    %4196 = vmatpush1.msra.mxu0 0.0
    %4197 = vmatprep.subr.mxu0 0.0
    %4198 = vmatpush1.msra.mxu0 0.0
    %4199 = vmatprep.subr.mxu0 0.0
    %4200 = vmatpush1.msra.mxu0 0.0
    %4201 = vmatprep.subr.mxu0 0.0
    %4202 = vmatpush1.msra.mxu0 0.0
    %4203 = vmatprep.subr.mxu0 0.0
    %4204 = vmatpush1.msra.mxu0 0.0
    %4205 = vmatprep.subr.mxu0 0.0
    %4206 = vmatpush1.msra.mxu0 0.0
    %4207 = vmatprep.subr.mxu0 0.0
    %4208 = vmatpush1.msra.mxu0 0.0
    %4209 = vmatprep.subr.mxu0 0.0
    %4210 = vmatpush1.msra.mxu0 0.0
    %4211 = vmatprep.subr.mxu0 0.0
    %4212 = vmatpush1.msra.mxu0 0.0
    %4213 = vmatprep.subr.mxu0 0.0
    %4214 = vmatpush1.msra.mxu0 0.0
    %4215 = vmatprep.subr.mxu0 0.0
    %4216 = vmatpush1.msra.mxu0 0.0
    %4217 = vmatprep.subr.mxu0 0.0
    %4218 = vmatpush1.msra.mxu0 0.0
    %4219 = vmatprep.subr.mxu0 0.0
    %4220 = vmatpush1.msra.mxu0 0.0
    %4221 = vmatprep.subr.mxu0 0.0
    %4222 = vmatpush1.msra.mxu0 0.0
    %4223 = vmatprep.subr.mxu0 0.0
    %4224 = vmatpush1.msra.mxu0 0.0
    %4225 = vmatprep.subr.mxu0 0.0
    %4226 = vmatpush1.msra.mxu0 0.0
    %4227 = vmatprep.subr.mxu0 0.0
    %4228 = vmatpush1.msra.mxu0 0.0
    %4229 = vmatprep.subr.mxu0 0.0
    %4230 = vmatpush1.msra.mxu0 0.0
    %4231 = vmatprep.subr.mxu0 0.0
    %4232 = vmatpush1.msra.mxu0 0.0
    %4233 = vmatprep.subr.mxu0 0.0
    %4234 = vmatpush1.msra.mxu0 0.0
    %4235 = vmatprep.subr.mxu0 0.0
    %4236 = vmatpush1.msra.mxu0 0.0
    %4237 = vmatprep.subr.mxu0 0.0
    %4238 = vmatpush1.msra.mxu0 0.0
    %4239 = vmatprep.subr.mxu0 0.0
    %4240 = vmatpush1.msra.mxu0 0.0
    %4241 = vmatprep.subr.mxu0 0.0
    %4242 = vmatpush1.msra.mxu0 0.0
    %4243 = vmatprep.subr.mxu0 0.0
    %4244 = vmatpush1.msra.mxu0 0.0
    %4245 = vmatprep.subr.mxu0 0.0
    %4246 = vmatpush1.msra.mxu0 0.0
    %4247 = vmatprep.subr.mxu0 0.0
    %4248 = vmatpush1.msra.mxu0 0.0
    %4249 = vmatprep.subr.mxu0 0.0
    %4250 = vmatpush1.msra.mxu0 0.0
    %4251 = vmatprep.mubr.f32.mxu0 0.0
    %4252 = vmatmul.mubr.f32.gmra.mrb[0].mxu0 %v4185
    %v4253 = vpop.f32.mrb[0].mxu0
    %v4254 = vadd.f32 0.0, %v4253
    %v4255 = vpop.f32.mrb[0].mxu0
    %4256 = vdwg.mxu0
    %v4258 = vsel %vm37, %v4254, 0
    %4260 = vmatprep.subr.mxu0 0.0
    %4261 = vmatpush1.msra.mxu0 %v3746
    %4262 = vmatprep.subr.mxu0 0.0
    %4263 = vmatpush1.msra.mxu0 0.0
    %4264 = vmatprep.subr.mxu0 0.0
    %4265 = vmatpush1.msra.mxu0 0.0
    %4266 = vmatprep.subr.mxu0 0.0
    %4267 = vmatpush1.msra.mxu0 0.0
    %4268 = vmatprep.subr.mxu0 0.0
    %4269 = vmatpush1.msra.mxu0 0.0
    %4270 = vmatprep.subr.mxu0 0.0
    %4271 = vmatpush1.msra.mxu0 0.0
    %4272 = vmatprep.subr.mxu0 0.0
    %4273 = vmatpush1.msra.mxu0 0.0
    %4274 = vmatprep.subr.mxu0 0.0
    %4275 = vmatpush1.msra.mxu0 0.0
    %4276 = vmatprep.subr.mxu0 0.0
    %4277 = vmatpush1.msra.mxu0 0.0
    %4278 = vmatprep.subr.mxu0 0.0
    %4279 = vmatpush1.msra.mxu0 0.0
    %4280 = vmatprep.subr.mxu0 0.0
    %4281 = vmatpush1.msra.mxu0 0.0
    %4282 = vmatprep.subr.mxu0 0.0
    %4283 = vmatpush1.msra.mxu0 0.0
    %4284 = vmatprep.subr.mxu0 0.0
    %4285 = vmatpush1.msra.mxu0 0.0
    %4286 = vmatprep.subr.mxu0 0.0
    %4287 = vmatpush1.msra.mxu0 0.0
    %4288 = vmatprep.subr.mxu0 0.0
    %4289 = vmatpush1.msra.mxu0 0.0
    %4290 = vmatprep.subr.mxu0 0.0
    %4291 = vmatpush1.msra.mxu0 0.0
    %4292 = vmatprep.subr.mxu0 0.0
    %4293 = vmatpush1.msra.mxu0 0.0
    %4294 = vmatprep.subr.mxu0 0.0
    %4295 = vmatpush1.msra.mxu0 0.0
    %4296 = vmatprep.subr.mxu0 0.0
    %4297 = vmatpush1.msra.mxu0 0.0
    %4298 = vmatprep.subr.mxu0 0.0
    %4299 = vmatpush1.msra.mxu0 0.0
    %4300 = vmatprep.subr.mxu0 0.0
    %4301 = vmatpush1.msra.mxu0 0.0
    %4302 = vmatprep.subr.mxu0 0.0
    %4303 = vmatpush1.msra.mxu0 0.0
    %4304 = vmatprep.subr.mxu0 0.0
    %4305 = vmatpush1.msra.mxu0 0.0
    %4306 = vmatprep.subr.mxu0 0.0
    %4307 = vmatpush1.msra.mxu0 0.0
    %4308 = vmatprep.subr.mxu0 0.0
    %4309 = vmatpush1.msra.mxu0 0.0
    %4310 = vmatprep.subr.mxu0 0.0
    %4311 = vmatpush1.msra.mxu0 0.0
    %4312 = vmatprep.subr.mxu0 0.0
    %4313 = vmatpush1.msra.mxu0 0.0
    %4314 = vmatprep.subr.mxu0 0.0
    %4315 = vmatpush1.msra.mxu0 0.0
    %4316 = vmatprep.subr.mxu0 0.0
    %4317 = vmatpush1.msra.mxu0 0.0
    %4318 = vmatprep.subr.mxu0 0.0
    %4319 = vmatpush1.msra.mxu0 0.0
    %4320 = vmatprep.subr.mxu0 0.0
    %4321 = vmatpush1.msra.mxu0 0.0
    %4322 = vmatprep.subr.mxu0 0.0
    %4323 = vmatpush1.msra.mxu0 0.0
    %4324 = vmatprep.mubr.f32.mxu0 0.0
    %4325 = vmatmul.mubr.f32.gmra.mrb[0].mxu0 %v4258
    %v4326 = vpop.f32.mrb[0].mxu0
    %v4327 = vadd.f32 0.0, %v4326
    %v4328 = vpop.f32.mrb[0].mxu0
    %4329 = vdwg.mxu0
    %v4330 = vrot.slane %v3889, 7
    %v4332 = vrot.slane %v3962, 6
    %v4334 = vrot.slane %v4035, 5
    %v4336 = vrot.slane %v4108, 4
    %v4338 = vrot.slane %v4181, 3
    %v4340 = vrot.slane %v4254, 2
    %v4343 = vrot.slane %v4327, 1
    %v4345 = vsel %vm637, %v3816, %v4330
    %v4346 = vsel %vm639, %v4345, %v4332
    %v4347 = vsel %vm641, %v4346, %v4334
    %v4348 = vsel %vm643, %v4347, %v4336
    %v4349 = vsel %vm645, %v4348, %v4338
    %v4350 = vsel %vm647, %v4349, %v4340
    %v4351 = vsel %vm649, %v4350, %v4343
    %s4352 = scalar_lea.vmem [#allocation5], 48
    %4353 = vst [vmem:[%s4352] sm:$0xff] %v4351
    %s4354 = smul.u32 56, 8
    %s4355 = scalar_lea.vmem [#allocation2], %s4354
    %v4356 = vld [vmem:[%s4355] sm:$0xff]
    %v4357 = vld [vmem:[%s4355 + $0x8] sm:$0xff]
    %v4358 = vld [vmem:[%s4355 + $0x10] sm:$0xff]
    %v4359 = vld [vmem:[%s4355 + $0x18] sm:$0xff]
    %v4360 = vld [vmem:[%s4355 + $0x20] sm:$0xff]
    %v4361 = vld [vmem:[%s4355 + $0x28] sm:$0xff]
    %v4362 = vld [vmem:[%s4355 + $0x30] sm:$0xff]
    %v4363 = vld [vmem:[%s4355 + $0x38] sm:$0xff]
    %v4364 = vsel %vm37, %v4327, 0
    %4366 = vmatprep.subr.mxu0 0.0
    %4367 = vmatpush1.msra.mxu0 %v4356
    %4368 = vmatprep.subr.mxu0 0.0
    %4369 = vmatpush1.msra.mxu0 0.0
    %4370 = vmatprep.subr.mxu0 0.0
    %4371 = vmatpush1.msra.mxu0 0.0
    %4372 = vmatprep.subr.mxu0 0.0
    %4373 = vmatpush1.msra.mxu0 0.0
    %4374 = vmatprep.subr.mxu0 0.0
    %4375 = vmatpush1.msra.mxu0 0.0
    %4376 = vmatprep.subr.mxu0 0.0
    %4377 = vmatpush1.msra.mxu0 0.0
    %4378 = vmatprep.subr.mxu0 0.0
    %4379 = vmatpush1.msra.mxu0 0.0
    %4380 = vmatprep.subr.mxu0 0.0
    %4381 = vmatpush1.msra.mxu0 0.0
    %4382 = vmatprep.subr.mxu0 0.0
    %4383 = vmatpush1.msra.mxu0 0.0
    %4384 = vmatprep.subr.mxu0 0.0
    %4385 = vmatpush1.msra.mxu0 0.0
    %4386 = vmatprep.subr.mxu0 0.0
    %4387 = vmatpush1.msra.mxu0 0.0
    %4388 = vmatprep.subr.mxu0 0.0
    %4389 = vmatpush1.msra.mxu0 0.0
    %4390 = vmatprep.subr.mxu0 0.0
    %4391 = vmatpush1.msra.mxu0 0.0
    %4392 = vmatprep.subr.mxu0 0.0
    %4393 = vmatpush1.msra.mxu0 0.0
    %4394 = vmatprep.subr.mxu0 0.0
    %4395 = vmatpush1.msra.mxu0 0.0
    %4396 = vmatprep.subr.mxu0 0.0
    %4397 = vmatpush1.msra.mxu0 0.0
    %4398 = vmatprep.subr.mxu0 0.0
    %4399 = vmatpush1.msra.mxu0 0.0
    %4400 = vmatprep.subr.mxu0 0.0
    %4401 = vmatpush1.msra.mxu0 0.0
    %4402 = vmatprep.subr.mxu0 0.0
    %4403 = vmatpush1.msra.mxu0 0.0
    %4404 = vmatprep.subr.mxu0 0.0
    %4405 = vmatpush1.msra.mxu0 0.0
    %4406 = vmatprep.subr.mxu0 0.0
    %4407 = vmatpush1.msra.mxu0 0.0
    %4408 = vmatprep.subr.mxu0 0.0
    %4409 = vmatpush1.msra.mxu0 0.0
    %4410 = vmatprep.subr.mxu0 0.0
    %4411 = vmatpush1.msra.mxu0 0.0
    %4412 = vmatprep.subr.mxu0 0.0
    %4413 = vmatpush1.msra.mxu0 0.0
    %4414 = vmatprep.subr.mxu0 0.0
    %4415 = vmatpush1.msra.mxu0 0.0
    %4416 = vmatprep.subr.mxu0 0.0
    %4417 = vmatpush1.msra.mxu0 0.0
    %4418 = vmatprep.subr.mxu0 0.0
    %4419 = vmatpush1.msra.mxu0 0.0
    %4420 = vmatprep.subr.mxu0 0.0
    %4421 = vmatpush1.msra.mxu0 0.0
    %4422 = vmatprep.subr.mxu0 0.0
    %4423 = vmatpush1.msra.mxu0 0.0
    %4424 = vmatprep.subr.mxu0 0.0
    %4425 = vmatpush1.msra.mxu0 0.0
    %4426 = vmatprep.subr.mxu0 0.0
    %4427 = vmatpush1.msra.mxu0 0.0
    %4428 = vmatprep.subr.mxu0 0.0
    %4429 = vmatpush1.msra.mxu0 0.0
    %4430 = vmatprep.mubr.f32.mxu0 0.0
    %4431 = vmatmul.mubr.f32.gmra.mrb[0].mxu0 %v4364
    %v4432 = vpop.f32.mrb[0].mxu0
    %v4433 = vadd.f32 0.0, %v4432
    %v4434 = vpop.f32.mrb[0].mxu0
    %4435 = vdwg.mxu0
    %v4437 = vsel %vm37, %v4433, 0
    %4439 = vmatprep.subr.mxu0 0.0
    %4440 = vmatpush1.msra.mxu0 %v4357
    %4441 = vmatprep.subr.mxu0 0.0
    %4442 = vmatpush1.msra.mxu0 0.0
    %4443 = vmatprep.subr.mxu0 0.0
    %4444 = vmatpush1.msra.mxu0 0.0
    %4445 = vmatprep.subr.mxu0 0.0
    %4446 = vmatpush1.msra.mxu0 0.0
    %4447 = vmatprep.subr.mxu0 0.0
    %4448 = vmatpush1.msra.mxu0 0.0
    %4449 = vmatprep.subr.mxu0 0.0
    %4450 = vmatpush1.msra.mxu0 0.0
    %4451 = vmatprep.subr.mxu0 0.0
    %4452 = vmatpush1.msra.mxu0 0.0
    %4453 = vmatprep.subr.mxu0 0.0
    %4454 = vmatpush1.msra.mxu0 0.0
    %4455 = vmatprep.subr.mxu0 0.0
    %4456 = vmatpush1.msra.mxu0 0.0
    %4457 = vmatprep.subr.mxu0 0.0
    %4458 = vmatpush1.msra.mxu0 0.0
    %4459 = vmatprep.subr.mxu0 0.0
    %4460 = vmatpush1.msra.mxu0 0.0
    %4461 = vmatprep.subr.mxu0 0.0
    %4462 = vmatpush1.msra.mxu0 0.0
    %4463 = vmatprep.subr.mxu0 0.0
    %4464 = vmatpush1.msra.mxu0 0.0
    %4465 = vmatprep.subr.mxu0 0.0
    %4466 = vmatpush1.msra.mxu0 0.0
    %4467 = vmatprep.subr.mxu0 0.0
    %4468 = vmatpush1.msra.mxu0 0.0
    %4469 = vmatprep.subr.mxu0 0.0
    %4470 = vmatpush1.msra.mxu0 0.0
    %4471 = vmatprep.subr.mxu0 0.0
    %4472 = vmatpush1.msra.mxu0 0.0
    %4473 = vmatprep.subr.mxu0 0.0
    %4474 = vmatpush1.msra.mxu0 0.0
    %4475 = vmatprep.subr.mxu0 0.0
    %4476 = vmatpush1.msra.mxu0 0.0
    %4477 = vmatprep.subr.mxu0 0.0
    %4478 = vmatpush1.msra.mxu0 0.0
    %4479 = vmatprep.subr.mxu0 0.0
    %4480 = vmatpush1.msra.mxu0 0.0
    %4481 = vmatprep.subr.mxu0 0.0
    %4482 = vmatpush1.msra.mxu0 0.0
    %4483 = vmatprep.subr.mxu0 0.0
    %4484 = vmatpush1.msra.mxu0 0.0
    %4485 = vmatprep.subr.mxu0 0.0
    %4486 = vmatpush1.msra.mxu0 0.0
    %4487 = vmatprep.subr.mxu0 0.0
    %4488 = vmatpush1.msra.mxu0 0.0
    %4489 = vmatprep.subr.mxu0 0.0
    %4490 = vmatpush1.msra.mxu0 0.0
    %4491 = vmatprep.subr.mxu0 0.0
    %4492 = vmatpush1.msra.mxu0 0.0
    %4493 = vmatprep.subr.mxu0 0.0
    %4494 = vmatpush1.msra.mxu0 0.0
    %4495 = vmatprep.subr.mxu0 0.0
    %4496 = vmatpush1.msra.mxu0 0.0
    %4497 = vmatprep.subr.mxu0 0.0
    %4498 = vmatpush1.msra.mxu0 0.0
    %4499 = vmatprep.subr.mxu0 0.0
    %4500 = vmatpush1.msra.mxu0 0.0
    %4501 = vmatprep.subr.mxu0 0.0
    %4502 = vmatpush1.msra.mxu0 0.0
    %4503 = vmatprep.mubr.f32.mxu0 0.0
    %4504 = vmatmul.mubr.f32.gmra.mrb[0].mxu0 %v4437
    %v4505 = vpop.f32.mrb[0].mxu0
    %v4506 = vadd.f32 0.0, %v4505
    %v4507 = vpop.f32.mrb[0].mxu0
    %4508 = vdwg.mxu0
    %v4510 = vsel %vm37, %v4506, 0
    %4512 = vmatprep.subr.mxu0 0.0
    %4513 = vmatpush1.msra.mxu0 %v4358
    %4514 = vmatprep.subr.mxu0 0.0
    %4515 = vmatpush1.msra.mxu0 0.0
    %4516 = vmatprep.subr.mxu0 0.0
    %4517 = vmatpush1.msra.mxu0 0.0
    %4518 = vmatprep.subr.mxu0 0.0
    %4519 = vmatpush1.msra.mxu0 0.0
    %4520 = vmatprep.subr.mxu0 0.0
    %4521 = vmatpush1.msra.mxu0 0.0
    %4522 = vmatprep.subr.mxu0 0.0
    %4523 = vmatpush1.msra.mxu0 0.0
    %4524 = vmatprep.subr.mxu0 0.0
    %4525 = vmatpush1.msra.mxu0 0.0
    %4526 = vmatprep.subr.mxu0 0.0
    %4527 = vmatpush1.msra.mxu0 0.0
    %4528 = vmatprep.subr.mxu0 0.0
    %4529 = vmatpush1.msra.mxu0 0.0
    %4530 = vmatprep.subr.mxu0 0.0
    %4531 = vmatpush1.msra.mxu0 0.0
    %4532 = vmatprep.subr.mxu0 0.0
    %4533 = vmatpush1.msra.mxu0 0.0
    %4534 = vmatprep.subr.mxu0 0.0
    %4535 = vmatpush1.msra.mxu0 0.0
    %4536 = vmatprep.subr.mxu0 0.0
    %4537 = vmatpush1.msra.mxu0 0.0
    %4538 = vmatprep.subr.mxu0 0.0
    %4539 = vmatpush1.msra.mxu0 0.0
    %4540 = vmatprep.subr.mxu0 0.0
    %4541 = vmatpush1.msra.mxu0 0.0
    %4542 = vmatprep.subr.mxu0 0.0
    %4543 = vmatpush1.msra.mxu0 0.0
    %4544 = vmatprep.subr.mxu0 0.0
    %4545 = vmatpush1.msra.mxu0 0.0
    %4546 = vmatprep.subr.mxu0 0.0
    %4547 = vmatpush1.msra.mxu0 0.0
    %4548 = vmatprep.subr.mxu0 0.0
    %4549 = vmatpush1.msra.mxu0 0.0
    %4550 = vmatprep.subr.mxu0 0.0
    %4551 = vmatpush1.msra.mxu0 0.0
    %4552 = vmatprep.subr.mxu0 0.0
    %4553 = vmatpush1.msra.mxu0 0.0
    %4554 = vmatprep.subr.mxu0 0.0
    %4555 = vmatpush1.msra.mxu0 0.0
    %4556 = vmatprep.subr.mxu0 0.0
    %4557 = vmatpush1.msra.mxu0 0.0
    %4558 = vmatprep.subr.mxu0 0.0
    %4559 = vmatpush1.msra.mxu0 0.0
    %4560 = vmatprep.subr.mxu0 0.0
    %4561 = vmatpush1.msra.mxu0 0.0
    %4562 = vmatprep.subr.mxu0 0.0
    %4563 = vmatpush1.msra.mxu0 0.0
    %4564 = vmatprep.subr.mxu0 0.0
    %4565 = vmatpush1.msra.mxu0 0.0
    %4566 = vmatprep.subr.mxu0 0.0
    %4567 = vmatpush1.msra.mxu0 0.0
    %4568 = vmatprep.subr.mxu0 0.0
    %4569 = vmatpush1.msra.mxu0 0.0
    %4570 = vmatprep.subr.mxu0 0.0
    %4571 = vmatpush1.msra.mxu0 0.0
    %4572 = vmatprep.subr.mxu0 0.0
    %4573 = vmatpush1.msra.mxu0 0.0
    %4574 = vmatprep.subr.mxu0 0.0
    %4575 = vmatpush1.msra.mxu0 0.0
    %4576 = vmatprep.mubr.f32.mxu0 0.0
    %4577 = vmatmul.mubr.f32.gmra.mrb[0].mxu0 %v4510
    %v4578 = vpop.f32.mrb[0].mxu0
    %v4579 = vadd.f32 0.0, %v4578
    %v4580 = vpop.f32.mrb[0].mxu0
    %4581 = vdwg.mxu0
    %v4583 = vsel %vm37, %v4579, 0
    %4585 = vmatprep.subr.mxu0 0.0
    %4586 = vmatpush1.msra.mxu0 %v4359
    %4587 = vmatprep.subr.mxu0 0.0
    %4588 = vmatpush1.msra.mxu0 0.0
    %4589 = vmatprep.subr.mxu0 0.0
    %4590 = vmatpush1.msra.mxu0 0.0
    %4591 = vmatprep.subr.mxu0 0.0
    %4592 = vmatpush1.msra.mxu0 0.0
    %4593 = vmatprep.subr.mxu0 0.0
    %4594 = vmatpush1.msra.mxu0 0.0
    %4595 = vmatprep.subr.mxu0 0.0
    %4596 = vmatpush1.msra.mxu0 0.0
    %4597 = vmatprep.subr.mxu0 0.0
    %4598 = vmatpush1.msra.mxu0 0.0
    %4599 = vmatprep.subr.mxu0 0.0
    %4600 = vmatpush1.msra.mxu0 0.0
    %4601 = vmatprep.subr.mxu0 0.0
    %4602 = vmatpush1.msra.mxu0 0.0
    %4603 = vmatprep.subr.mxu0 0.0
    %4604 = vmatpush1.msra.mxu0 0.0
    %4605 = vmatprep.subr.mxu0 0.0
    %4606 = vmatpush1.msra.mxu0 0.0
    %4607 = vmatprep.subr.mxu0 0.0
    %4608 = vmatpush1.msra.mxu0 0.0
    %4609 = vmatprep.subr.mxu0 0.0
    %4610 = vmatpush1.msra.mxu0 0.0
    %4611 = vmatprep.subr.mxu0 0.0
    %4612 = vmatpush1.msra.mxu0 0.0
    %4613 = vmatprep.subr.mxu0 0.0
    %4614 = vmatpush1.msra.mxu0 0.0
    %4615 = vmatprep.subr.mxu0 0.0
    %4616 = vmatpush1.msra.mxu0 0.0
    %4617 = vmatprep.subr.mxu0 0.0
    %4618 = vmatpush1.msra.mxu0 0.0
    %4619 = vmatprep.subr.mxu0 0.0
    %4620 = vmatpush1.msra.mxu0 0.0
    %4621 = vmatprep.subr.mxu0 0.0
    %4622 = vmatpush1.msra.mxu0 0.0
    %4623 = vmatprep.subr.mxu0 0.0
    %4624 = vmatpush1.msra.mxu0 0.0
    %4625 = vmatprep.subr.mxu0 0.0
    %4626 = vmatpush1.msra.mxu0 0.0
    %4627 = vmatprep.subr.mxu0 0.0
    %4628 = vmatpush1.msra.mxu0 0.0
    %4629 = vmatprep.subr.mxu0 0.0
    %4630 = vmatpush1.msra.mxu0 0.0
    %4631 = vmatprep.subr.mxu0 0.0
    %4632 = vmatpush1.msra.mxu0 0.0
    %4633 = vmatprep.subr.mxu0 0.0
    %4634 = vmatpush1.msra.mxu0 0.0
    %4635 = vmatprep.subr.mxu0 0.0
    %4636 = vmatpush1.msra.mxu0 0.0
    %4637 = vmatprep.subr.mxu0 0.0
    %4638 = vmatpush1.msra.mxu0 0.0
    %4639 = vmatprep.subr.mxu0 0.0
    %4640 = vmatpush1.msra.mxu0 0.0
    %4641 = vmatprep.subr.mxu0 0.0
    %4642 = vmatpush1.msra.mxu0 0.0
    %4643 = vmatprep.subr.mxu0 0.0
    %4644 = vmatpush1.msra.mxu0 0.0
    %4645 = vmatprep.subr.mxu0 0.0
    %4646 = vmatpush1.msra.mxu0 0.0
    %4647 = vmatprep.subr.mxu0 0.0
    %4648 = vmatpush1.msra.mxu0 0.0
    %4649 = vmatprep.mubr.f32.mxu0 0.0
    %4650 = vmatmul.mubr.f32.gmra.mrb[0].mxu0 %v4583
    %v4651 = vpop.f32.mrb[0].mxu0
    %v4652 = vadd.f32 0.0, %v4651
    %v4653 = vpop.f32.mrb[0].mxu0
    %4654 = vdwg.mxu0
    %v4656 = vsel %vm37, %v4652, 0
    %4658 = vmatprep.subr.mxu0 0.0
    %4659 = vmatpush1.msra.mxu0 %v4360
    %4660 = vmatprep.subr.mxu0 0.0
    %4661 = vmatpush1.msra.mxu0 0.0
    %4662 = vmatprep.subr.mxu0 0.0
    %4663 = vmatpush1.msra.mxu0 0.0
    %4664 = vmatprep.subr.mxu0 0.0
    %4665 = vmatpush1.msra.mxu0 0.0
    %4666 = vmatprep.subr.mxu0 0.0
    %4667 = vmatpush1.msra.mxu0 0.0
    %4668 = vmatprep.subr.mxu0 0.0
    %4669 = vmatpush1.msra.mxu0 0.0
    %4670 = vmatprep.subr.mxu0 0.0
    %4671 = vmatpush1.msra.mxu0 0.0
    %4672 = vmatprep.subr.mxu0 0.0
    %4673 = vmatpush1.msra.mxu0 0.0
    %4674 = vmatprep.subr.mxu0 0.0
    %4675 = vmatpush1.msra.mxu0 0.0
    %4676 = vmatprep.subr.mxu0 0.0
    %4677 = vmatpush1.msra.mxu0 0.0
    %4678 = vmatprep.subr.mxu0 0.0
    %4679 = vmatpush1.msra.mxu0 0.0
    %4680 = vmatprep.subr.mxu0 0.0
    %4681 = vmatpush1.msra.mxu0 0.0
    %4682 = vmatprep.subr.mxu0 0.0
    %4683 = vmatpush1.msra.mxu0 0.0
    %4684 = vmatprep.subr.mxu0 0.0
    %4685 = vmatpush1.msra.mxu0 0.0
    %4686 = vmatprep.subr.mxu0 0.0
    %4687 = vmatpush1.msra.mxu0 0.0
    %4688 = vmatprep.subr.mxu0 0.0
    %4689 = vmatpush1.msra.mxu0 0.0
    %4690 = vmatprep.subr.mxu0 0.0
    %4691 = vmatpush1.msra.mxu0 0.0
    %4692 = vmatprep.subr.mxu0 0.0
    %4693 = vmatpush1.msra.mxu0 0.0
    %4694 = vmatprep.subr.mxu0 0.0
    %4695 = vmatpush1.msra.mxu0 0.0
    %4696 = vmatprep.subr.mxu0 0.0
    %4697 = vmatpush1.msra.mxu0 0.0
    %4698 = vmatprep.subr.mxu0 0.0
    %4699 = vmatpush1.msra.mxu0 0.0
    %4700 = vmatprep.subr.mxu0 0.0
    %4701 = vmatpush1.msra.mxu0 0.0
    %4702 = vmatprep.subr.mxu0 0.0
    %4703 = vmatpush1.msra.mxu0 0.0
    %4704 = vmatprep.subr.mxu0 0.0
    %4705 = vmatpush1.msra.mxu0 0.0
    %4706 = vmatprep.subr.mxu0 0.0
    %4707 = vmatpush1.msra.mxu0 0.0
    %4708 = vmatprep.subr.mxu0 0.0
    %4709 = vmatpush1.msra.mxu0 0.0
    %4710 = vmatprep.subr.mxu0 0.0
    %4711 = vmatpush1.msra.mxu0 0.0
    %4712 = vmatprep.subr.mxu0 0.0
    %4713 = vmatpush1.msra.mxu0 0.0
    %4714 = vmatprep.subr.mxu0 0.0
    %4715 = vmatpush1.msra.mxu0 0.0
    %4716 = vmatprep.subr.mxu0 0.0
    %4717 = vmatpush1.msra.mxu0 0.0
    %4718 = vmatprep.subr.mxu0 0.0
    %4719 = vmatpush1.msra.mxu0 0.0
    %4720 = vmatprep.subr.mxu0 0.0
    %4721 = vmatpush1.msra.mxu0 0.0
    %4722 = vmatprep.mubr.f32.mxu0 0.0
    %4723 = vmatmul.mubr.f32.gmra.mrb[0].mxu0 %v4656
    %v4724 = vpop.f32.mrb[0].mxu0
    %v4725 = vadd.f32 0.0, %v4724
    %v4726 = vpop.f32.mrb[0].mxu0
    %4727 = vdwg.mxu0
    %v4729 = vsel %vm37, %v4725, 0
    %4731 = vmatprep.subr.mxu0 0.0
    %4732 = vmatpush1.msra.mxu0 %v4361
    %4733 = vmatprep.subr.mxu0 0.0
    %4734 = vmatpush1.msra.mxu0 0.0
    %4735 = vmatprep.subr.mxu0 0.0
    %4736 = vmatpush1.msra.mxu0 0.0
    %4737 = vmatprep.subr.mxu0 0.0
    %4738 = vmatpush1.msra.mxu0 0.0
    %4739 = vmatprep.subr.mxu0 0.0
    %4740 = vmatpush1.msra.mxu0 0.0
    %4741 = vmatprep.subr.mxu0 0.0
    %4742 = vmatpush1.msra.mxu0 0.0
    %4743 = vmatprep.subr.mxu0 0.0
    %4744 = vmatpush1.msra.mxu0 0.0
    %4745 = vmatprep.subr.mxu0 0.0
    %4746 = vmatpush1.msra.mxu0 0.0
    %4747 = vmatprep.subr.mxu0 0.0
    %4748 = vmatpush1.msra.mxu0 0.0
    %4749 = vmatprep.subr.mxu0 0.0
    %4750 = vmatpush1.msra.mxu0 0.0
    %4751 = vmatprep.subr.mxu0 0.0
    %4752 = vmatpush1.msra.mxu0 0.0
    %4753 = vmatprep.subr.mxu0 0.0
    %4754 = vmatpush1.msra.mxu0 0.0
    %4755 = vmatprep.subr.mxu0 0.0
    %4756 = vmatpush1.msra.mxu0 0.0
    %4757 = vmatprep.subr.mxu0 0.0
    %4758 = vmatpush1.msra.mxu0 0.0
    %4759 = vmatprep.subr.mxu0 0.0
    %4760 = vmatpush1.msra.mxu0 0.0
    %4761 = vmatprep.subr.mxu0 0.0
    %4762 = vmatpush1.msra.mxu0 0.0
    %4763 = vmatprep.subr.mxu0 0.0
    %4764 = vmatpush1.msra.mxu0 0.0
    %4765 = vmatprep.subr.mxu0 0.0
    %4766 = vmatpush1.msra.mxu0 0.0
    %4767 = vmatprep.subr.mxu0 0.0
    %4768 = vmatpush1.msra.mxu0 0.0
    %4769 = vmatprep.subr.mxu0 0.0
    %4770 = vmatpush1.msra.mxu0 0.0
    %4771 = vmatprep.subr.mxu0 0.0
    %4772 = vmatpush1.msra.mxu0 0.0
    %4773 = vmatprep.subr.mxu0 0.0
    %4774 = vmatpush1.msra.mxu0 0.0
    %4775 = vmatprep.subr.mxu0 0.0
    %4776 = vmatpush1.msra.mxu0 0.0
    %4777 = vmatprep.subr.mxu0 0.0
    %4778 = vmatpush1.msra.mxu0 0.0
    %4779 = vmatprep.subr.mxu0 0.0
    %4780 = vmatpush1.msra.mxu0 0.0
    %4781 = vmatprep.subr.mxu0 0.0
    %4782 = vmatpush1.msra.mxu0 0.0
    %4783 = vmatprep.subr.mxu0 0.0
    %4784 = vmatpush1.msra.mxu0 0.0
    %4785 = vmatprep.subr.mxu0 0.0
    %4786 = vmatpush1.msra.mxu0 0.0
    %4787 = vmatprep.subr.mxu0 0.0
    %4788 = vmatpush1.msra.mxu0 0.0
    %4789 = vmatprep.subr.mxu0 0.0
    %4790 = vmatpush1.msra.mxu0 0.0
    %4791 = vmatprep.subr.mxu0 0.0
    %4792 = vmatpush1.msra.mxu0 0.0
    %4793 = vmatprep.subr.mxu0 0.0
    %4794 = vmatpush1.msra.mxu0 0.0
    %4795 = vmatprep.mubr.f32.mxu0 0.0
    %4796 = vmatmul.mubr.f32.gmra.mrb[0].mxu0 %v4729
    %v4797 = vpop.f32.mrb[0].mxu0
    %v4798 = vadd.f32 0.0, %v4797
    %v4799 = vpop.f32.mrb[0].mxu0
    %4800 = vdwg.mxu0
    %v4802 = vsel %vm37, %v4798, 0
    %4804 = vmatprep.subr.mxu0 0.0
    %4805 = vmatpush1.msra.mxu0 %v4362
    %4806 = vmatprep.subr.mxu0 0.0
    %4807 = vmatpush1.msra.mxu0 0.0
    %4808 = vmatprep.subr.mxu0 0.0
    %4809 = vmatpush1.msra.mxu0 0.0
    %4810 = vmatprep.subr.mxu0 0.0
    %4811 = vmatpush1.msra.mxu0 0.0
    %4812 = vmatprep.subr.mxu0 0.0
    %4813 = vmatpush1.msra.mxu0 0.0
    %4814 = vmatprep.subr.mxu0 0.0
    %4815 = vmatpush1.msra.mxu0 0.0
    %4816 = vmatprep.subr.mxu0 0.0
    %4817 = vmatpush1.msra.mxu0 0.0
    %4818 = vmatprep.subr.mxu0 0.0
    %4819 = vmatpush1.msra.mxu0 0.0
    %4820 = vmatprep.subr.mxu0 0.0
    %4821 = vmatpush1.msra.mxu0 0.0
    %4822 = vmatprep.subr.mxu0 0.0
    %4823 = vmatpush1.msra.mxu0 0.0
    %4824 = vmatprep.subr.mxu0 0.0
    %4825 = vmatpush1.msra.mxu0 0.0
    %4826 = vmatprep.subr.mxu0 0.0
    %4827 = vmatpush1.msra.mxu0 0.0
    %4828 = vmatprep.subr.mxu0 0.0
    %4829 = vmatpush1.msra.mxu0 0.0
    %4830 = vmatprep.subr.mxu0 0.0
    %4831 = vmatpush1.msra.mxu0 0.0
    %4832 = vmatprep.subr.mxu0 0.0
    %4833 = vmatpush1.msra.mxu0 0.0
    %4834 = vmatprep.subr.mxu0 0.0
    %4835 = vmatpush1.msra.mxu0 0.0
    %4836 = vmatprep.subr.mxu0 0.0
    %4837 = vmatpush1.msra.mxu0 0.0
    %4838 = vmatprep.subr.mxu0 0.0
    %4839 = vmatpush1.msra.mxu0 0.0
    %4840 = vmatprep.subr.mxu0 0.0
    %4841 = vmatpush1.msra.mxu0 0.0
    %4842 = vmatprep.subr.mxu0 0.0
    %4843 = vmatpush1.msra.mxu0 0.0
    %4844 = vmatprep.subr.mxu0 0.0
    %4845 = vmatpush1.msra.mxu0 0.0
    %4846 = vmatprep.subr.mxu0 0.0
    %4847 = vmatpush1.msra.mxu0 0.0
    %4848 = vmatprep.subr.mxu0 0.0
    %4849 = vmatpush1.msra.mxu0 0.0
    %4850 = vmatprep.subr.mxu0 0.0
    %4851 = vmatpush1.msra.mxu0 0.0
    %4852 = vmatprep.subr.mxu0 0.0
    %4853 = vmatpush1.msra.mxu0 0.0
    %4854 = vmatprep.subr.mxu0 0.0
    %4855 = vmatpush1.msra.mxu0 0.0
    %4856 = vmatprep.subr.mxu0 0.0
    %4857 = vmatpush1.msra.mxu0 0.0
    %4858 = vmatprep.subr.mxu0 0.0
    %4859 = vmatpush1.msra.mxu0 0.0
    %4860 = vmatprep.subr.mxu0 0.0
    %4861 = vmatpush1.msra.mxu0 0.0
    %4862 = vmatprep.subr.mxu0 0.0
    %4863 = vmatpush1.msra.mxu0 0.0
    %4864 = vmatprep.subr.mxu0 0.0
    %4865 = vmatpush1.msra.mxu0 0.0
    %4866 = vmatprep.subr.mxu0 0.0
    %4867 = vmatpush1.msra.mxu0 0.0
    %4868 = vmatprep.mubr.f32.mxu0 0.0
    %4869 = vmatmul.mubr.f32.gmra.mrb[0].mxu0 %v4802
    %v4870 = vpop.f32.mrb[0].mxu0
    %v4871 = vadd.f32 0.0, %v4870
    %v4872 = vpop.f32.mrb[0].mxu0
    %4873 = vdwg.mxu0
    %v4875 = vsel %vm37, %v4871, 0
    %4877 = vmatprep.subr.mxu0 0.0
    %4878 = vmatpush1.msra.mxu0 %v4363
    %4879 = vmatprep.subr.mxu0 0.0
    %4880 = vmatpush1.msra.mxu0 0.0
    %4881 = vmatprep.subr.mxu0 0.0
    %4882 = vmatpush1.msra.mxu0 0.0
    %4883 = vmatprep.subr.mxu0 0.0
    %4884 = vmatpush1.msra.mxu0 0.0
    %4885 = vmatprep.subr.mxu0 0.0
    %4886 = vmatpush1.msra.mxu0 0.0
    %4887 = vmatprep.subr.mxu0 0.0
    %4888 = vmatpush1.msra.mxu0 0.0
    %4889 = vmatprep.subr.mxu0 0.0
    %4890 = vmatpush1.msra.mxu0 0.0
    %4891 = vmatprep.subr.mxu0 0.0
    %4892 = vmatpush1.msra.mxu0 0.0
    %4893 = vmatprep.subr.mxu0 0.0
    %4894 = vmatpush1.msra.mxu0 0.0
    %4895 = vmatprep.subr.mxu0 0.0
    %4896 = vmatpush1.msra.mxu0 0.0
    %4897 = vmatprep.subr.mxu0 0.0
    %4898 = vmatpush1.msra.mxu0 0.0
    %4899 = vmatprep.subr.mxu0 0.0
    %4900 = vmatpush1.msra.mxu0 0.0
    %4901 = vmatprep.subr.mxu0 0.0
    %4902 = vmatpush1.msra.mxu0 0.0
    %4903 = vmatprep.subr.mxu0 0.0
    %4904 = vmatpush1.msra.mxu0 0.0
    %4905 = vmatprep.subr.mxu0 0.0
    %4906 = vmatpush1.msra.mxu0 0.0
    %4907 = vmatprep.subr.mxu0 0.0
    %4908 = vmatpush1.msra.mxu0 0.0
    %4909 = vmatprep.subr.mxu0 0.0
    %4910 = vmatpush1.msra.mxu0 0.0
    %4911 = vmatprep.subr.mxu0 0.0
    %4912 = vmatpush1.msra.mxu0 0.0
    %4913 = vmatprep.subr.mxu0 0.0
    %4914 = vmatpush1.msra.mxu0 0.0
    %4915 = vmatprep.subr.mxu0 0.0
    %4916 = vmatpush1.msra.mxu0 0.0
    %4917 = vmatprep.subr.mxu0 0.0
    %4918 = vmatpush1.msra.mxu0 0.0
    %4919 = vmatprep.subr.mxu0 0.0
    %4920 = vmatpush1.msra.mxu0 0.0
    %4921 = vmatprep.subr.mxu0 0.0
    %4922 = vmatpush1.msra.mxu0 0.0
    %4923 = vmatprep.subr.mxu0 0.0
    %4924 = vmatpush1.msra.mxu0 0.0
    %4925 = vmatprep.subr.mxu0 0.0
    %4926 = vmatpush1.msra.mxu0 0.0
    %4927 = vmatprep.subr.mxu0 0.0
    %4928 = vmatpush1.msra.mxu0 0.0
    %4929 = vmatprep.subr.mxu0 0.0
    %4930 = vmatpush1.msra.mxu0 0.0
    %4931 = vmatprep.subr.mxu0 0.0
    %4932 = vmatpush1.msra.mxu0 0.0
    %4933 = vmatprep.subr.mxu0 0.0
    %4934 = vmatpush1.msra.mxu0 0.0
    %4935 = vmatprep.subr.mxu0 0.0
    %4936 = vmatpush1.msra.mxu0 0.0
    %4937 = vmatprep.subr.mxu0 0.0
    %4938 = vmatpush1.msra.mxu0 0.0
    %4939 = vmatprep.subr.mxu0 0.0
    %4940 = vmatpush1.msra.mxu0 0.0
    %4941 = vmatprep.mubr.f32.mxu0 0.0
    %4942 = vmatmul.mubr.f32.gmra.mrb[0].mxu0 %v4875
    %v4943 = vpop.f32.mrb[0].mxu0
    %v4944 = vadd.f32 0.0, %v4943
    %v4945 = vpop.f32.mrb[0].mxu0
    %4946 = vdwg.mxu0
    %v4947 = vrot.slane %v4506, 7
    %v4949 = vrot.slane %v4579, 6
    %v4951 = vrot.slane %v4652, 5
    %v4953 = vrot.slane %v4725, 4
    %v4955 = vrot.slane %v4798, 3
    %v4957 = vrot.slane %v4871, 2
    %v4960 = vrot.slane %v4944, 1
    %v4962 = vsel %vm637, %v4433, %v4947
    %v4963 = vsel %vm639, %v4962, %v4949
    %v4964 = vsel %vm641, %v4963, %v4951
    %v4965 = vsel %vm643, %v4964, %v4953
    %v4966 = vsel %vm645, %v4965, %v4955
    %v4967 = vsel %vm647, %v4966, %v4957
    %v4968 = vsel %vm649, %v4967, %v4960
    %s4969 = scalar_lea.vmem [#allocation5], 56
    %4970 = vst [vmem:[%s4969] sm:$0xff] %v4968
    // Predicated region
    $region14: #{tpu_custom_call.1} parent=1 // pred_check
      _
    $region15: #{tpu_custom_call.1} parent=1 // pred_check_branch
      %4972 = sbr.rel (0) target = $region17
    $region16: #{tpu_custom_call.1} parent=1 // pred_region
      %s4974 = ssub.s32 1024, 1024
      %4975 = vsyncadd [#allocation4], %s4974
      %s4976 = sshll.u32 [#allocation5], 4
      %s4977 = int_to_ptr.vmem [resolvable:$true] %s4976
      %4982 = dma.vmem_to_hbm [thread:$0]  %s4977, 1024, %s2, [#allocation4], 128, 128, 8
    $region17: #{tpu_custom_call.1} parent=1 // pred_fallthru
      _
    // Predicated region
    $region18: #{tpu_custom_call.1} parent=1 // pred_check
      _
    $region19: #{tpu_custom_call.1} parent=1 // pred_check_branch
      %4984 = sbr.rel (0) target = $region21
    $region20: #{tpu_custom_call.1} parent=1 // pred_region
      %4985 = dma.done [#allocation4], 1024
    $region21: #{tpu_custom_call.1} parent=1 // pred_fallthru
      _
    %4986 = vsyncpa [#allocation3], 1
    %4987 = vsyncpa [#allocation4], 1

</llo_original>
